<compile_context>
chip_gen: v6e
topology: v6e:2x2x1
jax: 0.10.0
libtpu: 0.0.40
codegen_flags: <defaults>
</compile_context>

<pallas_src>
import functools

import jax
import jax.numpy as jnp
from jax.experimental import pallas as pl
from jax.experimental.pallas import tpu as pltpu

_VMEM_LIMIT = 48 * 1024 * 1024  # fits v7x's 64 MiB VMEM with headroom


def _round_up(x, m):
    return (x + m - 1) // m * m


def _cdiv(a, b):
    return (a + b - 1) // b


# ----------------------------------------------------------------------------
# Pallas kernel 1: stride-1 conv via in-VMEM tap accumulation (no HBM im2col)
#   x is the spatially padded NHWC input flattened to (rows, Cin); output pixel
#   q = ho*Wp + wo needs input rows q + i*Wp + j for each tap (i, j), so every
#   tap is a constant row shift.  The kernel gets two consecutive row blocks
#   (main + halo), concatenates them in VMEM and accumulates kh*kw MXU dots.
# ----------------------------------------------------------------------------
def _conv_tap_kernel(xlo_ref, xhi_ref, w_ref, b_ref, o_ref, *, offsets, act):
    tm = o_ref.shape[1]
    cout = o_ref.shape[2]
    x = jnp.concatenate([xlo_ref[0], xhi_ref[0]], axis=0)        # (2*tm, Cin) bf16
    acc = jnp.zeros((tm, cout), jnp.float32)
    for t, off in enumerate(offsets):                             # static unroll
        acc = acc + jnp.dot(x[off:off + tm, :], w_ref[t],
                            preferred_element_type=jnp.float32)
    y = acc + b_ref[...]
    if act == "relu":
        y = jnp.maximum(y, 0.0)
    o_ref[0] = y.astype(o_ref.dtype)


def conv2d_s1(x, wt, b2, kh, kw, pad, act="relu", out_dtype=jnp.bfloat16,
              tm_default=512):
    """Stride-1 NHWC conv.  x: (B,H,W,Cin) bf16, wt: (kh*kw,Cin,Cout) bf16."""
    B, H, W, Cin = x.shape
    Cout = wt.shape[-1]
    Hp, Wp = H + 2 * pad, W + 2 * pad
    Ho, Wo = Hp - kh + 1, Wp - kw + 1
    rows = Ho * Wp                        # output laid out with Wp row stride
    halo = (kh - 1) * Wp + (kw - 1)       # max tap row offset
    tm = max(min(tm_default, _round_up(rows, 16)), _round_up(halo, 16))
    nM = _cdiv(rows, tm)
    tot = (nM + 1) * tm                   # halo block of the last step must exist
    xp = jnp.pad(x, ((0, 0), (pad, pad), (pad, pad), (0, 0)))
    xf = jnp.pad(xp.reshape(B, Hp * Wp, Cin),
                 ((0, 0), (0, tot - Hp * Wp), (0, 0)))
    offsets = tuple(i * Wp + j for i in range(kh) for j in range(kw))
    out = pl.pallas_call(
        functools.partial(_conv_tap_kernel, offsets=offsets, act=act),
        out_shape=jax.ShapeDtypeStruct((B, nM * tm, Cout), out_dtype),
        grid=(B, nM),
        in_specs=[
            pl.BlockSpec((1, tm, Cin), lambda b, m: (b, m, 0)),      # main block
            pl.BlockSpec((1, tm, Cin), lambda b, m: (b, m + 1, 0)),  # halo block
            pl.BlockSpec((kh * kw, Cin, Cout), lambda b, m: (0, 0, 0)),
            pl.BlockSpec((1, Cout), lambda b, m: (0, 0)),
        ],
        out_specs=pl.BlockSpec((1, tm, Cout), lambda b, m: (b, m, 0)),
        compiler_params=pltpu.CompilerParams(
            dimension_semantics=("parallel", "parallel"),
            vmem_limit_bytes=_VMEM_LIMIT),
    )(xf, xf, wt, b2)
    out = out[:, :rows, :].reshape(B, Ho, Wp, Cout)[:, :, :Wo, :]
    return out


# ----------------------------------------------------------------------------
# Pallas kernel 2: M-tiled matmul + bias + act (stride-2 convs, deform proj)
# ----------------------------------------------------------------------------
def _mm_bias_act_kernel(x_ref, w_ref, b_ref, o_ref, *, act):
    y = jnp.dot(x_ref[...], w_ref[...], preferred_element_type=jnp.float32)
    y = y + b_ref[...]
    if act == "relu":
        y = jnp.maximum(y, 0.0)
    o_ref[...] = y.astype(o_ref.dtype)


def matmul_bias_act(x, w, b2, act="none", out_dtype=jnp.bfloat16,
                    tm_default=512):
    # x: (M, K) bf16, w: (K, N) bf16, b2: (1, N) f32
    M, K = x.shape
    N = w.shape[-1]
    tm = min(tm_default, _round_up(M, 16))
    Mp = _round_up(M, tm)
    xp = jnp.pad(x, ((0, Mp - M), (0, 0)))
    out = pl.pallas_call(
        functools.partial(_mm_bias_act_kernel, act=act),
        out_shape=jax.ShapeDtypeStruct((Mp, N), out_dtype),
        grid=(Mp // tm,),
        in_specs=[
            pl.BlockSpec((tm, K), lambda i: (i, 0)),
            pl.BlockSpec((K, N), lambda i: (0, 0)),
            pl.BlockSpec((1, N), lambda i: (0, 0)),
        ],
        out_specs=pl.BlockSpec((tm, N), lambda i: (i, 0)),
        compiler_params=pltpu.CompilerParams(
            dimension_semantics=("parallel",),
            vmem_limit_bytes=_VMEM_LIMIT),
    )(xp, w, b2)
    return out[:M]


# ----------------------------------------------------------------------------
# Pallas kernel 3: modulated deformable bilinear sampling (row-tiled, f32)
#   Seven streams stacked into one lane-dense (7, rows, 512) slab.
# ----------------------------------------------------------------------------
def _deform_sample_kernel(s_ref, o_ref, *, H, W):
    hy = s_ref[0]
    wx = s_ref[1]
    lh = hy - jnp.floor(hy)
    lw = wx - jnp.floor(wx)
    hh = 1.0 - lh
    hw = 1.0 - lw
    val = (hh * hw * s_ref[2] + hh * lw * s_ref[3]
           + lh * hw * s_ref[4] + lh * lw * s_ref[5])
    inr = (hy > -1.0) & (hy < float(H)) & (wx > -1.0) & (wx < float(W))
    val = jnp.where(inr, val, 0.0)
    o_ref[...] = val * jax.nn.sigmoid(s_ref[6])


def deform_sample(h_im, w_im, v1, v2, v3, v4, msk_logit, H, W):
    shp = h_im.shape
    E = h_im.size
    s = jnp.stack([a.astype(jnp.float32).reshape(-1)
                   for a in (h_im, w_im, v1, v2, v3, v4, msk_logit)], axis=0)
    ncols = 512
    nrows_raw = _cdiv(E, ncols)
    tr = min(256, _round_up(nrows_raw, 8))
    nrows = _round_up(nrows_raw, tr)
    s = jnp.pad(s, ((0, 0), (0, nrows * ncols - E))).reshape(7, nrows, ncols)
    out = pl.pallas_call(
        functools.partial(_deform_sample_kernel, H=H, W=W),
        out_shape=jax.ShapeDtypeStruct((nrows, ncols), jnp.float32),
        grid=(nrows // tr,),
        in_specs=[pl.BlockSpec((7, tr, ncols), lambda r: (0, r, 0))],
        out_specs=pl.BlockSpec((tr, ncols), lambda r: (r, 0)),
        compiler_params=pltpu.CompilerParams(
            dimension_semantics=("parallel",),
            vmem_limit_bytes=_VMEM_LIMIT),
    )(s)
    return out.reshape(-1)[:E].reshape(shp)


# ----------------------------------------------------------------------------
# Conv wrappers (NHWC)
# ----------------------------------------------------------------------------
def conv2d_s2(x, w2, b2, kh, kw, pad, stride=2, act="relu",
              out_dtype=jnp.bfloat16):
    # Strided convs keep an im2col matmul (output is 4x smaller, cheap layers).
    B, H, W, Cin = x.shape
    Cout = w2.shape[-1]
    Ho = (H + 2 * pad - kh) // stride + 1
    Wo = (W + 2 * pad - kw) // stride + 1
    xp = jnp.pad(x, ((0, 0), (pad, pad), (pad, pad), (0, 0)))
    patches = [xp[:, i:i + stride * (Ho - 1) + 1:stride,
                  j:j + stride * (Wo - 1) + 1:stride, :]
               for i in range(kh) for j in range(kw)]
    cols = jnp.stack(patches, axis=3).reshape(B * Ho * Wo, kh * kw * Cin)
    y = matmul_bias_act(cols, w2, b2, act=act, out_dtype=out_dtype)
    return y.reshape(B, Ho, Wo, Cout)


def conv_transpose2d(x, prm, stride=2, padding=1, act="relu"):
    # ConvTranspose2d == stride-1 conv of the zero-dilated input with the
    # flipped / in-out-swapped kernel (prepared once in prepare_params).
    # TODO(synk): sub-pixel decomposition (4 small convs) would avoid feeding
    # the MXU 75% structural zeros from the dilation.
    B, H, W, Cin = x.shape
    k = prm["kh"]
    xd = jnp.zeros((B, (H - 1) * stride + 1, (W - 1) * stride + 1, Cin), x.dtype)
    xd = xd.at[:, ::stride, ::stride, :].set(x)
    return conv2d_s1(xd, prm["wt"], prm["b"], k, prm["kw"],
                     pad=k - 1 - padding, act=act)


def shape_match(out, ref):
    # TODO(synk): jax.image.resize bilinear != F.interpolate(align_corners=False)
    # at image edges; only matters when spatial shapes mismatch.
    if out.shape[1:3] != ref.shape[1:3]:
        out = jax.image.resize(
            out.astype(jnp.float32),
            (out.shape[0],) + ref.shape[1:3] + (out.shape[3],),
            method="bilinear").astype(out.dtype)
    return out


# ----------------------------------------------------------------------------
# Modulated deformable conv (DCNv2), deformable_groups == in_channels, groups=1
# ----------------------------------------------------------------------------
def modulated_deform_conv(x, off_msk, dprm, ks=3, pad=1, act="relu"):
    # x: (B,H,W,C) f32 NHWC; off_msk: (B,Ho,Wo, C*3*K) f32
    B, H, W, C = x.shape
    K = ks * ks
    Ho, Wo = off_msk.shape[1], off_msk.shape[2]

    # mmcv layout: group(=channel)-major, (dy, dx) interleaved per kernel pos
    off = off_msk[..., :C * 2 * K].reshape(B, Ho, Wo, C, K, 2)
    off_y = off[..., 0]
    off_x = off[..., 1]
    msk_logit = off_msk[..., C * 2 * K:].reshape(B, Ho, Wo, C, K)

    i_idx = (jnp.arange(K) // ks).astype(jnp.float32)
    j_idx = (jnp.arange(K) % ks).astype(jnp.float32)
    ys = (jnp.arange(Ho) - pad).astype(jnp.float32)
    xs = (jnp.arange(Wo) - pad).astype(jnp.float32)
    base_y = ys[None, :, None, None, None] + i_idx[None, None, None, None, :]
    base_x = xs[None, None, :, None, None] + j_idx[None, None, None, None, :]
    h_im = base_y + off_y                                     # (B,Ho,Wo,C,K)
    w_im = base_x + off_x

    h_low = jnp.floor(h_im).astype(jnp.int32)
    w_low = jnp.floor(w_im).astype(jnp.int32)
    dh = jnp.array([0, 0, 1, 1], jnp.int32).reshape(1, 4, 1, 1, 1, 1)
    dw = jnp.array([0, 1, 0, 1], jnp.int32).reshape(1, 4, 1, 1, 1, 1)
    hy = h_low[:, None] + dh                                  # (B,4,Ho,Wo,C,K)
    wx = w_low[:, None] + dw
    valid = (hy >= 0) & (hy <= H - 1) & (wx >= 0) & (wx <= W - 1)
    hyc = jnp.clip(hy, 0, H - 1)
    wxc = jnp.clip(wx, 0, W - 1)
    cidx = jnp.arange(C, dtype=jnp.int32).reshape(1, 1, 1, 1, C, 1)
    flat = (hyc * W + wxc) * C + cidx
    # TODO(synk): data-dependent corner gather stays in XLA glue (no clean TPU
    # Pallas gather); all four corners fetched with one fused take_along_axis.
    g = jnp.take_along_axis(x.reshape(B, H * W * C), flat.reshape(B, -1), axis=1)
    g = jnp.where(valid, g.reshape(B, 4, Ho, Wo, C, K), 0.0)

    cols = deform_sample(h_im, w_im, g[:, 0], g[:, 1], g[:, 2], g[:, 3],
                         msk_logit, H, W)                     # (B,Ho,Wo,C,K)
    cols = cols.reshape(B * Ho * Wo, C * K).astype(jnp.bfloat16)
    y = matmul_bias_act(cols, dprm["w2"], dprm["b"], act=act,
                        out_dtype=jnp.float32)
    return y.reshape(B, Ho, Wo, -1)


# ----------------------------------------------------------------------------
# Parameters: PyTorch-layout init + one-time prep (hoisted out of the forward)
# ----------------------------------------------------------------------------
def init_params(key, in_nc, out_nc, nf, nb, base_ks=3, deform_ks=3):
    keys = iter(jax.random.split(key, 64))

    def conv_p(cout, cin, k, scale=0.05):
        w = jax.random.normal(next(keys), (cout, cin, k, k), jnp.float32) * scale
        b = jax.random.normal(next(keys), (cout,), jnp.float32) * scale
        return (w, b)

    def convT_p(cin, cout, k, scale=0.05):
        w = jax.random.normal(next(keys), (cin, cout, k, k), jnp.float32) * scale
        b = jax.random.normal(next(keys), (cout,), jnp.float32) * scale
        return (w, b)

    p = {}
    p["in_conv"] = conv_p(nf, in_nc, base_ks)
    for i in range(1, nb):
        p[f"dn_conv{i}"] = conv_p(nf, nf, base_ks) + conv_p(nf, nf, base_ks)
        p[f"up_conv{i}"] = conv_p(nf, 2 * nf, base_ks) + convT_p(nf, nf, 4)
    p["tr_conv"] = (conv_p(nf, nf, base_ks) + conv_p(nf, nf, base_ks)
                    + convT_p(nf, nf, 4))
    p["out_conv"] = conv_p(nf, nf, base_ks)
    size_dk = deform_ks ** 2
    p["offset_mask"] = conv_p(in_nc * 3 * size_dk, nf, base_ks)
    p["deform_conv"] = conv_p(out_nc, in_nc, deform_ks)
    return p


def _prep_s1(w, b):                       # (Cout,Cin,kh,kw) -> tap form, bf16
    cout, cin, kh, kw = w.shape
    wt = jnp.transpose(w, (2, 3, 1, 0)).reshape(kh * kw, cin, cout)
    return {"wt": wt.astype(jnp.bfloat16),
            "b": b.reshape(1, cout).astype(jnp.float32), "kh": kh, "kw": kw}


def _prep_s2(w, b):                       # (Cout,Cin,kh,kw) -> im2col form, bf16
    cout, cin, kh, kw = w.shape
    w2 = jnp.transpose(w, (2, 3, 1, 0)).reshape(kh * kw * cin, cout)
    return {"w2": w2.astype(jnp.bfloat16),
            "b": b.reshape(1, cout).astype(jnp.float32), "kh": kh, "kw": kw}


def _prep_convT(w, b):                    # (Cin,Cout,kh,kw) -> equiv conv taps
    cin, cout, kh, kw = w.shape
    we = jnp.transpose(jnp.flip(w, (2, 3)), (2, 3, 0, 1))  # (kh,kw,Cin,Cout)
    return {"wt": we.reshape(kh * kw, cin, cout).astype(jnp.bfloat16),
            "b": b.reshape(1, cout).astype(jnp.float32), "kh": kh, "kw": kw}


def _prep_deform(w, b):                   # (Cout,Cin,kh,kw) -> (Cin*K, Cout)
    cout = w.shape[0]
    w2 = w.reshape(cout, -1).T
    return {"w2": w2.astype(jnp.bfloat16),
            "b": b.reshape(1, cout).astype(jnp.float32)}


def prepare_params(p, nb):
    """One-time weight layout transpose + bf16 cast (not per forward call)."""
    q = {"in_conv": _prep_s1(*p["in_conv"]),
         "out_conv": _prep_s1(*p["out_conv"]),
         "offset_mask": _prep_s1(*p["offset_mask"]),
         "deform_conv": _prep_deform(*p["deform_conv"])}
    for i in range(1, nb):
        w1, b1, w2, b2 = p[f"dn_conv{i}"]
        q[f"dn_conv{i}"] = (_prep_s2(w1, b1), _prep_s1(w2, b2))
        w1, b1, w2, b2 = p[f"up_conv{i}"]
        q[f"up_conv{i}"] = (_prep_s1(w1, b1), _prep_convT(w2, b2))
    w1, b1, w2, b2, w3, b3 = p["tr_conv"]
    q["tr_conv"] = (_prep_s2(w1, b1), _prep_s1(w2, b2), _prep_convT(w3, b3))
    return q


# ----------------------------------------------------------------------------
# FA forward
# ----------------------------------------------------------------------------
def fa_forward(prm, inputs, *, in_nc, nb, deform_ks=3):
    b, t, c, h, w = inputs.shape
    x_nchw = inputs.reshape(b, t * c, h, w)
    x = jnp.transpose(x_nchw, (0, 2, 3, 1))                 # NHWC, f32
    assert x.shape[-1] == in_nc
    x_bf = x.astype(jnp.bfloat16)

    p = prm["in_conv"]
    out_lst = [conv2d_s1(x_bf, p["wt"], p["b"], p["kh"], p["kw"], pad=1)]
    for i in range(1, nb):
        p0, p1 = prm[f"dn_conv{i}"]
        y = conv2d_s2(out_lst[i - 1], p0["w2"], p0["b"], p0["kh"], p0["kw"],
                      pad=1, stride=2)
        y = conv2d_s1(y, p1["wt"], p1["b"], p1["kh"], p1["kw"], pad=1)
        out_lst.append(y)

    p0, p1, p2 = prm["tr_conv"]
    out = conv2d_s2(out_lst[-1], p0["w2"], p0["b"], p0["kh"], p0["kw"],
                    pad=1, stride=2)
    out = conv2d_s1(out, p1["wt"], p1["b"], p1["kh"], p1["kw"], pad=1)
    out = conv_transpose2d(out, p2, stride=2, padding=1)

    for i in range(nb - 1, 0, -1):
        p0, p1 = prm[f"up_conv{i}"]
        out = shape_match(out, out_lst[i])
        out = jnp.concatenate([out, out_lst[i]], axis=-1)
        out = conv2d_s1(out, p0["wt"], p0["b"], p0["kh"], p0["kw"], pad=1)
        out = conv_transpose2d(out, p1, stride=2, padding=1)

    p = prm["out_conv"]
    oc = conv2d_s1(out, p["wt"], p["b"], p["kh"], p["kw"], pad=1)
    p = prm["offset_mask"]
    off_msk = conv2d_s1(oc, p["wt"], p["b"], p["kh"], p["kw"], pad=1,
                        act="none", out_dtype=jnp.float32)   # keep offsets f32

    fused = modulated_deform_conv(x, off_msk, prm["deform_conv"],
                                  ks=deform_ks, pad=deform_ks // 2, act="relu")
    fused = shape_match(fused, x)
    return jnp.transpose(fused, (0, 3, 1, 2))                # back to NCHW


if __name__ == "__main__":
    key = jax.random.PRNGKey(0)
    kp, kx = jax.random.split(key)

    B, T, C, H, W = 2, 3, 1, 16, 16
    in_nc = T * C          # 3 (module is fed the flattened temporal stack)
    out_nc, nf, nb = 16, 16, 2

    params = prepare_params(init_params(kp, in_nc, out_nc, nf, nb), nb)
    inputs = jax.random.normal(kx, (B, T, C, H, W), jnp.float32)

    out = fa_forward(params, inputs, in_nc=in_nc, nb=nb)
    jax.block_until_ready(out)
    assert out.shape == (B, out_nc, H, W)
    print("KERNEL_OK")
</pallas_src>

<mosaic_0001>
module attributes {stable_mosaic.version = 11 : i64} {
  func.func @_conv_tap_kernel(%arg0: i32, %arg1: i32, %arg2: memref<1x288x3xbf16, #tpu.memory_space<vmem>>, %arg3: memref<1x288x3xbf16, #tpu.memory_space<vmem>>, %arg4: memref<9x3x16xbf16, #tpu.memory_space<vmem>>, %arg5: memref<1x16xf32, #tpu.memory_space<vmem>>, %arg6: memref<1x288x16xbf16, #tpu.memory_space<vmem>>) attributes {dimension_semantics = [#tpu.dimension_semantics<parallel>, #tpu.dimension_semantics<parallel>], iteration_bounds = array<i64: 2, 1>, scalar_prefetch = 0 : i64, scratch_operands = 0 : i64, tpu.core_type = #tpu.core_type<tc>, window_params = [{transform_indices = @transform_0, window_bounds = array<i64: 1, 288, 3>}, {transform_indices = @transform_1, window_bounds = array<i64: 1, 288, 3>}, {pipeline_mode = #tpu.pipeline_mode<synchronous>, transform_indices = @transform_2, window_bounds = array<i64: 9, 3, 16>}, {pipeline_mode = #tpu.pipeline_mode<synchronous>, transform_indices = @transform_3, window_bounds = array<i64: 1, 16>}, {transform_indices = @transform_4, window_bounds = array<i64: 1, 288, 16>}]} {
    %c0 = arith.constant 0 : index
    %c0_0 = arith.constant 0 : index
    %c0_1 = arith.constant 0 : index
    %0 = vector.load %arg2[%c0, %c0_0, %c0_1] : memref<1x288x3xbf16, #tpu.memory_space<vmem>>, vector<1x288x3xbf16>
    %1 = vector.shape_cast %0 : vector<1x288x3xbf16> to vector<288x3xbf16>
    %c0_2 = arith.constant 0 : index
    %c0_3 = arith.constant 0 : index
    %c0_4 = arith.constant 0 : index
    %2 = vector.load %arg3[%c0_2, %c0_3, %c0_4] : memref<1x288x3xbf16, #tpu.memory_space<vmem>>, vector<1x288x3xbf16>
    %3 = vector.shape_cast %2 : vector<1x288x3xbf16> to vector<288x3xbf16>
    %4 = tpu.concatenate %1, %3 in 0 : vector<288x3xbf16>, vector<288x3xbf16> -> vector<576x3xbf16>
    %cst = arith.constant 0.000000e+00 : f32
    %5 = vector.broadcast %cst : f32 to vector<288x16xf32>
    %6 = vector.extract_strided_slice %4 {offsets = [0, 0], sizes = [288, 3], strides = [1, 1]} : vector<576x3xbf16> to vector<288x3xbf16>
    %c0_5 = arith.constant 0 : index
    %c0_6 = arith.constant 0 : index
    %c0_7 = arith.constant 0 : index
    %7 = vector.load %arg4[%c0_5, %c0_6, %c0_7] : memref<9x3x16xbf16, #tpu.memory_space<vmem>>, vector<1x3x16xbf16>
    %8 = vector.shape_cast %7 : vector<1x3x16xbf16> to vector<3x16xbf16>
    %cst_8 = arith.constant dense<0.000000e+00> : vector<288x16xf32>
    %9 = tpu.matmul %6, %8, %cst_8 {dimension_numbers = #tpu.dot_dimension_numbers<[1], [0], [0], [1], [0, 0, 1, 1], [], []>} : vector<288x3xbf16>, vector<3x16xbf16>, vector<288x16xf32> -> vector<288x16xf32>
    %10 = arith.addf %5, %9 : vector<288x16xf32>
    %11 = vector.extract_strided_slice %4 {offsets = [1, 0], sizes = [288, 3], strides = [1, 1]} : vector<576x3xbf16> to vector<288x3xbf16>
    %c1 = arith.constant 1 : index
    %c0_9 = arith.constant 0 : index
    %c0_10 = arith.constant 0 : index
    %12 = vector.load %arg4[%c1, %c0_9, %c0_10] : memref<9x3x16xbf16, #tpu.memory_space<vmem>>, vector<1x3x16xbf16>
    %13 = vector.shape_cast %12 : vector<1x3x16xbf16> to vector<3x16xbf16>
    %cst_11 = arith.constant dense<0.000000e+00> : vector<288x16xf32>
    %14 = tpu.matmul %11, %13, %cst_11 {dimension_numbers = #tpu.dot_dimension_numbers<[1], [0], [0], [1], [0, 0, 1, 1], [], []>} : vector<288x3xbf16>, vector<3x16xbf16>, vector<288x16xf32> -> vector<288x16xf32>
    %15 = arith.addf %10, %14 : vector<288x16xf32>
    %16 = vector.extract_strided_slice %4 {offsets = [2, 0], sizes = [288, 3], strides = [1, 1]} : vector<576x3xbf16> to vector<288x3xbf16>
    %c2 = arith.constant 2 : index
    %c0_12 = arith.constant 0 : index
    %c0_13 = arith.constant 0 : index
    %17 = vector.load %arg4[%c2, %c0_12, %c0_13] : memref<9x3x16xbf16, #tpu.memory_space<vmem>>, vector<1x3x16xbf16>
    %18 = vector.shape_cast %17 : vector<1x3x16xbf16> to vector<3x16xbf16>
    %cst_14 = arith.constant dense<0.000000e+00> : vector<288x16xf32>
    %19 = tpu.matmul %16, %18, %cst_14 {dimension_numbers = #tpu.dot_dimension_numbers<[1], [0], [0], [1], [0, 0, 1, 1], [], []>} : vector<288x3xbf16>, vector<3x16xbf16>, vector<288x16xf32> -> vector<288x16xf32>
    %20 = arith.addf %15, %19 : vector<288x16xf32>
    %21 = vector.extract_strided_slice %4 {offsets = [18, 0], sizes = [288, 3], strides = [1, 1]} : vector<576x3xbf16> to vector<288x3xbf16>
    %c3 = arith.constant 3 : index
    %c0_15 = arith.constant 0 : index
    %c0_16 = arith.constant 0 : index
    %22 = vector.load %arg4[%c3, %c0_15, %c0_16] : memref<9x3x16xbf16, #tpu.memory_space<vmem>>, vector<1x3x16xbf16>
    %23 = vector.shape_cast %22 : vector<1x3x16xbf16> to vector<3x16xbf16>
    %cst_17 = arith.constant dense<0.000000e+00> : vector<288x16xf32>
    %24 = tpu.matmul %21, %23, %cst_17 {dimension_numbers = #tpu.dot_dimension_numbers<[1], [0], [0], [1], [0, 0, 1, 1], [], []>} : vector<288x3xbf16>, vector<3x16xbf16>, vector<288x16xf32> -> vector<288x16xf32>
    %25 = arith.addf %20, %24 : vector<288x16xf32>
    %26 = vector.extract_strided_slice %4 {offsets = [19, 0], sizes = [288, 3], strides = [1, 1]} : vector<576x3xbf16> to vector<288x3xbf16>
    %c4 = arith.constant 4 : index
    %c0_18 = arith.constant 0 : index
    %c0_19 = arith.constant 0 : index
    %27 = vector.load %arg4[%c4, %c0_18, %c0_19] : memref<9x3x16xbf16, #tpu.memory_space<vmem>>, vector<1x3x16xbf16>
    %28 = vector.shape_cast %27 : vector<1x3x16xbf16> to vector<3x16xbf16>
    %cst_20 = arith.constant dense<0.000000e+00> : vector<288x16xf32>
    %29 = tpu.matmul %26, %28, %cst_20 {dimension_numbers = #tpu.dot_dimension_numbers<[1], [0], [0], [1], [0, 0, 1, 1], [], []>} : vector<288x3xbf16>, vector<3x16xbf16>, vector<288x16xf32> -> vector<288x16xf32>
    %30 = arith.addf %25, %29 : vector<288x16xf32>
    %31 = vector.extract_strided_slice %4 {offsets = [20, 0], sizes = [288, 3], strides = [1, 1]} : vector<576x3xbf16> to vector<288x3xbf16>
    %c5 = arith.constant 5 : index
    %c0_21 = arith.constant 0 : index
    %c0_22 = arith.constant 0 : index
    %32 = vector.load %arg4[%c5, %c0_21, %c0_22] : memref<9x3x16xbf16, #tpu.memory_space<vmem>>, vector<1x3x16xbf16>
    %33 = vector.shape_cast %32 : vector<1x3x16xbf16> to vector<3x16xbf16>
    %cst_23 = arith.constant dense<0.000000e+00> : vector<288x16xf32>
    %34 = tpu.matmul %31, %33, %cst_23 {dimension_numbers = #tpu.dot_dimension_numbers<[1], [0], [0], [1], [0, 0, 1, 1], [], []>} : vector<288x3xbf16>, vector<3x16xbf16>, vector<288x16xf32> -> vector<288x16xf32>
    %35 = arith.addf %30, %34 : vector<288x16xf32>
    %36 = vector.extract_strided_slice %4 {offsets = [36, 0], sizes = [288, 3], strides = [1, 1]} : vector<576x3xbf16> to vector<288x3xbf16>
    %c6 = arith.constant 6 : index
    %c0_24 = arith.constant 0 : index
    %c0_25 = arith.constant 0 : index
    %37 = vector.load %arg4[%c6, %c0_24, %c0_25] : memref<9x3x16xbf16, #tpu.memory_space<vmem>>, vector<1x3x16xbf16>
    %38 = vector.shape_cast %37 : vector<1x3x16xbf16> to vector<3x16xbf16>
    %cst_26 = arith.constant dense<0.000000e+00> : vector<288x16xf32>
    %39 = tpu.matmul %36, %38, %cst_26 {dimension_numbers = #tpu.dot_dimension_numbers<[1], [0], [0], [1], [0, 0, 1, 1], [], []>} : vector<288x3xbf16>, vector<3x16xbf16>, vector<288x16xf32> -> vector<288x16xf32>
    %40 = arith.addf %35, %39 : vector<288x16xf32>
    %41 = vector.extract_strided_slice %4 {offsets = [37, 0], sizes = [288, 3], strides = [1, 1]} : vector<576x3xbf16> to vector<288x3xbf16>
    %c7 = arith.constant 7 : index
    %c0_27 = arith.constant 0 : index
    %c0_28 = arith.constant 0 : index
    %42 = vector.load %arg4[%c7, %c0_27, %c0_28] : memref<9x3x16xbf16, #tpu.memory_space<vmem>>, vector<1x3x16xbf16>
    %43 = vector.shape_cast %42 : vector<1x3x16xbf16> to vector<3x16xbf16>
    %cst_29 = arith.constant dense<0.000000e+00> : vector<288x16xf32>
    %44 = tpu.matmul %41, %43, %cst_29 {dimension_numbers = #tpu.dot_dimension_numbers<[1], [0], [0], [1], [0, 0, 1, 1], [], []>} : vector<288x3xbf16>, vector<3x16xbf16>, vector<288x16xf32> -> vector<288x16xf32>
    %45 = arith.addf %40, %44 : vector<288x16xf32>
    %46 = vector.extract_strided_slice %4 {offsets = [38, 0], sizes = [288, 3], strides = [1, 1]} : vector<576x3xbf16> to vector<288x3xbf16>
    %c8 = arith.constant 8 : index
    %c0_30 = arith.constant 0 : index
    %c0_31 = arith.constant 0 : index
    %47 = vector.load %arg4[%c8, %c0_30, %c0_31] : memref<9x3x16xbf16, #tpu.memory_space<vmem>>, vector<1x3x16xbf16>
    %48 = vector.shape_cast %47 : vector<1x3x16xbf16> to vector<3x16xbf16>
    %cst_32 = arith.constant dense<0.000000e+00> : vector<288x16xf32>
    %49 = tpu.matmul %46, %48, %cst_32 {dimension_numbers = #tpu.dot_dimension_numbers<[1], [0], [0], [1], [0, 0, 1, 1], [], []>} : vector<288x3xbf16>, vector<3x16xbf16>, vector<288x16xf32> -> vector<288x16xf32>
    %50 = arith.addf %45, %49 : vector<288x16xf32>
    %c0_33 = arith.constant 0 : index
    %c0_34 = arith.constant 0 : index
    %51 = vector.load %arg5[%c0_33, %c0_34] : memref<1x16xf32, #tpu.memory_space<vmem>>, vector<1x16xf32>
    %52 = vector.broadcast %51 : vector<1x16xf32> to vector<288x16xf32>
    %53 = arith.addf %50, %52 : vector<288x16xf32>
    %cst_35 = arith.constant 0.000000e+00 : f32
    %54 = vector.broadcast %cst_35 : f32 to vector<288x16xf32>
    %55 = arith.maximumf %53, %54 : vector<288x16xf32>
    %56 = arith.truncf %55 : vector<288x16xf32> to vector<288x16xbf16>
    %c0_36 = arith.constant 0 : index
    %c0_37 = arith.constant 0 : index
    %c0_38 = arith.constant 0 : index
    %57 = vector.load %arg6[%c0_36, %c0_37, %c0_38] : memref<1x288x16xbf16, #tpu.memory_space<vmem>>, vector<1x288x16xbf16>
    %58 = vector.shape_cast %57 : vector<1x288x16xbf16> to vector<288x16xbf16>
    %59 = vector.shape_cast %56 : vector<288x16xbf16> to vector<1x288x16xbf16>
    tpu.vector_store %arg6[%c0_36, %c0_37, %c0_38], %59 {strides = array<i32>} : memref<1x288x16xbf16, #tpu.memory_space<vmem>>, vector<1x288x16xbf16>,
    return
  }
  func.func @transform_0(%arg0: i32, %arg1: i32) -> (i32, i32, i32) {
    %c0_i32 = arith.constant 0 : i32
    %c0_i32_0 = arith.constant 0 : i32
    return %arg0, %arg1, %c0_i32 : i32, i32, i32
  }
  func.func @transform_1(%arg0: i32, %arg1: i32) -> (i32, i32, i32) {
    %c1_i32 = arith.constant 1 : i32
    %0 = arith.addi %arg1, %c1_i32 : i32
    %c0_i32 = arith.constant 0 : i32
    %c0_i32_0 = arith.constant 0 : i32
    return %arg0, %0, %c0_i32 : i32, i32, i32
  }
  func.func @transform_2(%arg0: i32, %arg1: i32) -> (i32, i32, i32) {
    %c0_i32 = arith.constant 0 : i32
    %c0_i32_0 = arith.constant 0 : i32
    %c0_i32_1 = arith.constant 0 : i32
    %c0_i32_2 = arith.constant 0 : i32
    return %c0_i32, %c0_i32_0, %c0_i32_1 : i32, i32, i32
  }
  func.func @transform_3(%arg0: i32, %arg1: i32) -> (i32, i32) {
    %c0_i32 = arith.constant 0 : i32
    %c0_i32_0 = arith.constant 0 : i32
    %c0_i32_1 = arith.constant 0 : i32
    return %c0_i32, %c0_i32_0 : i32, i32
  }
  func.func @transform_4(%arg0: i32, %arg1: i32) -> (i32, i32, i32) {
    %c0_i32 = arith.constant 0 : i32
    %c0_i32_0 = arith.constant 0 : i32
    return %arg0, %arg1, %c0_i32 : i32, i32, i32
  }
}

</mosaic_0001>

<llo_original>
// kernel: tpu_custom_call.1
$region0: #{tpu_custom_call.1}
  #allocation0 [shape = 'u32[]', space=smem, size = 0x4, offset = 0x4, fixed_abs, tag = 'smem constant byte address 0x4 - core index']
  #allocation1 [shape = 'u32[144,128]{1,0:T(1,128)}', space=vmem, size = 0x12000, scoped, tag = 'internal scratch']
  %s0 = inlined_call_operand.vmem [shape: bf16[2,576,3], index: 0, kind: input, shape index: {}]
  %s1 = inlined_call_operand.vmem [shape: bf16[2,576,3], index: 1, kind: input, shape index: {}]
  %s2 = inlined_call_operand.vmem [shape: bf16[9,3,16], index: 2, kind: input, shape index: {}]
  %s3 = inlined_call_operand.vmem [shape: f32[1,16], index: 3, kind: input, shape index: {}]
  %s4 = inlined_call_operand.vmem [shape: bf16[2,288,16], index: 4, kind: output, shape index: {}]
  %s5 = sld [smem:[#allocation0]]
  $region49: #{tpu_custom_call.1} parent=0
    _
  %s7 = ssub.s32 1, %s5
  %s8 = scalar_select 0, %s7, %s5
  loop: start=0, step=1, limit=4
  $region2: #{tpu_custom_call.1} parent=0 // loop_pre_header
    _
  $region3: #{tpu_custom_call.1} parent=0 // loop_header
    %s10 = sphi 0, %s14
    %p11 = scmp.ge.s32.totalorder %s10, 4
    %s17 = sphi 0, %s29
    %s18 = sphi 0, %s25
    %s19 = sphi 0, %s17
    %s20 = sphi 0, %s18
    %s21 = sphi 0, %s19
    %s22 = sphi 0, %s20
    %s34 = sphi 0, %s36
    %s37 = sphi 0, %s34
    %s38 = sphi 0, %s37
    %s54 = sphi 0, %s38
    %s64 = sphi 0, %s66
    %s67 = sphi 0, %s64
    %s68 = sphi 0, %s67
    %s84 = sphi 0, %s68
    %s88 = sphi 0, %s88
    %s90 = sphi 0, %s88
    %s91 = sphi 0, %s90
    %s105 = sphi 0, %s91
    %s109 = sphi 0, %s109
    %s111 = sphi 0, %s109
    %s112 = sphi 0, %s111
    %s126 = sphi 0, %s112
    %s134 = sphi 0, %s136
    %s137 = sphi 0, %s134
    %s138 = sphi 0, %s137
    %s154 = sphi 0, %s138
  $region4: #{tpu_custom_call.1} parent=0 // loop_header_branch
    %13 = sbr.rel (%p11) target = $region8
  $region5: #{tpu_custom_call.1} parent=0 // loop_body
    %s15 = ssub.s32 %s10, 1
    %s16 = ssub.s32 %s10, 2
    %s23 = sadd.s32 1, %s18
    %p24 = scmp.ge.s32.totalorder %s23, 1
    %s25 = scalar_select %p24, 0, %s23
    %s26 = sadd.s32 1, %s17
    %s27 = scalar_select %p24, %s26, %s17
    %p28 = scmp.ge.s32.totalorder %s27, 2
    %s29 = scalar_select %p28, 0, %s27
    %s30 = ssub.s32 %s17, %s29
    %s31 = ssub.s32 %s18, %s25
    %s32 = sor.u32 %s30, %s31
    %p33 = scmp.eq.s32.totalorder %s32, 0
    %s35 = sadd.s32 %s34, 1
    %s36 = scalar_select %p33, %s34, %s35
    %p39 = pneg %p33
    %p40 = scmp.eq.s32.totalorder %s10, 1
    %p41 = por %p39, %p40
    %p42 = scmp.ne.s32.totalorder %s34, %s37
    %p43 = scmp.eq.s32.totalorder %s10, 0
    %p44 = por %p42, %p43
    %p45 = scmp.ne.s32.totalorder %s34, %s37
    %p46 = scmp.eq.s32.totalorder %s15, 1
    %p47 = por %p45, %p46
    %p48 = scmp.ne.s32.totalorder %s37, %s38
    %p49 = scmp.eq.s32.totalorder %s15, 0
    %p50 = por %p48, %p49
    %p51 = scmp.ne.s32.totalorder %s37, %s38
    %p52 = scmp.eq.s32.totalorder %s16, 1
    %p53 = por %p51, %p52
    %p55 = scmp.ne.s32.totalorder %s38, %s54
    %p56 = scmp.eq.s32.totalorder %s16, 0
    %p57 = por %p55, %p56
    %s58 = sadd.s32 %s18, 1
    %s59 = sadd.s32 %s25, 1
    %s60 = ssub.s32 %s17, %s29
    %s61 = ssub.s32 %s58, %s59
    %s62 = sor.u32 %s60, %s61
    %p63 = scmp.eq.s32.totalorder %s62, 0
    %s65 = sadd.s32 %s64, 1
    %s66 = scalar_select %p63, %s64, %s65
    %p69 = pneg %p63
    %p70 = scmp.eq.s32.totalorder %s10, 1
    %p71 = por %p69, %p70
    %p72 = scmp.ne.s32.totalorder %s64, %s67
    %p73 = scmp.eq.s32.totalorder %s10, 0
    %p74 = por %p72, %p73
    %p75 = scmp.ne.s32.totalorder %s64, %s67
    %p76 = scmp.eq.s32.totalorder %s15, 1
    %p77 = por %p75, %p76
    %p78 = scmp.ne.s32.totalorder %s67, %s68
    %p79 = scmp.eq.s32.totalorder %s15, 0
    %p80 = por %p78, %p79
    %p81 = scmp.ne.s32.totalorder %s67, %s68
    %p82 = scmp.eq.s32.totalorder %s16, 1
    %p83 = por %p81, %p82
    %p85 = scmp.ne.s32.totalorder %s68, %s84
    %p86 = scmp.eq.s32.totalorder %s16, 0
    %p87 = por %p85, %p86
    %s89 = sadd.s32 %s88, 1
    %p92 = scmp.eq.s32.totalorder %s10, 1
    %p93 = scmp.ne.s32.totalorder %s88, %s90
    %p94 = scmp.eq.s32.totalorder %s10, 0
    %p95 = por %p93, %p94
    %p96 = scmp.ne.s32.totalorder %s88, %s90
    %p97 = scmp.eq.s32.totalorder %s15, 1
    %p98 = por %p96, %p97
    %p99 = scmp.ne.s32.totalorder %s90, %s91
    %p100 = scmp.eq.s32.totalorder %s15, 0
    %p101 = por %p99, %p100
    %p102 = scmp.ne.s32.totalorder %s90, %s91
    %p103 = scmp.eq.s32.totalorder %s16, 1
    %p104 = por %p102, %p103
    %p106 = scmp.ne.s32.totalorder %s91, %s105
    %p107 = scmp.eq.s32.totalorder %s16, 0
    %p108 = por %p106, %p107
    %s110 = sadd.s32 %s109, 1
    %p113 = scmp.eq.s32.totalorder %s10, 1
    %p114 = scmp.ne.s32.totalorder %s109, %s111
    %p115 = scmp.eq.s32.totalorder %s10, 0
    %p116 = por %p114, %p115
    %p117 = scmp.ne.s32.totalorder %s109, %s111
    %p118 = scmp.eq.s32.totalorder %s15, 1
    %p119 = por %p117, %p118
    %p120 = scmp.ne.s32.totalorder %s111, %s112
    %p121 = scmp.eq.s32.totalorder %s15, 0
    %p122 = por %p120, %p121
    %p123 = scmp.ne.s32.totalorder %s111, %s112
    %p124 = scmp.eq.s32.totalorder %s16, 1
    %p125 = por %p123, %p124
    %p127 = scmp.ne.s32.totalorder %s112, %s126
    %p128 = scmp.eq.s32.totalorder %s16, 0
    %p129 = por %p127, %p128
    %s130 = ssub.s32 %s17, %s29
    %s131 = ssub.s32 %s18, %s25
    %s132 = sor.u32 %s130, %s131
    %p133 = scmp.eq.s32.totalorder %s132, 0
    %s135 = sadd.s32 %s134, 1
    %s136 = scalar_select %p133, %s134, %s135
    %p139 = pneg %p133
    %p140 = scmp.eq.s32.totalorder %s10, 1
    %p141 = por %p139, %p140
    %p142 = scmp.ne.s32.totalorder %s134, %s137
    %p143 = scmp.eq.s32.totalorder %s10, 0
    %p144 = por %p142, %p143
    %p145 = scmp.ne.s32.totalorder %s134, %s137
    %p146 = scmp.eq.s32.totalorder %s15, 1
    %p147 = por %p145, %p146
    %p148 = scmp.ne.s32.totalorder %s137, %s138
    %p149 = scmp.eq.s32.totalorder %s15, 0
    %p150 = por %p148, %p149
    %p151 = scmp.ne.s32.totalorder %s137, %s138
    %p152 = scmp.eq.s32.totalorder %s16, 1
    %p153 = por %p151, %p152
    %p155 = scmp.ne.s32.totalorder %s138, %s154
    %p156 = scmp.eq.s32.totalorder %s16, 0
    %p157 = por %p155, %p156
    %p158 = scmp.le.s32.totalorder 1, %s10
    %p159 = scmp.lt.s32.totalorder %s10, 3
    %p160 = pnand %p158, %p159
    %p161 = pneg %p160
    // Predicated region
    $region9: #{tpu_custom_call.1} parent=5 // pred_check
      _
    $region10: #{tpu_custom_call.1} parent=5 // pred_check_branch
      %163 = sbr.rel (%p160) target = $region12
    $region11: #{tpu_custom_call.1} parent=5 // pred_region
      %s164 = ssub.s32 %s10, 1
      // Predicated region
      $region13: #{tpu_custom_call.1} parent=11 // pred_check
        %p165 = pneg %p101
      $region14: #{tpu_custom_call.1} parent=11 // pred_check_branch
        %167 = sbr.rel (%p165) target = $region16
      $region15: #{tpu_custom_call.1} parent=11 // pred_region
        _
      $region16: #{tpu_custom_call.1} parent=11 // pred_fallthru
        _
      // Predicated region
      $region17: #{tpu_custom_call.1} parent=11 // pred_check
        %p168 = pneg %p122
      $region18: #{tpu_custom_call.1} parent=11 // pred_check_branch
        %170 = sbr.rel (%p168) target = $region20
      $region19: #{tpu_custom_call.1} parent=11 // pred_region
        _
      $region20: #{tpu_custom_call.1} parent=11 // pred_fallthru
        _
    $region12: #{tpu_custom_call.1} parent=5 // pred_fallthru
      _
    %p171 = scmp.lt.s32.totalorder %s10, 2
    // Predicated region
    $region21: #{tpu_custom_call.1} parent=5 // pred_check
      %p172 = pneg %p171
    $region22: #{tpu_custom_call.1} parent=5 // pred_check_branch
      %174 = sbr.rel (%p172) target = $region24
    $region23: #{tpu_custom_call.1} parent=5 // pred_region
      // Predicated region
      $region25: #{tpu_custom_call.1} parent=23 // pred_check
        %p175 = pneg %p44
      $region26: #{tpu_custom_call.1} parent=23 // pred_check_branch
        %177 = sbr.rel (%p175) target = $region28
      $region27: #{tpu_custom_call.1} parent=23 // pred_region
        %s178 = smul.u32 36, %s18
        %p179 = scmp.lt.s32.totalorder %s17, 1
        %s180 = scalar_select %p179, %s17, 1
        %p181 = scmp.lt.s32.totalorder %s178, 71
        %s182 = scalar_select %p181, %s178, 71
        %s183 = smul.addr %s180, 72
        %s184 = sadd.s32 %s182, %s183
        %s185 = smul.addr %s184, 4
        %s186 = scalar_lea.vmem %s0, %s185
        %s187 = smul.u32 36, %s18
      $region28: #{tpu_custom_call.1} parent=23 // pred_fallthru
        _
      // Predicated region
      $region29: #{tpu_custom_call.1} parent=23 // pred_check
        %p188 = pneg %p74
      $region30: #{tpu_custom_call.1} parent=23 // pred_check_branch
        %190 = sbr.rel (%p188) target = $region32
      $region31: #{tpu_custom_call.1} parent=23 // pred_region
        %s191 = sadd.s32 %s18, 1
        %s192 = smul.u32 36, %s191
        %p193 = scmp.lt.s32.totalorder %s17, 1
        %s194 = scalar_select %p193, %s17, 1
        %p195 = scmp.lt.s32.totalorder %s192, 71
        %s196 = scalar_select %p195, %s192, 71
        %s197 = smul.addr %s194, 72
        %s198 = sadd.s32 %s196, %s197
        %s199 = smul.addr %s198, 4
        %s200 = scalar_lea.vmem %s1, %s199
        %s201 = sadd.s32 %s18, 1
        %s202 = smul.u32 36, %s201
      $region32: #{tpu_custom_call.1} parent=23 // pred_fallthru
        _
    $region24: #{tpu_custom_call.1} parent=5 // pred_fallthru
      _
    %p203 = scmp.le.s32.totalorder 1, %s10
    %p204 = scmp.lt.s32.totalorder %s10, 3
    %p205 = pnand %p203, %p204
    %p206 = pneg %p205
    // Predicated region
    $region33: #{tpu_custom_call.1} parent=5 // pred_check
      _
    $region34: #{tpu_custom_call.1} parent=5 // pred_check_branch
      %208 = sbr.rel (%p205) target = $region36
    $region35: #{tpu_custom_call.1} parent=5 // pred_region
      %s209 = ssub.s32 %s10, 1
      %s210 = smul.u32 36, %s20
      %p211 = scmp.lt.s32.totalorder %s19, 1
      %s212 = scalar_select %p211, %s19, 1
      %p213 = scmp.lt.s32.totalorder %s210, 71
      %s214 = scalar_select %p213, %s210, 71
      %s215 = smul.addr %s212, 72
      %s216 = sadd.s32 %s214, %s215
      %s217 = smul.addr %s216, 4
      %s218 = scalar_lea.vmem %s0, %s217
      %p219 = pneg %p50
      %p220 = pneg %p47
      %s221 = sadd.s32 %s20, 1
      %s222 = smul.u32 36, %s221
      %p223 = scmp.lt.s32.totalorder %s19, 1
      %s224 = scalar_select %p223, %s19, 1
      %p225 = scmp.lt.s32.totalorder %s222, 71
      %s226 = scalar_select %p225, %s222, 71
      %s227 = smul.addr %s224, 72
      %s228 = sadd.s32 %s226, %s227
      %s229 = smul.addr %s228, 4
      %s230 = scalar_lea.vmem %s1, %s229
      %p231 = pneg %p80
      %p232 = pneg %p77
      %p233 = pneg %p101
      %p234 = pneg %p98
      %p235 = pneg %p122
      %p236 = pneg %p119
      %p237 = pneg %p150
      %p238 = pneg %p147
      %s239 = smul.u32 36, %s20
      %p240 = scmp.lt.s32.totalorder %s19, 1
      %s241 = scalar_select %p240, %s19, 1
      %p242 = scmp.lt.s32.totalorder %s239, 35
      %s243 = scalar_select %p242, %s239, 35
      %s244 = smul.addr %s241, 36
      %s245 = sadd.s32 %s243, %s244
      %s246 = smul.addr %s245, 4
      %s247 = scalar_lea.vmem %s4, %s246
      %s248 = smul.u32 36, %s20
      %p249 = scmp.lt.s32.totalorder %s19, 1
      %s250 = scalar_select %p249, %s19, 1
      %p251 = scmp.lt.s32.totalorder %s248, 71
      %s252 = scalar_select %p251, %s248, 71
      %s253 = smul.addr %s250, 72
      %s254 = sadd.s32 %s252, %s253
      %s255 = smul.addr %s254, 4
      %s256 = scalar_lea.vmem %s0, %s255
      %s257 = smul.u32 36, %s20
      %s258 = sadd.s32 %s20, 1
      %s259 = smul.u32 36, %s258
      %p260 = scmp.lt.s32.totalorder %s19, 1
      %s261 = scalar_select %p260, %s19, 1
      %p262 = scmp.lt.s32.totalorder %s259, 71
      %s263 = scalar_select %p262, %s259, 71
      %s264 = smul.addr %s261, 72
      %s265 = sadd.s32 %s263, %s264
      %s266 = smul.addr %s265, 4
      %s267 = scalar_lea.vmem %s1, %s266
      %s268 = sadd.s32 %s20, 1
      %s269 = smul.u32 36, %s268
      %s270 = smul.u32 36, %s20
      %p271 = scmp.lt.s32.totalorder %s19, 1
      %s272 = scalar_select %p271, %s19, 1
      %p273 = scmp.lt.s32.totalorder %s270, 35
      %s274 = scalar_select %p273, %s270, 35
      %s275 = smul.addr %s272, 36
      %s276 = sadd.s32 %s274, %s275
      %s277 = smul.addr %s276, 4
      %s278 = scalar_lea.vmem %s4, %s277
      %s279 = smul.u32 36, %s20
      %v281 = vld [vmem:[%s256] sm:$0xf]
      %v282 = vld [vmem:[%s256 + $0x4] sm:$0xf]
      %v283 = vld [vmem:[%s256 + $0x8] sm:$0xf]
      %v284 = vld [vmem:[%s256 + $0xc] sm:$0xf]
      %v285 = vld [vmem:[%s256 + $0x10] sm:$0xf]
      %v286 = vld [vmem:[%s256 + $0x14] sm:$0xf]
      %v287 = vld [vmem:[%s256 + $0x18] sm:$0xf]
      %v288 = vld [vmem:[%s256 + $0x1c] sm:$0xf]
      %v289 = vld [vmem:[%s256 + $0x20] sm:$0xf]
      %v290 = vld [vmem:[%s256 + $0x24] sm:$0xf]
      %v291 = vld [vmem:[%s256 + $0x28] sm:$0xf]
      %v292 = vld [vmem:[%s256 + $0x2c] sm:$0xf]
      %v293 = vld [vmem:[%s256 + $0x30] sm:$0xf]
      %v294 = vld [vmem:[%s256 + $0x34] sm:$0xf]
      %v295 = vld [vmem:[%s256 + $0x38] sm:$0xf]
      %v296 = vld [vmem:[%s256 + $0x3c] sm:$0xf]
      %v297 = vld [vmem:[%s256 + $0x40] sm:$0xf]
      %v298 = vld [vmem:[%s256 + $0x44] sm:$0xf]
      %v299 = vld [vmem:[%s256 + $0x48] sm:$0xf]
      %v300 = vld [vmem:[%s256 + $0x4c] sm:$0xf]
      %v301 = vld [vmem:[%s256 + $0x50] sm:$0xf]
      %v302 = vld [vmem:[%s256 + $0x54] sm:$0xf]
      %v303 = vld [vmem:[%s256 + $0x58] sm:$0xf]
      %v304 = vld [vmem:[%s256 + $0x5c] sm:$0xf]
      %v305 = vld [vmem:[%s256 + $0x60] sm:$0xf]
      %v306 = vld [vmem:[%s256 + $0x64] sm:$0xf]
      %v307 = vld [vmem:[%s256 + $0x68] sm:$0xf]
      %v308 = vld [vmem:[%s256 + $0x6c] sm:$0xf]
      %v309 = vld [vmem:[%s256 + $0x70] sm:$0xf]
      %v310 = vld [vmem:[%s256 + $0x74] sm:$0xf]
      %v311 = vld [vmem:[%s256 + $0x78] sm:$0xf]
      %v312 = vld [vmem:[%s256 + $0x7c] sm:$0xf]
      %v313 = vld [vmem:[%s256 + $0x80] sm:$0xf]
      %v314 = vld [vmem:[%s256 + $0x84] sm:$0xf]
      %v315 = vld [vmem:[%s256 + $0x88] sm:$0xf]
      %v316 = vld [vmem:[%s256 + $0x8c] sm:$0xf]
      %v317 = vld [vmem:[%s267] sm:$0xf]
      %v318 = vld [vmem:[%s267 + $0x4] sm:$0xf]
      %v319 = vld [vmem:[%s267 + $0x8] sm:$0xf]
      %v320 = vld [vmem:[%s267 + $0xc] sm:$0xf]
      %v321 = vld [vmem:[%s267 + $0x10] sm:$0xf]
      %v322 = vld [vmem:[%s267 + $0x14] sm:$0xf]
      %v359 = vunpack.c.l.b16 %v281
      %v360 = vunpack.c.l.b16 %v282
      %v361 = vunpack.c.l.b16 %v283
      %v362 = vunpack.c.l.b16 %v284
      %v363 = vunpack.c.l.b16 %v285
      %v364 = vunpack.c.l.b16 %v286
      %v365 = vunpack.c.l.b16 %v287
      %v366 = vunpack.c.l.b16 %v288
      %v367 = vunpack.c.l.b16 %v289
      %v368 = vunpack.c.l.b16 %v290
      %v369 = vunpack.c.l.b16 %v291
      %v370 = vunpack.c.l.b16 %v292
      %v371 = vunpack.c.l.b16 %v293
      %v372 = vunpack.c.l.b16 %v294
      %v373 = vunpack.c.l.b16 %v295
      %v374 = vunpack.c.l.b16 %v296
      %v375 = vunpack.c.l.b16 %v297
      %v376 = vunpack.c.l.b16 %v298
      %v377 = vunpack.c.l.b16 %v299
      %v378 = vunpack.c.l.b16 %v300
      %v379 = vunpack.c.l.b16 %v301
      %v380 = vunpack.c.l.b16 %v302
      %v381 = vunpack.c.l.b16 %v303
      %v382 = vunpack.c.l.b16 %v304
      %v383 = vunpack.c.l.b16 %v305
      %v384 = vunpack.c.l.b16 %v306
      %v385 = vunpack.c.l.b16 %v307
      %v386 = vunpack.c.l.b16 %v308
      %v387 = vunpack.c.l.b16 %v309
      %v388 = vunpack.c.l.b16 %v310
      %v389 = vunpack.c.l.b16 %v311
      %v390 = vunpack.c.l.b16 %v312
      %v391 = vunpack.c.l.b16 %v313
      %v392 = vunpack.c.l.b16 %v314
      %v393 = vunpack.c.l.b16 %v315
      %v394 = vunpack.c.l.b16 %v316
      %v395 = vpack.c.b16 %v360, %v359
      %v396 = vpack.c.b16 %v362, %v361
      %v397 = vpack.c.b16 %v364, %v363
      %v398 = vpack.c.b16 %v366, %v365
      %v399 = vpack.c.b16 %v368, %v367
      %v400 = vpack.c.b16 %v370, %v369
      %v401 = vpack.c.b16 %v372, %v371
      %v402 = vpack.c.b16 %v374, %v373
      %v403 = vpack.c.b16 %v376, %v375
      %v404 = vpack.c.b16 %v378, %v377
      %v405 = vpack.c.b16 %v380, %v379
      %v406 = vpack.c.b16 %v382, %v381
      %v407 = vpack.c.b16 %v384, %v383
      %v408 = vpack.c.b16 %v386, %v385
      %v409 = vpack.c.b16 %v388, %v387
      %v410 = vpack.c.b16 %v390, %v389
      %v411 = vpack.c.b16 %v392, %v391
      %v412 = vpack.c.b16 %v394, %v393
      %v419 = vunpack.c.l.b16 %v317
      %v420 = vunpack.c.l.b16 %v318
      %v421 = vunpack.c.l.b16 %v319
      %v422 = vunpack.c.l.b16 %v320
      %v423 = vunpack.c.l.b16 %v321
      %v424 = vunpack.c.l.b16 %v322
      %v425 = vpack.c.b16 %v420, %v419
      %v426 = vpack.c.b16 %v422, %v421
      %v427 = vpack.c.b16 %v424, %v423
      %v428 = vld [vmem:[%s2] sm:$0x3]
      %s429 = scalar_lea.vmem %s2, 2
      %v430 = vld [vmem:[%s429] sm:$0x3]
      %vm431 = vsmask.f32 7424
      %v433 = vshrl.u32 %v395, 16
      %v435 = vshll.u32 %v395, 16
      %v437 = vrot.slane %v435, 1
      %v438 = vor.u32 %v433, %v437
      %v440 = vshll.u32 %v396, 16
      %v442 = vrot.slane %v440, 1
      %v443 = vsel %vm431, %v438, %v442
      %v444 = vshrl.u32 %v396, 16
      %v446 = vor.u32 %v444, %v442
      %v448 = vshll.u32 %v397, 16
      %v450 = vrot.slane %v448, 1
      %v451 = vsel %vm431, %v446, %v450
      %v452 = vshrl.u32 %v397, 16
      %v454 = vor.u32 %v452, %v450
      %v456 = vshll.u32 %v398, 16
      %v458 = vrot.slane %v456, 1
      %v459 = vsel %vm431, %v454, %v458
      %v460 = vshrl.u32 %v398, 16
      %v462 = vor.u32 %v460, %v458
      %v464 = vshll.u32 %v399, 16
      %v466 = vrot.slane %v464, 1
      %v467 = vsel %vm431, %v462, %v466
      %v468 = vshrl.u32 %v399, 16
      %v470 = vor.u32 %v468, %v466
      %v472 = vshll.u32 %v400, 16
      %v474 = vrot.slane %v472, 1
      %v475 = vsel %vm431, %v470, %v474
      %v476 = vshrl.u32 %v400, 16
      %v478 = vor.u32 %v476, %v474
      %v480 = vshll.u32 %v401, 16
      %v482 = vrot.slane %v480, 1
      %v483 = vsel %vm431, %v478, %v482
      %v484 = vshrl.u32 %v401, 16
      %v486 = vor.u32 %v484, %v482
      %v488 = vshll.u32 %v402, 16
      %v490 = vrot.slane %v488, 1
      %v491 = vsel %vm431, %v486, %v490
      %v492 = vshrl.u32 %v402, 16
      %v494 = vor.u32 %v492, %v490
      %v496 = vshll.u32 %v403, 16
      %v498 = vrot.slane %v496, 1
      %v499 = vsel %vm431, %v494, %v498
      %v500 = vshrl.u32 %v403, 16
      %v502 = vor.u32 %v500, %v498
      %v504 = vshll.u32 %v404, 16
      %v506 = vrot.slane %v504, 1
      %v507 = vsel %vm431, %v502, %v506
      %v508 = vshrl.u32 %v404, 16
      %v510 = vor.u32 %v508, %v506
      %v512 = vshll.u32 %v405, 16
      %v514 = vrot.slane %v512, 1
      %v515 = vsel %vm431, %v510, %v514
      %v516 = vshrl.u32 %v405, 16
      %v518 = vor.u32 %v516, %v514
      %v520 = vshll.u32 %v406, 16
      %v522 = vrot.slane %v520, 1
      %v523 = vsel %vm431, %v518, %v522
      %v524 = vshrl.u32 %v406, 16
      %v526 = vor.u32 %v524, %v522
      %v528 = vshll.u32 %v407, 16
      %v530 = vrot.slane %v528, 1
      %v531 = vsel %vm431, %v526, %v530
      %v532 = vshrl.u32 %v407, 16
      %v534 = vor.u32 %v532, %v530
      %v536 = vshll.u32 %v408, 16
      %v538 = vrot.slane %v536, 1
      %v539 = vsel %vm431, %v534, %v538
      %v540 = vshrl.u32 %v408, 16
      %v542 = vor.u32 %v540, %v538
      %v544 = vshll.u32 %v409, 16
      %v546 = vrot.slane %v544, 1
      %v547 = vsel %vm431, %v542, %v546
      %v548 = vshrl.u32 %v409, 16
      %v550 = vor.u32 %v548, %v546
      %v552 = vshll.u32 %v410, 16
      %v554 = vrot.slane %v552, 1
      %v555 = vsel %vm431, %v550, %v554
      %v556 = vshrl.u32 %v410, 16
      %v558 = vor.u32 %v556, %v554
      %v560 = vshll.u32 %v411, 16
      %v562 = vrot.slane %v560, 1
      %v563 = vsel %vm431, %v558, %v562
      %v564 = vshrl.u32 %v411, 16
      %v566 = vor.u32 %v564, %v562
      %v568 = vshll.u32 %v412, 16
      %v570 = vrot.slane %v568, 1
      %v571 = vsel %vm431, %v566, %v570
      %v572 = vshrl.u32 %v412, 16
      %v574 = vor.u32 %v572, %v570
      %v576 = vshll.u32 %v425, 16
      %v578 = vrot.slane %v576, 1
      %v579 = vsel %vm431, %v574, %v578
      %vm580 = vcmask 23552
      %v582 = vsel %vm580, %v443, 0
      %v585 = vsel %vm580, %v451, 0
      %v588 = vsel %vm580, %v459, 0
      %v591 = vsel %vm580, %v467, 0
      %v594 = vsel %vm580, %v475, 0
      %v597 = vsel %vm580, %v483, 0
      %v600 = vsel %vm580, %v491, 0
      %v603 = vsel %vm580, %v499, 0
      %v606 = vsel %vm580, %v507, 0
      %v609 = vsel %vm580, %v515, 0
      %v612 = vsel %vm580, %v523, 0
      %v615 = vsel %vm580, %v531, 0
      %v618 = vsel %vm580, %v539, 0
      %v621 = vsel %vm580, %v547, 0
      %v624 = vsel %vm580, %v555, 0
      %v627 = vsel %vm580, %v563, 0
      %v630 = vsel %vm580, %v571, 0
      %v633 = vsel %vm580, %v579, 0
      %vm635 = vcmask 1040384
      %vm636 = vcmask 1041408
      %v637 = vsel %vm635, 4294967295, 65535
      %v638 = vsel %vm636, %v637, 0
      %v640 = vand.u32 %v430, %v638
      %642 = vmatprep.subr.bf16.mxu0 0
      %643 = vmatpush1.bf16.msra.mxu0 0
      %644 = vmatprep.subr.bf16.mxu0 0
      %645 = vmatpush1.bf16.msra.mxu0 0
      %646 = vmatprep.subr.bf16.mxu0 0
      %647 = vmatpush1.bf16.msra.mxu0 0
      %648 = vmatprep.subr.bf16.mxu0 0
      %649 = vmatpush1.bf16.msra.mxu0 0
      %650 = vmatprep.subr.bf16.mxu0 0
      %651 = vmatpush1.bf16.msra.mxu0 0
      %652 = vmatprep.subr.bf16.mxu0 0
      %653 = vmatpush1.bf16.msra.mxu0 0
      %654 = vmatprep.subr.bf16.mxu0 0
      %655 = vmatpush1.bf16.msra.mxu0 0
      %656 = vmatprep.subr.bf16.mxu0 0
      %657 = vmatpush1.bf16.msra.mxu0 %v640
      %658 = vmatprep.subr.bf16.mxu0 0
      %659 = vmatpush2.bf16.msra.mxu0 0
      %660 = vmatprep.subr.bf16.mxu0 0
      %661 = vmatpush2.bf16.msra.mxu0 0
      %662 = vmatprep.subr.bf16.mxu0 0
      %663 = vmatpush2.bf16.msra.mxu0 0
      %664 = vmatprep.subr.bf16.mxu0 0
      %665 = vmatpush2.bf16.msra.mxu0 0
      %666 = vmatprep.subr.bf16.mxu0 0
      %667 = vmatpush2.bf16.msra.mxu0 0
      %668 = vmatprep.subr.bf16.mxu0 0
      %669 = vmatpush2.bf16.msra.mxu0 0
      %670 = vmatprep.subr.bf16.mxu0 0
      %671 = vmatpush2.bf16.msra.mxu0 0
      %672 = vmatprep.subr.bf16.mxu0 0
      %673 = vmatpush2.bf16.msra.mxu0 0
      %674 = vmatprep.mubr.bf16.mxu0 0
      %675 = vmatmul.mubr.bf16.gmra.mxu0 %v582
      %v676 = vpop.f32.mrf.mxu0
      %v677 = vadd.f32 0.0, %v676
      %v678 = vpop.f32.mrf.mxu0
      %v679 = vpop.f32.mrf.mxu0
      %v680 = vadd.f32 0.0, %v679
      %v681 = vpop.f32.mrf.mxu0
      %682 = vmatprep.mubr.bf16.mxu0 0
      %683 = vmatmul.mubr.bf16.gmra.mxu0 %v585
      %v684 = vpop.f32.mrf.mxu0
      %v685 = vadd.f32 0.0, %v684
      %v686 = vpop.f32.mrf.mxu0
      %v687 = vpop.f32.mrf.mxu0
      %v688 = vadd.f32 0.0, %v687
      %v689 = vpop.f32.mrf.mxu0
      %690 = vmatprep.mubr.bf16.mxu0 0
      %691 = vmatmul.mubr.bf16.gmra.mxu0 %v588
      %v692 = vpop.f32.mrf.mxu0
      %v693 = vadd.f32 0.0, %v692
      %v694 = vpop.f32.mrf.mxu0
      %v695 = vpop.f32.mrf.mxu0
      %v696 = vadd.f32 0.0, %v695
      %v697 = vpop.f32.mrf.mxu0
      %698 = vmatprep.mubr.bf16.mxu0 0
      %699 = vmatmul.mubr.bf16.gmra.mxu0 %v591
      %v700 = vpop.f32.mrf.mxu0
      %v701 = vadd.f32 0.0, %v700
      %v702 = vpop.f32.mrf.mxu0
      %v703 = vpop.f32.mrf.mxu0
      %v704 = vadd.f32 0.0, %v703
      %v705 = vpop.f32.mrf.mxu0
      %706 = vmatprep.mubr.bf16.mxu0 0
      %707 = vmatmul.mubr.bf16.gmra.mxu0 %v594
      %v708 = vpop.f32.mrf.mxu0
      %v709 = vadd.f32 0.0, %v708
      %v710 = vpop.f32.mrf.mxu0
      %v711 = vpop.f32.mrf.mxu0
      %v712 = vadd.f32 0.0, %v711
      %v713 = vpop.f32.mrf.mxu0
      %714 = vmatprep.mubr.bf16.mxu0 0
      %715 = vmatmul.mubr.bf16.gmra.mxu0 %v597
      %v716 = vpop.f32.mrf.mxu0
      %v717 = vadd.f32 0.0, %v716
      %v718 = vpop.f32.mrf.mxu0
      %v719 = vpop.f32.mrf.mxu0
      %v720 = vadd.f32 0.0, %v719
      %v721 = vpop.f32.mrf.mxu0
      %722 = vmatprep.mubr.bf16.mxu0 0
      %723 = vmatmul.mubr.bf16.gmra.mxu0 %v600
      %v724 = vpop.f32.mrf.mxu0
      %v725 = vadd.f32 0.0, %v724
      %v726 = vpop.f32.mrf.mxu0
      %v727 = vpop.f32.mrf.mxu0
      %v728 = vadd.f32 0.0, %v727
      %v729 = vpop.f32.mrf.mxu0
      %730 = vmatprep.mubr.bf16.mxu0 0
      %731 = vmatmul.mubr.bf16.gmra.mxu0 %v603
      %v732 = vpop.f32.mrf.mxu0
      %v733 = vadd.f32 0.0, %v732
      %v734 = vpop.f32.mrf.mxu0
      %v735 = vpop.f32.mrf.mxu0
      %v736 = vadd.f32 0.0, %v735
      %v737 = vpop.f32.mrf.mxu0
      %738 = vmatprep.mubr.bf16.mxu0 0
      %739 = vmatmul.mubr.bf16.gmra.mxu0 %v606
      %v740 = vpop.f32.mrf.mxu0
      %v741 = vadd.f32 0.0, %v740
      %v742 = vpop.f32.mrf.mxu0
      %v743 = vpop.f32.mrf.mxu0
      %v744 = vadd.f32 0.0, %v743
      %v745 = vpop.f32.mrf.mxu0
      %746 = vmatprep.mubr.bf16.mxu0 0
      %747 = vmatmul.mubr.bf16.gmra.mxu0 %v609
      %v748 = vpop.f32.mrf.mxu0
      %v749 = vadd.f32 0.0, %v748
      %v750 = vpop.f32.mrf.mxu0
      %v751 = vpop.f32.mrf.mxu0
      %v752 = vadd.f32 0.0, %v751
      %v753 = vpop.f32.mrf.mxu0
      %754 = vmatprep.mubr.bf16.mxu0 0
      %755 = vmatmul.mubr.bf16.gmra.mxu0 %v612
      %v756 = vpop.f32.mrf.mxu0
      %v757 = vadd.f32 0.0, %v756
      %v758 = vpop.f32.mrf.mxu0
      %v759 = vpop.f32.mrf.mxu0
      %v760 = vadd.f32 0.0, %v759
      %v761 = vpop.f32.mrf.mxu0
      %762 = vmatprep.mubr.bf16.mxu0 0
      %763 = vmatmul.mubr.bf16.gmra.mxu0 %v615
      %v764 = vpop.f32.mrf.mxu0
      %v765 = vadd.f32 0.0, %v764
      %v766 = vpop.f32.mrf.mxu0
      %v767 = vpop.f32.mrf.mxu0
      %v768 = vadd.f32 0.0, %v767
      %v769 = vpop.f32.mrf.mxu0
      %770 = vmatprep.mubr.bf16.mxu0 0
      %771 = vmatmul.mubr.bf16.gmra.mxu0 %v618
      %v772 = vpop.f32.mrf.mxu0
      %v773 = vadd.f32 0.0, %v772
      %v774 = vpop.f32.mrf.mxu0
      %v775 = vpop.f32.mrf.mxu0
      %v776 = vadd.f32 0.0, %v775
      %v777 = vpop.f32.mrf.mxu0
      %778 = vmatprep.mubr.bf16.mxu0 0
      %779 = vmatmul.mubr.bf16.gmra.mxu0 %v621
      %v780 = vpop.f32.mrf.mxu0
      %v781 = vadd.f32 0.0, %v780
      %v782 = vpop.f32.mrf.mxu0
      %v783 = vpop.f32.mrf.mxu0
      %v784 = vadd.f32 0.0, %v783
      %v785 = vpop.f32.mrf.mxu0
      %786 = vmatprep.mubr.bf16.mxu0 0
      %787 = vmatmul.mubr.bf16.gmra.mxu0 %v624
      %v788 = vpop.f32.mrf.mxu0
      %v789 = vadd.f32 0.0, %v788
      %v790 = vpop.f32.mrf.mxu0
      %v791 = vpop.f32.mrf.mxu0
      %v792 = vadd.f32 0.0, %v791
      %v793 = vpop.f32.mrf.mxu0
      %794 = vmatprep.mubr.bf16.mxu0 0
      %795 = vmatmul.mubr.bf16.gmra.mxu0 %v627
      %v796 = vpop.f32.mrf.mxu0
      %v797 = vadd.f32 0.0, %v796
      %v798 = vpop.f32.mrf.mxu0
      %v799 = vpop.f32.mrf.mxu0
      %v800 = vadd.f32 0.0, %v799
      %v801 = vpop.f32.mrf.mxu0
      %802 = vmatprep.mubr.bf16.mxu0 0
      %803 = vmatmul.mubr.bf16.gmra.mxu0 %v630
      %v804 = vpop.f32.mrf.mxu0
      %v805 = vadd.f32 0.0, %v804
      %v806 = vpop.f32.mrf.mxu0
      %v807 = vpop.f32.mrf.mxu0
      %v808 = vadd.f32 0.0, %v807
      %v809 = vpop.f32.mrf.mxu0
      %810 = vmatprep.mubr.bf16.mxu0 0
      %811 = vmatmul.mubr.bf16.gmra.mxu0 %v633
      %v812 = vpop.f32.mrf.mxu0
      %v813 = vadd.f32 0.0, %v812
      %v814 = vpop.f32.mrf.mxu0
      %v815 = vpop.f32.mrf.mxu0
      %v816 = vadd.f32 0.0, %v815
      %v817 = vpop.f32.mrf.mxu0
      %818 = vdwg.mxu0
      %v819 = vsel %vm580, %v395, 0
      %v821 = vsel %vm580, %v396, 0
      %v823 = vsel %vm580, %v397, 0
      %v825 = vsel %vm580, %v398, 0
      %v827 = vsel %vm580, %v399, 0
      %v829 = vsel %vm580, %v400, 0
      %v831 = vsel %vm580, %v401, 0
      %v833 = vsel %vm580, %v402, 0
      %v835 = vsel %vm580, %v403, 0
      %v837 = vsel %vm580, %v404, 0
      %v839 = vsel %vm580, %v405, 0
      %v841 = vsel %vm580, %v406, 0
      %v843 = vsel %vm580, %v407, 0
      %v845 = vsel %vm580, %v408, 0
      %v847 = vsel %vm580, %v409, 0
      %v849 = vsel %vm580, %v410, 0
      %v851 = vsel %vm580, %v411, 0
      %v853 = vsel %vm580, %v412, 0
      %v856 = vand.u32 %v428, %v638
      %858 = vmatprep.subr.bf16.mxu0 0
      %859 = vmatpush1.bf16.msra.mxu0 0
      %860 = vmatprep.subr.bf16.mxu0 0
      %861 = vmatpush1.bf16.msra.mxu0 0
      %862 = vmatprep.subr.bf16.mxu0 0
      %863 = vmatpush1.bf16.msra.mxu0 0
      %864 = vmatprep.subr.bf16.mxu0 0
      %865 = vmatpush1.bf16.msra.mxu0 0
      %866 = vmatprep.subr.bf16.mxu0 0
      %867 = vmatpush1.bf16.msra.mxu0 0
      %868 = vmatprep.subr.bf16.mxu0 0
      %869 = vmatpush1.bf16.msra.mxu0 0
      %870 = vmatprep.subr.bf16.mxu0 0
      %871 = vmatpush1.bf16.msra.mxu0 0
      %872 = vmatprep.subr.bf16.mxu0 0
      %873 = vmatpush1.bf16.msra.mxu0 %v856
      %874 = vmatprep.subr.bf16.mxu0 0
      %875 = vmatpush2.bf16.msra.mxu0 0
      %876 = vmatprep.subr.bf16.mxu0 0
      %877 = vmatpush2.bf16.msra.mxu0 0
      %878 = vmatprep.subr.bf16.mxu0 0
      %879 = vmatpush2.bf16.msra.mxu0 0
      %880 = vmatprep.subr.bf16.mxu0 0
      %881 = vmatpush2.bf16.msra.mxu0 0
      %882 = vmatprep.subr.bf16.mxu0 0
      %883 = vmatpush2.bf16.msra.mxu0 0
      %884 = vmatprep.subr.bf16.mxu0 0
      %885 = vmatpush2.bf16.msra.mxu0 0
      %886 = vmatprep.subr.bf16.mxu0 0
      %887 = vmatpush2.bf16.msra.mxu0 0
      %888 = vmatprep.subr.bf16.mxu0 0
      %889 = vmatpush2.bf16.msra.mxu0 0
      %890 = vmatprep.mubr.bf16.mxu0 0
      %891 = vmatmul.mubr.bf16.gmra.mxu0 %v819
      %v892 = vpop.f32.mrf.mxu0
      %v893 = vadd.f32 %v677, %v892
      %v894 = vpop.f32.mrf.mxu0
      %v895 = vpop.f32.mrf.mxu0
      %v896 = vadd.f32 %v680, %v895
      %v897 = vpop.f32.mrf.mxu0
      %898 = vmatprep.mubr.bf16.mxu0 0
      %899 = vmatmul.mubr.bf16.gmra.mxu0 %v821
      %v900 = vpop.f32.mrf.mxu0
      %v901 = vadd.f32 %v685, %v900
      %v902 = vpop.f32.mrf.mxu0
      %v903 = vpop.f32.mrf.mxu0
      %v904 = vadd.f32 %v688, %v903
      %v905 = vpop.f32.mrf.mxu0
      %906 = vmatprep.mubr.bf16.mxu0 0
      %907 = vmatmul.mubr.bf16.gmra.mxu0 %v823
      %v908 = vpop.f32.mrf.mxu0
      %v909 = vadd.f32 %v693, %v908
      %v910 = vpop.f32.mrf.mxu0
      %v911 = vpop.f32.mrf.mxu0
      %v912 = vadd.f32 %v696, %v911
      %v913 = vpop.f32.mrf.mxu0
      %914 = vmatprep.mubr.bf16.mxu0 0
      %915 = vmatmul.mubr.bf16.gmra.mxu0 %v825
      %v916 = vpop.f32.mrf.mxu0
      %v917 = vadd.f32 %v701, %v916
      %v918 = vpop.f32.mrf.mxu0
      %v919 = vpop.f32.mrf.mxu0
      %v920 = vadd.f32 %v704, %v919
      %v921 = vpop.f32.mrf.mxu0
      %922 = vmatprep.mubr.bf16.mxu0 0
      %923 = vmatmul.mubr.bf16.gmra.mxu0 %v827
      %v924 = vpop.f32.mrf.mxu0
      %v925 = vadd.f32 %v709, %v924
      %v926 = vpop.f32.mrf.mxu0
      %v927 = vpop.f32.mrf.mxu0
      %v928 = vadd.f32 %v712, %v927
      %v929 = vpop.f32.mrf.mxu0
      %930 = vmatprep.mubr.bf16.mxu0 0
      %931 = vmatmul.mubr.bf16.gmra.mxu0 %v829
      %v932 = vpop.f32.mrf.mxu0
      %v933 = vadd.f32 %v717, %v932
      %v934 = vpop.f32.mrf.mxu0
      %v935 = vpop.f32.mrf.mxu0
      %v936 = vadd.f32 %v720, %v935
      %v937 = vpop.f32.mrf.mxu0
      %938 = vmatprep.mubr.bf16.mxu0 0
      %939 = vmatmul.mubr.bf16.gmra.mxu0 %v831
      %v940 = vpop.f32.mrf.mxu0
      %v941 = vadd.f32 %v725, %v940
      %v942 = vpop.f32.mrf.mxu0
      %v943 = vpop.f32.mrf.mxu0
      %v944 = vadd.f32 %v728, %v943
      %v945 = vpop.f32.mrf.mxu0
      %946 = vmatprep.mubr.bf16.mxu0 0
      %947 = vmatmul.mubr.bf16.gmra.mxu0 %v833
      %v948 = vpop.f32.mrf.mxu0
      %v949 = vadd.f32 %v733, %v948
      %v950 = vpop.f32.mrf.mxu0
      %v951 = vpop.f32.mrf.mxu0
      %v952 = vadd.f32 %v736, %v951
      %v953 = vpop.f32.mrf.mxu0
      %954 = vmatprep.mubr.bf16.mxu0 0
      %955 = vmatmul.mubr.bf16.gmra.mxu0 %v835
      %v956 = vpop.f32.mrf.mxu0
      %v957 = vadd.f32 %v741, %v956
      %v958 = vpop.f32.mrf.mxu0
      %v959 = vpop.f32.mrf.mxu0
      %v960 = vadd.f32 %v744, %v959
      %v961 = vpop.f32.mrf.mxu0
      %962 = vmatprep.mubr.bf16.mxu0 0
      %963 = vmatmul.mubr.bf16.gmra.mxu0 %v837
      %v964 = vpop.f32.mrf.mxu0
      %v965 = vadd.f32 %v749, %v964
      %v966 = vpop.f32.mrf.mxu0
      %v967 = vpop.f32.mrf.mxu0
      %v968 = vadd.f32 %v752, %v967
      %v969 = vpop.f32.mrf.mxu0
      %970 = vmatprep.mubr.bf16.mxu0 0
      %971 = vmatmul.mubr.bf16.gmra.mxu0 %v839
      %v972 = vpop.f32.mrf.mxu0
      %v973 = vadd.f32 %v757, %v972
      %v974 = vpop.f32.mrf.mxu0
      %v975 = vpop.f32.mrf.mxu0
      %v976 = vadd.f32 %v760, %v975
      %v977 = vpop.f32.mrf.mxu0
      %978 = vmatprep.mubr.bf16.mxu0 0
      %979 = vmatmul.mubr.bf16.gmra.mxu0 %v841
      %v980 = vpop.f32.mrf.mxu0
      %v981 = vadd.f32 %v765, %v980
      %v982 = vpop.f32.mrf.mxu0
      %v983 = vpop.f32.mrf.mxu0
      %v984 = vadd.f32 %v768, %v983
      %v985 = vpop.f32.mrf.mxu0
      %986 = vmatprep.mubr.bf16.mxu0 0
      %987 = vmatmul.mubr.bf16.gmra.mxu0 %v843
      %v988 = vpop.f32.mrf.mxu0
      %v989 = vadd.f32 %v773, %v988
      %v990 = vpop.f32.mrf.mxu0
      %v991 = vpop.f32.mrf.mxu0
      %v992 = vadd.f32 %v776, %v991
      %v993 = vpop.f32.mrf.mxu0
      %994 = vmatprep.mubr.bf16.mxu0 0
      %995 = vmatmul.mubr.bf16.gmra.mxu0 %v845
      %v996 = vpop.f32.mrf.mxu0
      %v997 = vadd.f32 %v781, %v996
      %v998 = vpop.f32.mrf.mxu0
      %v999 = vpop.f32.mrf.mxu0
      %v1000 = vadd.f32 %v784, %v999
      %v1001 = vpop.f32.mrf.mxu0
      %1002 = vmatprep.mubr.bf16.mxu0 0
      %1003 = vmatmul.mubr.bf16.gmra.mxu0 %v847
      %v1004 = vpop.f32.mrf.mxu0
      %v1005 = vadd.f32 %v789, %v1004
      %v1006 = vpop.f32.mrf.mxu0
      %v1007 = vpop.f32.mrf.mxu0
      %v1008 = vadd.f32 %v792, %v1007
      %v1009 = vpop.f32.mrf.mxu0
      %1010 = vmatprep.mubr.bf16.mxu0 0
      %1011 = vmatmul.mubr.bf16.gmra.mxu0 %v849
      %v1012 = vpop.f32.mrf.mxu0
      %v1013 = vadd.f32 %v797, %v1012
      %v1014 = vpop.f32.mrf.mxu0
      %v1015 = vpop.f32.mrf.mxu0
      %v1016 = vadd.f32 %v800, %v1015
      %v1017 = vpop.f32.mrf.mxu0
      %1018 = vmatprep.mubr.bf16.mxu0 0
      %1019 = vmatmul.mubr.bf16.gmra.mxu0 %v851
      %v1020 = vpop.f32.mrf.mxu0
      %v1021 = vadd.f32 %v805, %v1020
      %v1022 = vpop.f32.mrf.mxu0
      %v1023 = vpop.f32.mrf.mxu0
      %v1024 = vadd.f32 %v808, %v1023
      %v1025 = vpop.f32.mrf.mxu0
      %1026 = vmatprep.mubr.bf16.mxu0 0
      %1027 = vmatmul.mubr.bf16.gmra.mxu0 %v853
      %v1028 = vpop.f32.mrf.mxu0
      %v1029 = vadd.f32 %v813, %v1028
      %v1030 = vpop.f32.mrf.mxu0
      %v1031 = vpop.f32.mrf.mxu0
      %v1032 = vadd.f32 %v816, %v1031
      %v1033 = vpop.f32.mrf.mxu0
      %1034 = vdwg.mxu0
      %s1035 = scalar_lea.vmem %s2, 4
      %v1036 = vld [vmem:[%s1035] sm:$0x3]
      %vm1037 = vcmask 1046528
      %v1038 = vrot.slane %v395, 1
      %v1039 = vrot.slane %v396, 1
      %v1040 = vsel %vm1037, %v1038, %v1039
      %v1041 = vrot.slane %v397, 1
      %v1042 = vsel %vm1037, %v1039, %v1041
      %v1043 = vrot.slane %v398, 1
      %v1044 = vsel %vm1037, %v1041, %v1043
      %v1045 = vrot.slane %v399, 1
      %v1046 = vsel %vm1037, %v1043, %v1045
      %v1047 = vrot.slane %v400, 1
      %v1048 = vsel %vm1037, %v1045, %v1047
      %v1049 = vrot.slane %v401, 1
      %v1050 = vsel %vm1037, %v1047, %v1049
      %v1051 = vrot.slane %v402, 1
      %v1052 = vsel %vm1037, %v1049, %v1051
      %v1053 = vrot.slane %v403, 1
      %v1054 = vsel %vm1037, %v1051, %v1053
      %v1055 = vrot.slane %v404, 1
      %v1056 = vsel %vm1037, %v1053, %v1055
      %v1057 = vrot.slane %v405, 1
      %v1058 = vsel %vm1037, %v1055, %v1057
      %v1059 = vrot.slane %v406, 1
      %v1060 = vsel %vm1037, %v1057, %v1059
      %v1061 = vrot.slane %v407, 1
      %v1062 = vsel %vm1037, %v1059, %v1061
      %v1063 = vrot.slane %v408, 1
      %v1064 = vsel %vm1037, %v1061, %v1063
      %v1065 = vrot.slane %v409, 1
      %v1066 = vsel %vm1037, %v1063, %v1065
      %v1067 = vrot.slane %v410, 1
      %v1068 = vsel %vm1037, %v1065, %v1067
      %v1069 = vrot.slane %v411, 1
      %v1070 = vsel %vm1037, %v1067, %v1069
      %v1071 = vrot.slane %v412, 1
      %v1072 = vsel %vm1037, %v1069, %v1071
      %v1073 = vrot.slane %v425, 1
      %v1074 = vsel %vm1037, %v1071, %v1073
      %v1076 = vsel %vm580, %v1040, 0
      %v1079 = vsel %vm580, %v1042, 0
      %v1082 = vsel %vm580, %v1044, 0
      %v1085 = vsel %vm580, %v1046, 0
      %v1088 = vsel %vm580, %v1048, 0
      %v1091 = vsel %vm580, %v1050, 0
      %v1094 = vsel %vm580, %v1052, 0
      %v1097 = vsel %vm580, %v1054, 0
      %v1100 = vsel %vm580, %v1056, 0
      %v1103 = vsel %vm580, %v1058, 0
      %v1106 = vsel %vm580, %v1060, 0
      %v1109 = vsel %vm580, %v1062, 0
      %v1112 = vsel %vm580, %v1064, 0
      %v1115 = vsel %vm580, %v1066, 0
      %v1118 = vsel %vm580, %v1068, 0
      %v1121 = vsel %vm580, %v1070, 0
      %v1124 = vsel %vm580, %v1072, 0
      %v1127 = vsel %vm580, %v1074, 0
      %v1130 = vand.u32 %v1036, %v638
      %1132 = vmatprep.subr.bf16.mxu0 0
      %1133 = vmatpush1.bf16.msra.mxu0 0
      %1134 = vmatprep.subr.bf16.mxu0 0
      %1135 = vmatpush1.bf16.msra.mxu0 0
      %1136 = vmatprep.subr.bf16.mxu0 0
      %1137 = vmatpush1.bf16.msra.mxu0 0
      %1138 = vmatprep.subr.bf16.mxu0 0
      %1139 = vmatpush1.bf16.msra.mxu0 0
      %1140 = vmatprep.subr.bf16.mxu0 0
      %1141 = vmatpush1.bf16.msra.mxu0 0
      %1142 = vmatprep.subr.bf16.mxu0 0
      %1143 = vmatpush1.bf16.msra.mxu0 0
      %1144 = vmatprep.subr.bf16.mxu0 0
      %1145 = vmatpush1.bf16.msra.mxu0 0
      %1146 = vmatprep.subr.bf16.mxu0 0
      %1147 = vmatpush1.bf16.msra.mxu0 %v1130
      %1148 = vmatprep.subr.bf16.mxu0 0
      %1149 = vmatpush2.bf16.msra.mxu0 0
      %1150 = vmatprep.subr.bf16.mxu0 0
      %1151 = vmatpush2.bf16.msra.mxu0 0
      %1152 = vmatprep.subr.bf16.mxu0 0
      %1153 = vmatpush2.bf16.msra.mxu0 0
      %1154 = vmatprep.subr.bf16.mxu0 0
      %1155 = vmatpush2.bf16.msra.mxu0 0
      %1156 = vmatprep.subr.bf16.mxu0 0
      %1157 = vmatpush2.bf16.msra.mxu0 0
      %1158 = vmatprep.subr.bf16.mxu0 0
      %1159 = vmatpush2.bf16.msra.mxu0 0
      %1160 = vmatprep.subr.bf16.mxu0 0
      %1161 = vmatpush2.bf16.msra.mxu0 0
      %1162 = vmatprep.subr.bf16.mxu0 0
      %1163 = vmatpush2.bf16.msra.mxu0 0
      %1164 = vmatprep.mubr.bf16.mxu0 0
      %1165 = vmatmul.mubr.bf16.gmra.mxu0 %v1076
      %v1166 = vpop.f32.mrf.mxu0
      %v1167 = vadd.f32 0.0, %v1166
      %v1168 = vpop.f32.mrf.mxu0
      %v1169 = vpop.f32.mrf.mxu0
      %v1170 = vadd.f32 0.0, %v1169
      %v1171 = vpop.f32.mrf.mxu0
      %1172 = vmatprep.mubr.bf16.mxu0 0
      %1173 = vmatmul.mubr.bf16.gmra.mxu0 %v1079
      %v1174 = vpop.f32.mrf.mxu0
      %v1175 = vadd.f32 0.0, %v1174
      %v1176 = vpop.f32.mrf.mxu0
      %v1177 = vpop.f32.mrf.mxu0
      %v1178 = vadd.f32 0.0, %v1177
      %v1179 = vpop.f32.mrf.mxu0
      %1180 = vmatprep.mubr.bf16.mxu0 0
      %1181 = vmatmul.mubr.bf16.gmra.mxu0 %v1082
      %v1182 = vpop.f32.mrf.mxu0
      %v1183 = vadd.f32 0.0, %v1182
      %v1184 = vpop.f32.mrf.mxu0
      %v1185 = vpop.f32.mrf.mxu0
      %v1186 = vadd.f32 0.0, %v1185
      %v1187 = vpop.f32.mrf.mxu0
      %1188 = vmatprep.mubr.bf16.mxu0 0
      %1189 = vmatmul.mubr.bf16.gmra.mxu0 %v1085
      %v1190 = vpop.f32.mrf.mxu0
      %v1191 = vadd.f32 0.0, %v1190
      %v1192 = vpop.f32.mrf.mxu0
      %v1193 = vpop.f32.mrf.mxu0
      %v1194 = vadd.f32 0.0, %v1193
      %v1195 = vpop.f32.mrf.mxu0
      %1196 = vmatprep.mubr.bf16.mxu0 0
      %1197 = vmatmul.mubr.bf16.gmra.mxu0 %v1088
      %v1198 = vpop.f32.mrf.mxu0
      %v1199 = vadd.f32 0.0, %v1198
      %v1200 = vpop.f32.mrf.mxu0
      %v1201 = vpop.f32.mrf.mxu0
      %v1202 = vadd.f32 0.0, %v1201
      %v1203 = vpop.f32.mrf.mxu0
      %1204 = vmatprep.mubr.bf16.mxu0 0
      %1205 = vmatmul.mubr.bf16.gmra.mxu0 %v1091
      %v1206 = vpop.f32.mrf.mxu0
      %v1207 = vadd.f32 0.0, %v1206
      %v1208 = vpop.f32.mrf.mxu0
      %v1209 = vpop.f32.mrf.mxu0
      %v1210 = vadd.f32 0.0, %v1209
      %v1211 = vpop.f32.mrf.mxu0
      %1212 = vmatprep.mubr.bf16.mxu0 0
      %1213 = vmatmul.mubr.bf16.gmra.mxu0 %v1094
      %v1214 = vpop.f32.mrf.mxu0
      %v1215 = vadd.f32 0.0, %v1214
      %v1216 = vpop.f32.mrf.mxu0
      %v1217 = vpop.f32.mrf.mxu0
      %v1218 = vadd.f32 0.0, %v1217
      %v1219 = vpop.f32.mrf.mxu0
      %1220 = vmatprep.mubr.bf16.mxu0 0
      %1221 = vmatmul.mubr.bf16.gmra.mxu0 %v1097
      %v1222 = vpop.f32.mrf.mxu0
      %v1223 = vadd.f32 0.0, %v1222
      %v1224 = vpop.f32.mrf.mxu0
      %v1225 = vpop.f32.mrf.mxu0
      %v1226 = vadd.f32 0.0, %v1225
      %v1227 = vpop.f32.mrf.mxu0
      %1228 = vmatprep.mubr.bf16.mxu0 0
      %1229 = vmatmul.mubr.bf16.gmra.mxu0 %v1100
      %v1230 = vpop.f32.mrf.mxu0
      %v1231 = vadd.f32 0.0, %v1230
      %v1232 = vpop.f32.mrf.mxu0
      %v1233 = vpop.f32.mrf.mxu0
      %v1234 = vadd.f32 0.0, %v1233
      %v1235 = vpop.f32.mrf.mxu0
      %1236 = vmatprep.mubr.bf16.mxu0 0
      %1237 = vmatmul.mubr.bf16.gmra.mxu0 %v1103
      %v1238 = vpop.f32.mrf.mxu0
      %v1239 = vadd.f32 0.0, %v1238
      %v1240 = vpop.f32.mrf.mxu0
      %v1241 = vpop.f32.mrf.mxu0
      %v1242 = vadd.f32 0.0, %v1241
      %v1243 = vpop.f32.mrf.mxu0
      %1244 = vmatprep.mubr.bf16.mxu0 0
      %1245 = vmatmul.mubr.bf16.gmra.mxu0 %v1106
      %v1246 = vpop.f32.mrf.mxu0
      %v1247 = vadd.f32 0.0, %v1246
      %v1248 = vpop.f32.mrf.mxu0
      %v1249 = vpop.f32.mrf.mxu0
      %v1250 = vadd.f32 0.0, %v1249
      %v1251 = vpop.f32.mrf.mxu0
      %1252 = vmatprep.mubr.bf16.mxu0 0
      %1253 = vmatmul.mubr.bf16.gmra.mxu0 %v1109
      %v1254 = vpop.f32.mrf.mxu0
      %v1255 = vadd.f32 0.0, %v1254
      %v1256 = vpop.f32.mrf.mxu0
      %v1257 = vpop.f32.mrf.mxu0
      %v1258 = vadd.f32 0.0, %v1257
      %v1259 = vpop.f32.mrf.mxu0
      %1260 = vmatprep.mubr.bf16.mxu0 0
      %1261 = vmatmul.mubr.bf16.gmra.mxu0 %v1112
      %v1262 = vpop.f32.mrf.mxu0
      %v1263 = vadd.f32 0.0, %v1262
      %v1264 = vpop.f32.mrf.mxu0
      %v1265 = vpop.f32.mrf.mxu0
      %v1266 = vadd.f32 0.0, %v1265
      %v1267 = vpop.f32.mrf.mxu0
      %1268 = vmatprep.mubr.bf16.mxu0 0
      %1269 = vmatmul.mubr.bf16.gmra.mxu0 %v1115
      %v1270 = vpop.f32.mrf.mxu0
      %v1271 = vadd.f32 0.0, %v1270
      %v1272 = vpop.f32.mrf.mxu0
      %v1273 = vpop.f32.mrf.mxu0
      %v1274 = vadd.f32 0.0, %v1273
      %v1275 = vpop.f32.mrf.mxu0
      %1276 = vmatprep.mubr.bf16.mxu0 0
      %1277 = vmatmul.mubr.bf16.gmra.mxu0 %v1118
      %v1278 = vpop.f32.mrf.mxu0
      %v1279 = vadd.f32 0.0, %v1278
      %v1280 = vpop.f32.mrf.mxu0
      %v1281 = vpop.f32.mrf.mxu0
      %v1282 = vadd.f32 0.0, %v1281
      %v1283 = vpop.f32.mrf.mxu0
      %1284 = vmatprep.mubr.bf16.mxu0 0
      %1285 = vmatmul.mubr.bf16.gmra.mxu0 %v1121
      %v1286 = vpop.f32.mrf.mxu0
      %v1287 = vadd.f32 0.0, %v1286
      %v1288 = vpop.f32.mrf.mxu0
      %v1289 = vpop.f32.mrf.mxu0
      %v1290 = vadd.f32 0.0, %v1289
      %v1291 = vpop.f32.mrf.mxu0
      %1292 = vmatprep.mubr.bf16.mxu0 0
      %1293 = vmatmul.mubr.bf16.gmra.mxu0 %v1124
      %v1294 = vpop.f32.mrf.mxu0
      %v1295 = vadd.f32 0.0, %v1294
      %v1296 = vpop.f32.mrf.mxu0
      %v1297 = vpop.f32.mrf.mxu0
      %v1298 = vadd.f32 0.0, %v1297
      %v1299 = vpop.f32.mrf.mxu0
      %1300 = vmatprep.mubr.bf16.mxu0 0
      %1301 = vmatmul.mubr.bf16.gmra.mxu0 %v1127
      %v1302 = vpop.f32.mrf.mxu0
      %v1303 = vadd.f32 0.0, %v1302
      %v1304 = vpop.f32.mrf.mxu0
      %v1305 = vpop.f32.mrf.mxu0
      %v1306 = vadd.f32 0.0, %v1305
      %v1307 = vpop.f32.mrf.mxu0
      %1308 = vdwg.mxu0
      %v1309 = vadd.f32 %v893, %v1167
      %v1310 = vadd.f32 %v896, %v1170
      %v1311 = vadd.f32 %v901, %v1175
      %v1312 = vadd.f32 %v904, %v1178
      %v1313 = vadd.f32 %v909, %v1183
      %v1314 = vadd.f32 %v912, %v1186
      %v1315 = vadd.f32 %v917, %v1191
      %v1316 = vadd.f32 %v920, %v1194
      %v1317 = vadd.f32 %v925, %v1199
      %v1318 = vadd.f32 %v928, %v1202
      %v1319 = vadd.f32 %v933, %v1207
      %v1320 = vadd.f32 %v936, %v1210
      %v1321 = vadd.f32 %v941, %v1215
      %v1322 = vadd.f32 %v944, %v1218
      %v1323 = vadd.f32 %v949, %v1223
      %v1324 = vadd.f32 %v952, %v1226
      %v1325 = vadd.f32 %v957, %v1231
      %v1326 = vadd.f32 %v960, %v1234
      %v1327 = vadd.f32 %v965, %v1239
      %v1328 = vadd.f32 %v968, %v1242
      %v1329 = vadd.f32 %v973, %v1247
      %v1330 = vadd.f32 %v976, %v1250
      %v1331 = vadd.f32 %v981, %v1255
      %v1332 = vadd.f32 %v984, %v1258
      %v1333 = vadd.f32 %v989, %v1263
      %v1334 = vadd.f32 %v992, %v1266
      %v1335 = vadd.f32 %v997, %v1271
      %v1336 = vadd.f32 %v1000, %v1274
      %v1337 = vadd.f32 %v1005, %v1279
      %v1338 = vadd.f32 %v1008, %v1282
      %v1339 = vadd.f32 %v1013, %v1287
      %v1340 = vadd.f32 %v1016, %v1290
      %v1341 = vadd.f32 %v1021, %v1295
      %v1342 = vadd.f32 %v1024, %v1298
      %v1343 = vadd.f32 %v1029, %v1303
      %v1344 = vadd.f32 %v1032, %v1306
      %s1345 = scalar_lea.vmem %s2, 6
      %v1346 = vld [vmem:[%s1345] sm:$0x3]
      %v1347 = vrot.slane %v426, 1
      %v1348 = vsel %vm1037, %v1073, %v1347
      %v1350 = vsel %vm580, %v1348, 0
      %v1353 = vand.u32 %v1346, %v638
      %1355 = vmatprep.subr.bf16.mxu0 0
      %1356 = vmatpush1.bf16.msra.mxu0 0
      %1357 = vmatprep.subr.bf16.mxu0 0
      %1358 = vmatpush1.bf16.msra.mxu0 0
      %1359 = vmatprep.subr.bf16.mxu0 0
      %1360 = vmatpush1.bf16.msra.mxu0 0
      %1361 = vmatprep.subr.bf16.mxu0 0
      %1362 = vmatpush1.bf16.msra.mxu0 0
      %1363 = vmatprep.subr.bf16.mxu0 0
      %1364 = vmatpush1.bf16.msra.mxu0 0
      %1365 = vmatprep.subr.bf16.mxu0 0
      %1366 = vmatpush1.bf16.msra.mxu0 0
      %1367 = vmatprep.subr.bf16.mxu0 0
      %1368 = vmatpush1.bf16.msra.mxu0 0
      %1369 = vmatprep.subr.bf16.mxu0 0
      %1370 = vmatpush1.bf16.msra.mxu0 %v1353
      %1371 = vmatprep.subr.bf16.mxu0 0
      %1372 = vmatpush2.bf16.msra.mxu0 0
      %1373 = vmatprep.subr.bf16.mxu0 0
      %1374 = vmatpush2.bf16.msra.mxu0 0
      %1375 = vmatprep.subr.bf16.mxu0 0
      %1376 = vmatpush2.bf16.msra.mxu0 0
      %1377 = vmatprep.subr.bf16.mxu0 0
      %1378 = vmatpush2.bf16.msra.mxu0 0
      %1379 = vmatprep.subr.bf16.mxu0 0
      %1380 = vmatpush2.bf16.msra.mxu0 0
      %1381 = vmatprep.subr.bf16.mxu0 0
      %1382 = vmatpush2.bf16.msra.mxu0 0
      %1383 = vmatprep.subr.bf16.mxu0 0
      %1384 = vmatpush2.bf16.msra.mxu0 0
      %1385 = vmatprep.subr.bf16.mxu0 0
      %1386 = vmatpush2.bf16.msra.mxu0 0
      %1387 = vmatprep.mubr.bf16.mxu0 0
      %1388 = vmatmul.mubr.bf16.gmra.mxu0 %v1079
      %v1389 = vpop.f32.mrf.mxu0
      %v1390 = vadd.f32 0.0, %v1389
      %v1391 = vpop.f32.mrf.mxu0
      %v1392 = vpop.f32.mrf.mxu0
      %v1393 = vadd.f32 0.0, %v1392
      %v1394 = vpop.f32.mrf.mxu0
      %1395 = vmatprep.mubr.bf16.mxu0 0
      %1396 = vmatmul.mubr.bf16.gmra.mxu0 %v1082
      %v1397 = vpop.f32.mrf.mxu0
      %v1398 = vadd.f32 0.0, %v1397
      %v1399 = vpop.f32.mrf.mxu0
      %v1400 = vpop.f32.mrf.mxu0
      %v1401 = vadd.f32 0.0, %v1400
      %v1402 = vpop.f32.mrf.mxu0
      %1403 = vmatprep.mubr.bf16.mxu0 0
      %1404 = vmatmul.mubr.bf16.gmra.mxu0 %v1085
      %v1405 = vpop.f32.mrf.mxu0
      %v1406 = vadd.f32 0.0, %v1405
      %v1407 = vpop.f32.mrf.mxu0
      %v1408 = vpop.f32.mrf.mxu0
      %v1409 = vadd.f32 0.0, %v1408
      %v1410 = vpop.f32.mrf.mxu0
      %1411 = vmatprep.mubr.bf16.mxu0 0
      %1412 = vmatmul.mubr.bf16.gmra.mxu0 %v1088
      %v1413 = vpop.f32.mrf.mxu0
      %v1414 = vadd.f32 0.0, %v1413
      %v1415 = vpop.f32.mrf.mxu0
      %v1416 = vpop.f32.mrf.mxu0
      %v1417 = vadd.f32 0.0, %v1416
      %v1418 = vpop.f32.mrf.mxu0
      %1419 = vmatprep.mubr.bf16.mxu0 0
      %1420 = vmatmul.mubr.bf16.gmra.mxu0 %v1091
      %v1421 = vpop.f32.mrf.mxu0
      %v1422 = vadd.f32 0.0, %v1421
      %v1423 = vpop.f32.mrf.mxu0
      %v1424 = vpop.f32.mrf.mxu0
      %v1425 = vadd.f32 0.0, %v1424
      %v1426 = vpop.f32.mrf.mxu0
      %1427 = vmatprep.mubr.bf16.mxu0 0
      %1428 = vmatmul.mubr.bf16.gmra.mxu0 %v1094
      %v1429 = vpop.f32.mrf.mxu0
      %v1430 = vadd.f32 0.0, %v1429
      %v1431 = vpop.f32.mrf.mxu0
      %v1432 = vpop.f32.mrf.mxu0
      %v1433 = vadd.f32 0.0, %v1432
      %v1434 = vpop.f32.mrf.mxu0
      %1435 = vmatprep.mubr.bf16.mxu0 0
      %1436 = vmatmul.mubr.bf16.gmra.mxu0 %v1097
      %v1437 = vpop.f32.mrf.mxu0
      %v1438 = vadd.f32 0.0, %v1437
      %v1439 = vpop.f32.mrf.mxu0
      %v1440 = vpop.f32.mrf.mxu0
      %v1441 = vadd.f32 0.0, %v1440
      %v1442 = vpop.f32.mrf.mxu0
      %1443 = vmatprep.mubr.bf16.mxu0 0
      %1444 = vmatmul.mubr.bf16.gmra.mxu0 %v1100
      %v1445 = vpop.f32.mrf.mxu0
      %v1446 = vadd.f32 0.0, %v1445
      %v1447 = vpop.f32.mrf.mxu0
      %v1448 = vpop.f32.mrf.mxu0
      %v1449 = vadd.f32 0.0, %v1448
      %v1450 = vpop.f32.mrf.mxu0
      %1451 = vmatprep.mubr.bf16.mxu0 0
      %1452 = vmatmul.mubr.bf16.gmra.mxu0 %v1103
      %v1453 = vpop.f32.mrf.mxu0
      %v1454 = vadd.f32 0.0, %v1453
      %v1455 = vpop.f32.mrf.mxu0
      %v1456 = vpop.f32.mrf.mxu0
      %v1457 = vadd.f32 0.0, %v1456
      %v1458 = vpop.f32.mrf.mxu0
      %1459 = vmatprep.mubr.bf16.mxu0 0
      %1460 = vmatmul.mubr.bf16.gmra.mxu0 %v1106
      %v1461 = vpop.f32.mrf.mxu0
      %v1462 = vadd.f32 0.0, %v1461
      %v1463 = vpop.f32.mrf.mxu0
      %v1464 = vpop.f32.mrf.mxu0
      %v1465 = vadd.f32 0.0, %v1464
      %v1466 = vpop.f32.mrf.mxu0
      %1467 = vmatprep.mubr.bf16.mxu0 0
      %1468 = vmatmul.mubr.bf16.gmra.mxu0 %v1109
      %v1469 = vpop.f32.mrf.mxu0
      %v1470 = vadd.f32 0.0, %v1469
      %v1471 = vpop.f32.mrf.mxu0
      %v1472 = vpop.f32.mrf.mxu0
      %v1473 = vadd.f32 0.0, %v1472
      %v1474 = vpop.f32.mrf.mxu0
      %1475 = vmatprep.mubr.bf16.mxu0 0
      %1476 = vmatmul.mubr.bf16.gmra.mxu0 %v1112
      %v1477 = vpop.f32.mrf.mxu0
      %v1478 = vadd.f32 0.0, %v1477
      %v1479 = vpop.f32.mrf.mxu0
      %v1480 = vpop.f32.mrf.mxu0
      %v1481 = vadd.f32 0.0, %v1480
      %v1482 = vpop.f32.mrf.mxu0
      %1483 = vmatprep.mubr.bf16.mxu0 0
      %1484 = vmatmul.mubr.bf16.gmra.mxu0 %v1115
      %v1485 = vpop.f32.mrf.mxu0
      %v1486 = vadd.f32 0.0, %v1485
      %v1487 = vpop.f32.mrf.mxu0
      %v1488 = vpop.f32.mrf.mxu0
      %v1489 = vadd.f32 0.0, %v1488
      %v1490 = vpop.f32.mrf.mxu0
      %1491 = vmatprep.mubr.bf16.mxu0 0
      %1492 = vmatmul.mubr.bf16.gmra.mxu0 %v1118
      %v1493 = vpop.f32.mrf.mxu0
      %v1494 = vadd.f32 0.0, %v1493
      %v1495 = vpop.f32.mrf.mxu0
      %v1496 = vpop.f32.mrf.mxu0
      %v1497 = vadd.f32 0.0, %v1496
      %v1498 = vpop.f32.mrf.mxu0
      %1499 = vmatprep.mubr.bf16.mxu0 0
      %1500 = vmatmul.mubr.bf16.gmra.mxu0 %v1121
      %v1501 = vpop.f32.mrf.mxu0
      %v1502 = vadd.f32 0.0, %v1501
      %v1503 = vpop.f32.mrf.mxu0
      %v1504 = vpop.f32.mrf.mxu0
      %v1505 = vadd.f32 0.0, %v1504
      %v1506 = vpop.f32.mrf.mxu0
      %1507 = vmatprep.mubr.bf16.mxu0 0
      %1508 = vmatmul.mubr.bf16.gmra.mxu0 %v1124
      %v1509 = vpop.f32.mrf.mxu0
      %v1510 = vadd.f32 0.0, %v1509
      %v1511 = vpop.f32.mrf.mxu0
      %v1512 = vpop.f32.mrf.mxu0
      %v1513 = vadd.f32 0.0, %v1512
      %v1514 = vpop.f32.mrf.mxu0
      %1515 = vmatprep.mubr.bf16.mxu0 0
      %1516 = vmatmul.mubr.bf16.gmra.mxu0 %v1127
      %v1517 = vpop.f32.mrf.mxu0
      %v1518 = vadd.f32 0.0, %v1517
      %v1519 = vpop.f32.mrf.mxu0
      %v1520 = vpop.f32.mrf.mxu0
      %v1521 = vadd.f32 0.0, %v1520
      %v1522 = vpop.f32.mrf.mxu0
      %1523 = vmatprep.mubr.bf16.mxu0 0
      %1524 = vmatmul.mubr.bf16.gmra.mxu0 %v1350
      %v1525 = vpop.f32.mrf.mxu0
      %v1526 = vadd.f32 0.0, %v1525
      %v1527 = vpop.f32.mrf.mxu0
      %v1528 = vpop.f32.mrf.mxu0
      %v1529 = vadd.f32 0.0, %v1528
      %v1530 = vpop.f32.mrf.mxu0
      %1531 = vdwg.mxu0
      %v1532 = vadd.f32 %v1309, %v1390
      %v1533 = vadd.f32 %v1310, %v1393
      %v1534 = vadd.f32 %v1311, %v1398
      %v1535 = vadd.f32 %v1312, %v1401
      %v1536 = vadd.f32 %v1313, %v1406
      %v1537 = vadd.f32 %v1314, %v1409
      %v1538 = vadd.f32 %v1315, %v1414
      %v1539 = vadd.f32 %v1316, %v1417
      %v1540 = vadd.f32 %v1317, %v1422
      %v1541 = vadd.f32 %v1318, %v1425
      %v1542 = vadd.f32 %v1319, %v1430
      %v1543 = vadd.f32 %v1320, %v1433
      %v1544 = vadd.f32 %v1321, %v1438
      %v1545 = vadd.f32 %v1322, %v1441
      %v1546 = vadd.f32 %v1323, %v1446
      %v1547 = vadd.f32 %v1324, %v1449
      %v1548 = vadd.f32 %v1325, %v1454
      %v1549 = vadd.f32 %v1326, %v1457
      %v1550 = vadd.f32 %v1327, %v1462
      %v1551 = vadd.f32 %v1328, %v1465
      %v1552 = vadd.f32 %v1329, %v1470
      %v1553 = vadd.f32 %v1330, %v1473
      %v1554 = vadd.f32 %v1331, %v1478
      %v1555 = vadd.f32 %v1332, %v1481
      %v1556 = vadd.f32 %v1333, %v1486
      %v1557 = vadd.f32 %v1334, %v1489
      %v1558 = vadd.f32 %v1335, %v1494
      %v1559 = vadd.f32 %v1336, %v1497
      %v1560 = vadd.f32 %v1337, %v1502
      %v1561 = vadd.f32 %v1338, %v1505
      %v1562 = vadd.f32 %v1339, %v1510
      %v1563 = vadd.f32 %v1340, %v1513
      %v1564 = vadd.f32 %v1341, %v1518
      %v1565 = vadd.f32 %v1342, %v1521
      %v1566 = vadd.f32 %v1343, %v1526
      %v1567 = vadd.f32 %v1344, %v1529
      %s1568 = scalar_lea.vmem %s2, 8
      %v1569 = vld [vmem:[%s1568] sm:$0x3]
      %vm1570 = vsmask.f32 6400
      %v1571 = vrot.slane %v444, 1
      %v1572 = vrot.slane %v440, 2
      %v1573 = vor.u32 %v1571, %v1572
      %v1574 = vrot.slane %v452, 1
      %v1575 = vrot.slane %v448, 2
      %v1576 = vor.u32 %v1574, %v1575
      %v1577 = vsel %vm1570, %v1573, %v1576
      %v1578 = vrot.slane %v460, 1
      %v1579 = vrot.slane %v456, 2
      %v1580 = vor.u32 %v1578, %v1579
      %v1581 = vsel %vm1570, %v1576, %v1580
      %v1582 = vrot.slane %v468, 1
      %v1583 = vrot.slane %v464, 2
      %v1584 = vor.u32 %v1582, %v1583
      %v1585 = vsel %vm1570, %v1580, %v1584
      %v1586 = vrot.slane %v476, 1
      %v1587 = vrot.slane %v472, 2
      %v1588 = vor.u32 %v1586, %v1587
      %v1589 = vsel %vm1570, %v1584, %v1588
      %v1590 = vrot.slane %v484, 1
      %v1591 = vrot.slane %v480, 2
      %v1592 = vor.u32 %v1590, %v1591
      %v1593 = vsel %vm1570, %v1588, %v1592
      %v1594 = vrot.slane %v492, 1
      %v1595 = vrot.slane %v488, 2
      %v1596 = vor.u32 %v1594, %v1595
      %v1597 = vsel %vm1570, %v1592, %v1596
      %v1598 = vrot.slane %v500, 1
      %v1599 = vrot.slane %v496, 2
      %v1600 = vor.u32 %v1598, %v1599
      %v1601 = vsel %vm1570, %v1596, %v1600
      %v1602 = vrot.slane %v508, 1
      %v1603 = vrot.slane %v504, 2
      %v1604 = vor.u32 %v1602, %v1603
      %v1605 = vsel %vm1570, %v1600, %v1604
      %v1606 = vrot.slane %v516, 1
      %v1607 = vrot.slane %v512, 2
      %v1608 = vor.u32 %v1606, %v1607
      %v1609 = vsel %vm1570, %v1604, %v1608
      %v1610 = vrot.slane %v524, 1
      %v1611 = vrot.slane %v520, 2
      %v1612 = vor.u32 %v1610, %v1611
      %v1613 = vsel %vm1570, %v1608, %v1612
      %v1614 = vrot.slane %v532, 1
      %v1615 = vrot.slane %v528, 2
      %v1616 = vor.u32 %v1614, %v1615
      %v1617 = vsel %vm1570, %v1612, %v1616
      %v1618 = vrot.slane %v540, 1
      %v1619 = vrot.slane %v536, 2
      %v1620 = vor.u32 %v1618, %v1619
      %v1621 = vsel %vm1570, %v1616, %v1620
      %v1622 = vrot.slane %v548, 1
      %v1623 = vrot.slane %v544, 2
      %v1624 = vor.u32 %v1622, %v1623
      %v1625 = vsel %vm1570, %v1620, %v1624
      %v1626 = vrot.slane %v556, 1
      %v1627 = vrot.slane %v552, 2
      %v1628 = vor.u32 %v1626, %v1627
      %v1629 = vsel %vm1570, %v1624, %v1628
      %v1630 = vrot.slane %v564, 1
      %v1631 = vrot.slane %v560, 2
      %v1632 = vor.u32 %v1630, %v1631
      %v1633 = vsel %vm1570, %v1628, %v1632
      %v1634 = vrot.slane %v572, 1
      %v1635 = vrot.slane %v568, 2
      %v1636 = vor.u32 %v1634, %v1635
      %v1637 = vsel %vm1570, %v1632, %v1636
      %v1638 = vshrl.u32 %v425, 16
      %v1640 = vrot.slane %v1638, 1
      %v1641 = vrot.slane %v576, 2
      %v1642 = vor.u32 %v1640, %v1641
      %v1643 = vsel %vm1570, %v1636, %v1642
      %v1645 = vshrl.u32 %v426, 16
      %v1647 = vrot.slane %v1645, 1
      %v1648 = vshll.u32 %v426, 16
      %v1650 = vrot.slane %v1648, 2
      %v1651 = vor.u32 %v1647, %v1650
      %v1652 = vsel %vm1570, %v1642, %v1651
      %v1654 = vsel %vm580, %v1577, 0
      %v1657 = vsel %vm580, %v1581, 0
      %v1660 = vsel %vm580, %v1585, 0
      %v1663 = vsel %vm580, %v1589, 0
      %v1666 = vsel %vm580, %v1593, 0
      %v1669 = vsel %vm580, %v1597, 0
      %v1672 = vsel %vm580, %v1601, 0
      %v1675 = vsel %vm580, %v1605, 0
      %v1678 = vsel %vm580, %v1609, 0
      %v1681 = vsel %vm580, %v1613, 0
      %v1684 = vsel %vm580, %v1617, 0
      %v1687 = vsel %vm580, %v1621, 0
      %v1690 = vsel %vm580, %v1625, 0
      %v1693 = vsel %vm580, %v1629, 0
      %v1696 = vsel %vm580, %v1633, 0
      %v1699 = vsel %vm580, %v1637, 0
      %v1702 = vsel %vm580, %v1643, 0
      %v1705 = vsel %vm580, %v1652, 0
      %v1708 = vand.u32 %v1569, %v638
      %1710 = vmatprep.subr.bf16.mxu0 0
      %1711 = vmatpush1.bf16.msra.mxu0 0
      %1712 = vmatprep.subr.bf16.mxu0 0
      %1713 = vmatpush1.bf16.msra.mxu0 0
      %1714 = vmatprep.subr.bf16.mxu0 0
      %1715 = vmatpush1.bf16.msra.mxu0 0
      %1716 = vmatprep.subr.bf16.mxu0 0
      %1717 = vmatpush1.bf16.msra.mxu0 0
      %1718 = vmatprep.subr.bf16.mxu0 0
      %1719 = vmatpush1.bf16.msra.mxu0 0
      %1720 = vmatprep.subr.bf16.mxu0 0
      %1721 = vmatpush1.bf16.msra.mxu0 0
      %1722 = vmatprep.subr.bf16.mxu0 0
      %1723 = vmatpush1.bf16.msra.mxu0 0
      %1724 = vmatprep.subr.bf16.mxu0 0
      %1725 = vmatpush1.bf16.msra.mxu0 %v1708
      %1726 = vmatprep.subr.bf16.mxu0 0
      %1727 = vmatpush2.bf16.msra.mxu0 0
      %1728 = vmatprep.subr.bf16.mxu0 0
      %1729 = vmatpush2.bf16.msra.mxu0 0
      %1730 = vmatprep.subr.bf16.mxu0 0
      %1731 = vmatpush2.bf16.msra.mxu0 0
      %1732 = vmatprep.subr.bf16.mxu0 0
      %1733 = vmatpush2.bf16.msra.mxu0 0
      %1734 = vmatprep.subr.bf16.mxu0 0
      %1735 = vmatpush2.bf16.msra.mxu0 0
      %1736 = vmatprep.subr.bf16.mxu0 0
      %1737 = vmatpush2.bf16.msra.mxu0 0
      %1738 = vmatprep.subr.bf16.mxu0 0
      %1739 = vmatpush2.bf16.msra.mxu0 0
      %1740 = vmatprep.subr.bf16.mxu0 0
      %1741 = vmatpush2.bf16.msra.mxu0 0
      %1742 = vmatprep.mubr.bf16.mxu0 0
      %1743 = vmatmul.mubr.bf16.gmra.mxu0 %v1654
      %v1744 = vpop.f32.mrf.mxu0
      %v1745 = vadd.f32 0.0, %v1744
      %v1746 = vpop.f32.mrf.mxu0
      %v1747 = vpop.f32.mrf.mxu0
      %v1748 = vadd.f32 0.0, %v1747
      %v1749 = vpop.f32.mrf.mxu0
      %1750 = vmatprep.mubr.bf16.mxu0 0
      %1751 = vmatmul.mubr.bf16.gmra.mxu0 %v1657
      %v1752 = vpop.f32.mrf.mxu0
      %v1753 = vadd.f32 0.0, %v1752
      %v1754 = vpop.f32.mrf.mxu0
      %v1755 = vpop.f32.mrf.mxu0
      %v1756 = vadd.f32 0.0, %v1755
      %v1757 = vpop.f32.mrf.mxu0
      %1758 = vmatprep.mubr.bf16.mxu0 0
      %1759 = vmatmul.mubr.bf16.gmra.mxu0 %v1660
      %v1760 = vpop.f32.mrf.mxu0
      %v1761 = vadd.f32 0.0, %v1760
      %v1762 = vpop.f32.mrf.mxu0
      %v1763 = vpop.f32.mrf.mxu0
      %v1764 = vadd.f32 0.0, %v1763
      %v1765 = vpop.f32.mrf.mxu0
      %1766 = vmatprep.mubr.bf16.mxu0 0
      %1767 = vmatmul.mubr.bf16.gmra.mxu0 %v1663
      %v1768 = vpop.f32.mrf.mxu0
      %v1769 = vadd.f32 0.0, %v1768
      %v1770 = vpop.f32.mrf.mxu0
      %v1771 = vpop.f32.mrf.mxu0
      %v1772 = vadd.f32 0.0, %v1771
      %v1773 = vpop.f32.mrf.mxu0
      %1774 = vmatprep.mubr.bf16.mxu0 0
      %1775 = vmatmul.mubr.bf16.gmra.mxu0 %v1666
      %v1776 = vpop.f32.mrf.mxu0
      %v1777 = vadd.f32 0.0, %v1776
      %v1778 = vpop.f32.mrf.mxu0
      %v1779 = vpop.f32.mrf.mxu0
      %v1780 = vadd.f32 0.0, %v1779
      %v1781 = vpop.f32.mrf.mxu0
      %1782 = vmatprep.mubr.bf16.mxu0 0
      %1783 = vmatmul.mubr.bf16.gmra.mxu0 %v1669
      %v1784 = vpop.f32.mrf.mxu0
      %v1785 = vadd.f32 0.0, %v1784
      %v1786 = vpop.f32.mrf.mxu0
      %v1787 = vpop.f32.mrf.mxu0
      %v1788 = vadd.f32 0.0, %v1787
      %v1789 = vpop.f32.mrf.mxu0
      %1790 = vmatprep.mubr.bf16.mxu0 0
      %1791 = vmatmul.mubr.bf16.gmra.mxu0 %v1672
      %v1792 = vpop.f32.mrf.mxu0
      %v1793 = vadd.f32 0.0, %v1792
      %v1794 = vpop.f32.mrf.mxu0
      %v1795 = vpop.f32.mrf.mxu0
      %v1796 = vadd.f32 0.0, %v1795
      %v1797 = vpop.f32.mrf.mxu0
      %1798 = vmatprep.mubr.bf16.mxu0 0
      %1799 = vmatmul.mubr.bf16.gmra.mxu0 %v1675
      %v1800 = vpop.f32.mrf.mxu0
      %v1801 = vadd.f32 0.0, %v1800
      %v1802 = vpop.f32.mrf.mxu0
      %v1803 = vpop.f32.mrf.mxu0
      %v1804 = vadd.f32 0.0, %v1803
      %v1805 = vpop.f32.mrf.mxu0
      %1806 = vmatprep.mubr.bf16.mxu0 0
      %1807 = vmatmul.mubr.bf16.gmra.mxu0 %v1678
      %v1808 = vpop.f32.mrf.mxu0
      %v1809 = vadd.f32 0.0, %v1808
      %v1810 = vpop.f32.mrf.mxu0
      %v1811 = vpop.f32.mrf.mxu0
      %v1812 = vadd.f32 0.0, %v1811
      %v1813 = vpop.f32.mrf.mxu0
      %1814 = vmatprep.mubr.bf16.mxu0 0
      %1815 = vmatmul.mubr.bf16.gmra.mxu0 %v1681
      %v1816 = vpop.f32.mrf.mxu0
      %v1817 = vadd.f32 0.0, %v1816
      %v1818 = vpop.f32.mrf.mxu0
      %v1819 = vpop.f32.mrf.mxu0
      %v1820 = vadd.f32 0.0, %v1819
      %v1821 = vpop.f32.mrf.mxu0
      %1822 = vmatprep.mubr.bf16.mxu0 0
      %1823 = vmatmul.mubr.bf16.gmra.mxu0 %v1684
      %v1824 = vpop.f32.mrf.mxu0
      %v1825 = vadd.f32 0.0, %v1824
      %v1826 = vpop.f32.mrf.mxu0
      %v1827 = vpop.f32.mrf.mxu0
      %v1828 = vadd.f32 0.0, %v1827
      %v1829 = vpop.f32.mrf.mxu0
      %1830 = vmatprep.mubr.bf16.mxu0 0
      %1831 = vmatmul.mubr.bf16.gmra.mxu0 %v1687
      %v1832 = vpop.f32.mrf.mxu0
      %v1833 = vadd.f32 0.0, %v1832
      %v1834 = vpop.f32.mrf.mxu0
      %v1835 = vpop.f32.mrf.mxu0
      %v1836 = vadd.f32 0.0, %v1835
      %v1837 = vpop.f32.mrf.mxu0
      %1838 = vmatprep.mubr.bf16.mxu0 0
      %1839 = vmatmul.mubr.bf16.gmra.mxu0 %v1690
      %v1840 = vpop.f32.mrf.mxu0
      %v1841 = vadd.f32 0.0, %v1840
      %v1842 = vpop.f32.mrf.mxu0
      %v1843 = vpop.f32.mrf.mxu0
      %v1844 = vadd.f32 0.0, %v1843
      %v1845 = vpop.f32.mrf.mxu0
      %1846 = vmatprep.mubr.bf16.mxu0 0
      %1847 = vmatmul.mubr.bf16.gmra.mxu0 %v1693
      %v1848 = vpop.f32.mrf.mxu0
      %v1849 = vadd.f32 0.0, %v1848
      %v1850 = vpop.f32.mrf.mxu0
      %v1851 = vpop.f32.mrf.mxu0
      %v1852 = vadd.f32 0.0, %v1851
      %v1853 = vpop.f32.mrf.mxu0
      %1854 = vmatprep.mubr.bf16.mxu0 0
      %1855 = vmatmul.mubr.bf16.gmra.mxu0 %v1696
      %v1856 = vpop.f32.mrf.mxu0
      %v1857 = vadd.f32 0.0, %v1856
      %v1858 = vpop.f32.mrf.mxu0
      %v1859 = vpop.f32.mrf.mxu0
      %v1860 = vadd.f32 0.0, %v1859
      %v1861 = vpop.f32.mrf.mxu0
      %1862 = vmatprep.mubr.bf16.mxu0 0
      %1863 = vmatmul.mubr.bf16.gmra.mxu0 %v1699
      %v1864 = vpop.f32.mrf.mxu0
      %v1865 = vadd.f32 0.0, %v1864
      %v1866 = vpop.f32.mrf.mxu0
      %v1867 = vpop.f32.mrf.mxu0
      %v1868 = vadd.f32 0.0, %v1867
      %v1869 = vpop.f32.mrf.mxu0
      %1870 = vmatprep.mubr.bf16.mxu0 0
      %1871 = vmatmul.mubr.bf16.gmra.mxu0 %v1702
      %v1872 = vpop.f32.mrf.mxu0
      %v1873 = vadd.f32 0.0, %v1872
      %v1874 = vpop.f32.mrf.mxu0
      %v1875 = vpop.f32.mrf.mxu0
      %v1876 = vadd.f32 0.0, %v1875
      %v1877 = vpop.f32.mrf.mxu0
      %1878 = vmatprep.mubr.bf16.mxu0 0
      %1879 = vmatmul.mubr.bf16.gmra.mxu0 %v1705
      %v1880 = vpop.f32.mrf.mxu0
      %v1881 = vadd.f32 0.0, %v1880
      %v1882 = vpop.f32.mrf.mxu0
      %v1883 = vpop.f32.mrf.mxu0
      %v1884 = vadd.f32 0.0, %v1883
      %v1885 = vpop.f32.mrf.mxu0
      %1886 = vdwg.mxu0
      %v1887 = vadd.f32 %v1532, %v1745
      %v1888 = vadd.f32 %v1533, %v1748
      %v1889 = vadd.f32 %v1534, %v1753
      %v1890 = vadd.f32 %v1535, %v1756
      %v1891 = vadd.f32 %v1536, %v1761
      %v1892 = vadd.f32 %v1537, %v1764
      %v1893 = vadd.f32 %v1538, %v1769
      %v1894 = vadd.f32 %v1539, %v1772
      %v1895 = vadd.f32 %v1540, %v1777
      %v1896 = vadd.f32 %v1541, %v1780
      %v1897 = vadd.f32 %v1542, %v1785
      %v1898 = vadd.f32 %v1543, %v1788
      %v1899 = vadd.f32 %v1544, %v1793
      %v1900 = vadd.f32 %v1545, %v1796
      %v1901 = vadd.f32 %v1546, %v1801
      %v1902 = vadd.f32 %v1547, %v1804
      %v1903 = vadd.f32 %v1548, %v1809
      %v1904 = vadd.f32 %v1549, %v1812
      %v1905 = vadd.f32 %v1550, %v1817
      %v1906 = vadd.f32 %v1551, %v1820
      %v1907 = vadd.f32 %v1552, %v1825
      %v1908 = vadd.f32 %v1553, %v1828
      %v1909 = vadd.f32 %v1554, %v1833
      %v1910 = vadd.f32 %v1555, %v1836
      %v1911 = vadd.f32 %v1556, %v1841
      %v1912 = vadd.f32 %v1557, %v1844
      %v1913 = vadd.f32 %v1558, %v1849
      %v1914 = vadd.f32 %v1559, %v1852
      %v1915 = vadd.f32 %v1560, %v1857
      %v1916 = vadd.f32 %v1561, %v1860
      %v1917 = vadd.f32 %v1562, %v1865
      %v1918 = vadd.f32 %v1563, %v1868
      %v1919 = vadd.f32 %v1564, %v1873
      %v1920 = vadd.f32 %v1565, %v1876
      %v1921 = vadd.f32 %v1566, %v1881
      %v1922 = vadd.f32 %v1567, %v1884
      %s1923 = scalar_lea.vmem %s2, 10
      %v1924 = vld [vmem:[%s1923] sm:$0x3]
      %vm1925 = vcmask 1045504
      %v1926 = vrot.slane %v396, 2
      %v1927 = vrot.slane %v397, 2
      %v1928 = vsel %vm1925, %v1926, %v1927
      %v1929 = vrot.slane %v398, 2
      %v1930 = vsel %vm1925, %v1927, %v1929
      %v1931 = vrot.slane %v399, 2
      %v1932 = vsel %vm1925, %v1929, %v1931
      %v1933 = vrot.slane %v400, 2
      %v1934 = vsel %vm1925, %v1931, %v1933
      %v1935 = vrot.slane %v401, 2
      %v1936 = vsel %vm1925, %v1933, %v1935
      %v1937 = vrot.slane %v402, 2
      %v1938 = vsel %vm1925, %v1935, %v1937
      %v1939 = vrot.slane %v403, 2
      %v1940 = vsel %vm1925, %v1937, %v1939
      %v1941 = vrot.slane %v404, 2
      %v1942 = vsel %vm1925, %v1939, %v1941
      %v1943 = vrot.slane %v405, 2
      %v1944 = vsel %vm1925, %v1941, %v1943
      %v1945 = vrot.slane %v406, 2
      %v1946 = vsel %vm1925, %v1943, %v1945
      %v1947 = vrot.slane %v407, 2
      %v1948 = vsel %vm1925, %v1945, %v1947
      %v1949 = vrot.slane %v408, 2
      %v1950 = vsel %vm1925, %v1947, %v1949
      %v1951 = vrot.slane %v409, 2
      %v1952 = vsel %vm1925, %v1949, %v1951
      %v1953 = vrot.slane %v410, 2
      %v1954 = vsel %vm1925, %v1951, %v1953
      %v1955 = vrot.slane %v411, 2
      %v1956 = vsel %vm1925, %v1953, %v1955
      %v1957 = vrot.slane %v412, 2
      %v1958 = vsel %vm1925, %v1955, %v1957
      %v1959 = vrot.slane %v425, 2
      %v1960 = vsel %vm1925, %v1957, %v1959
      %v1961 = vrot.slane %v426, 2
      %v1962 = vsel %vm1925, %v1959, %v1961
      %v1964 = vsel %vm580, %v1928, 0
      %v1967 = vsel %vm580, %v1930, 0
      %v1970 = vsel %vm580, %v1932, 0
      %v1973 = vsel %vm580, %v1934, 0
      %v1976 = vsel %vm580, %v1936, 0
      %v1979 = vsel %vm580, %v1938, 0
      %v1982 = vsel %vm580, %v1940, 0
      %v1985 = vsel %vm580, %v1942, 0
      %v1988 = vsel %vm580, %v1944, 0
      %v1991 = vsel %vm580, %v1946, 0
      %v1994 = vsel %vm580, %v1948, 0
      %v1997 = vsel %vm580, %v1950, 0
      %v2000 = vsel %vm580, %v1952, 0
      %v2003 = vsel %vm580, %v1954, 0
      %v2006 = vsel %vm580, %v1956, 0
      %v2009 = vsel %vm580, %v1958, 0
      %v2012 = vsel %vm580, %v1960, 0
      %v2015 = vsel %vm580, %v1962, 0
      %v2018 = vand.u32 %v1924, %v638
      %2020 = vmatprep.subr.bf16.mxu0 0
      %2021 = vmatpush1.bf16.msra.mxu0 0
      %2022 = vmatprep.subr.bf16.mxu0 0
      %2023 = vmatpush1.bf16.msra.mxu0 0
      %2024 = vmatprep.subr.bf16.mxu0 0
      %2025 = vmatpush1.bf16.msra.mxu0 0
      %2026 = vmatprep.subr.bf16.mxu0 0
      %2027 = vmatpush1.bf16.msra.mxu0 0
      %2028 = vmatprep.subr.bf16.mxu0 0
      %2029 = vmatpush1.bf16.msra.mxu0 0
      %2030 = vmatprep.subr.bf16.mxu0 0
      %2031 = vmatpush1.bf16.msra.mxu0 0
      %2032 = vmatprep.subr.bf16.mxu0 0
      %2033 = vmatpush1.bf16.msra.mxu0 0
      %2034 = vmatprep.subr.bf16.mxu0 0
      %2035 = vmatpush1.bf16.msra.mxu0 %v2018
      %2036 = vmatprep.subr.bf16.mxu0 0
      %2037 = vmatpush2.bf16.msra.mxu0 0
      %2038 = vmatprep.subr.bf16.mxu0 0
      %2039 = vmatpush2.bf16.msra.mxu0 0
      %2040 = vmatprep.subr.bf16.mxu0 0
      %2041 = vmatpush2.bf16.msra.mxu0 0
      %2042 = vmatprep.subr.bf16.mxu0 0
      %2043 = vmatpush2.bf16.msra.mxu0 0
      %2044 = vmatprep.subr.bf16.mxu0 0
      %2045 = vmatpush2.bf16.msra.mxu0 0
      %2046 = vmatprep.subr.bf16.mxu0 0
      %2047 = vmatpush2.bf16.msra.mxu0 0
      %2048 = vmatprep.subr.bf16.mxu0 0
      %2049 = vmatpush2.bf16.msra.mxu0 0
      %2050 = vmatprep.subr.bf16.mxu0 0
      %2051 = vmatpush2.bf16.msra.mxu0 0
      %2052 = vmatprep.mubr.bf16.mxu0 0
      %2053 = vmatmul.mubr.bf16.gmra.mxu0 %v1964
      %v2054 = vpop.f32.mrf.mxu0
      %v2055 = vadd.f32 0.0, %v2054
      %v2056 = vpop.f32.mrf.mxu0
      %v2057 = vpop.f32.mrf.mxu0
      %v2058 = vadd.f32 0.0, %v2057
      %v2059 = vpop.f32.mrf.mxu0
      %2060 = vmatprep.mubr.bf16.mxu0 0
      %2061 = vmatmul.mubr.bf16.gmra.mxu0 %v1967
      %v2062 = vpop.f32.mrf.mxu0
      %v2063 = vadd.f32 0.0, %v2062
      %v2064 = vpop.f32.mrf.mxu0
      %v2065 = vpop.f32.mrf.mxu0
      %v2066 = vadd.f32 0.0, %v2065
      %v2067 = vpop.f32.mrf.mxu0
      %2068 = vmatprep.mubr.bf16.mxu0 0
      %2069 = vmatmul.mubr.bf16.gmra.mxu0 %v1970
      %v2070 = vpop.f32.mrf.mxu0
      %v2071 = vadd.f32 0.0, %v2070
      %v2072 = vpop.f32.mrf.mxu0
      %v2073 = vpop.f32.mrf.mxu0
      %v2074 = vadd.f32 0.0, %v2073
      %v2075 = vpop.f32.mrf.mxu0
      %2076 = vmatprep.mubr.bf16.mxu0 0
      %2077 = vmatmul.mubr.bf16.gmra.mxu0 %v1973
      %v2078 = vpop.f32.mrf.mxu0
      %v2079 = vadd.f32 0.0, %v2078
      %v2080 = vpop.f32.mrf.mxu0
      %v2081 = vpop.f32.mrf.mxu0
      %v2082 = vadd.f32 0.0, %v2081
      %v2083 = vpop.f32.mrf.mxu0
      %2084 = vmatprep.mubr.bf16.mxu0 0
      %2085 = vmatmul.mubr.bf16.gmra.mxu0 %v1976
      %v2086 = vpop.f32.mrf.mxu0
      %v2087 = vadd.f32 0.0, %v2086
      %v2088 = vpop.f32.mrf.mxu0
      %v2089 = vpop.f32.mrf.mxu0
      %v2090 = vadd.f32 0.0, %v2089
      %v2091 = vpop.f32.mrf.mxu0
      %2092 = vmatprep.mubr.bf16.mxu0 0
      %2093 = vmatmul.mubr.bf16.gmra.mxu0 %v1979
      %v2094 = vpop.f32.mrf.mxu0
      %v2095 = vadd.f32 0.0, %v2094
      %v2096 = vpop.f32.mrf.mxu0
      %v2097 = vpop.f32.mrf.mxu0
      %v2098 = vadd.f32 0.0, %v2097
      %v2099 = vpop.f32.mrf.mxu0
      %2100 = vmatprep.mubr.bf16.mxu0 0
      %2101 = vmatmul.mubr.bf16.gmra.mxu0 %v1982
      %v2102 = vpop.f32.mrf.mxu0
      %v2103 = vadd.f32 0.0, %v2102
      %v2104 = vpop.f32.mrf.mxu0
      %v2105 = vpop.f32.mrf.mxu0
      %v2106 = vadd.f32 0.0, %v2105
      %v2107 = vpop.f32.mrf.mxu0
      %2108 = vmatprep.mubr.bf16.mxu0 0
      %2109 = vmatmul.mubr.bf16.gmra.mxu0 %v1985
      %v2110 = vpop.f32.mrf.mxu0
      %v2111 = vadd.f32 0.0, %v2110
      %v2112 = vpop.f32.mrf.mxu0
      %v2113 = vpop.f32.mrf.mxu0
      %v2114 = vadd.f32 0.0, %v2113
      %v2115 = vpop.f32.mrf.mxu0
      %2116 = vmatprep.mubr.bf16.mxu0 0
      %2117 = vmatmul.mubr.bf16.gmra.mxu0 %v1988
      %v2118 = vpop.f32.mrf.mxu0
      %v2119 = vadd.f32 0.0, %v2118
      %v2120 = vpop.f32.mrf.mxu0
      %v2121 = vpop.f32.mrf.mxu0
      %v2122 = vadd.f32 0.0, %v2121
      %v2123 = vpop.f32.mrf.mxu0
      %2124 = vmatprep.mubr.bf16.mxu0 0
      %2125 = vmatmul.mubr.bf16.gmra.mxu0 %v1991
      %v2126 = vpop.f32.mrf.mxu0
      %v2127 = vadd.f32 0.0, %v2126
      %v2128 = vpop.f32.mrf.mxu0
      %v2129 = vpop.f32.mrf.mxu0
      %v2130 = vadd.f32 0.0, %v2129
      %v2131 = vpop.f32.mrf.mxu0
      %2132 = vmatprep.mubr.bf16.mxu0 0
      %2133 = vmatmul.mubr.bf16.gmra.mxu0 %v1994
      %v2134 = vpop.f32.mrf.mxu0
      %v2135 = vadd.f32 0.0, %v2134
      %v2136 = vpop.f32.mrf.mxu0
      %v2137 = vpop.f32.mrf.mxu0
      %v2138 = vadd.f32 0.0, %v2137
      %v2139 = vpop.f32.mrf.mxu0
      %2140 = vmatprep.mubr.bf16.mxu0 0
      %2141 = vmatmul.mubr.bf16.gmra.mxu0 %v1997
      %v2142 = vpop.f32.mrf.mxu0
      %v2143 = vadd.f32 0.0, %v2142
      %v2144 = vpop.f32.mrf.mxu0
      %v2145 = vpop.f32.mrf.mxu0
      %v2146 = vadd.f32 0.0, %v2145
      %v2147 = vpop.f32.mrf.mxu0
      %2148 = vmatprep.mubr.bf16.mxu0 0
      %2149 = vmatmul.mubr.bf16.gmra.mxu0 %v2000
      %v2150 = vpop.f32.mrf.mxu0
      %v2151 = vadd.f32 0.0, %v2150
      %v2152 = vpop.f32.mrf.mxu0
      %v2153 = vpop.f32.mrf.mxu0
      %v2154 = vadd.f32 0.0, %v2153
      %v2155 = vpop.f32.mrf.mxu0
      %2156 = vmatprep.mubr.bf16.mxu0 0
      %2157 = vmatmul.mubr.bf16.gmra.mxu0 %v2003
      %v2158 = vpop.f32.mrf.mxu0
      %v2159 = vadd.f32 0.0, %v2158
      %v2160 = vpop.f32.mrf.mxu0
      %v2161 = vpop.f32.mrf.mxu0
      %v2162 = vadd.f32 0.0, %v2161
      %v2163 = vpop.f32.mrf.mxu0
      %2164 = vmatprep.mubr.bf16.mxu0 0
      %2165 = vmatmul.mubr.bf16.gmra.mxu0 %v2006
      %v2166 = vpop.f32.mrf.mxu0
      %v2167 = vadd.f32 0.0, %v2166
      %v2168 = vpop.f32.mrf.mxu0
      %v2169 = vpop.f32.mrf.mxu0
      %v2170 = vadd.f32 0.0, %v2169
      %v2171 = vpop.f32.mrf.mxu0
      %2172 = vmatprep.mubr.bf16.mxu0 0
      %2173 = vmatmul.mubr.bf16.gmra.mxu0 %v2009
      %v2174 = vpop.f32.mrf.mxu0
      %v2175 = vadd.f32 0.0, %v2174
      %v2176 = vpop.f32.mrf.mxu0
      %v2177 = vpop.f32.mrf.mxu0
      %v2178 = vadd.f32 0.0, %v2177
      %v2179 = vpop.f32.mrf.mxu0
      %2180 = vmatprep.mubr.bf16.mxu0 0
      %2181 = vmatmul.mubr.bf16.gmra.mxu0 %v2012
      %v2182 = vpop.f32.mrf.mxu0
      %v2183 = vadd.f32 0.0, %v2182
      %v2184 = vpop.f32.mrf.mxu0
      %v2185 = vpop.f32.mrf.mxu0
      %v2186 = vadd.f32 0.0, %v2185
      %v2187 = vpop.f32.mrf.mxu0
      %2188 = vmatprep.mubr.bf16.mxu0 0
      %2189 = vmatmul.mubr.bf16.gmra.mxu0 %v2015
      %v2190 = vpop.f32.mrf.mxu0
      %v2191 = vadd.f32 0.0, %v2190
      %v2192 = vpop.f32.mrf.mxu0
      %v2193 = vpop.f32.mrf.mxu0
      %v2194 = vadd.f32 0.0, %v2193
      %v2195 = vpop.f32.mrf.mxu0
      %2196 = vdwg.mxu0
      %v2197 = vadd.f32 %v1887, %v2055
      %v2198 = vadd.f32 %v1888, %v2058
      %v2199 = vadd.f32 %v1889, %v2063
      %v2200 = vadd.f32 %v1890, %v2066
      %v2201 = vadd.f32 %v1891, %v2071
      %v2202 = vadd.f32 %v1892, %v2074
      %v2203 = vadd.f32 %v1893, %v2079
      %v2204 = vadd.f32 %v1894, %v2082
      %v2205 = vadd.f32 %v1895, %v2087
      %v2206 = vadd.f32 %v1896, %v2090
      %v2207 = vadd.f32 %v1897, %v2095
      %v2208 = vadd.f32 %v1898, %v2098
      %v2209 = vadd.f32 %v1899, %v2103
      %v2210 = vadd.f32 %v1900, %v2106
      %v2211 = vadd.f32 %v1901, %v2111
      %v2212 = vadd.f32 %v1902, %v2114
      %v2213 = vadd.f32 %v1903, %v2119
      %v2214 = vadd.f32 %v1904, %v2122
      %v2215 = vadd.f32 %v1905, %v2127
      %v2216 = vadd.f32 %v1906, %v2130
      %v2217 = vadd.f32 %v1907, %v2135
      %v2218 = vadd.f32 %v1908, %v2138
      %v2219 = vadd.f32 %v1909, %v2143
      %v2220 = vadd.f32 %v1910, %v2146
      %v2221 = vadd.f32 %v1911, %v2151
      %v2222 = vadd.f32 %v1912, %v2154
      %v2223 = vadd.f32 %v1913, %v2159
      %v2224 = vadd.f32 %v1914, %v2162
      %v2225 = vadd.f32 %v1915, %v2167
      %v2226 = vadd.f32 %v1916, %v2170
      %v2227 = vadd.f32 %v1917, %v2175
      %v2228 = vadd.f32 %v1918, %v2178
      %v2229 = vadd.f32 %v1919, %v2183
      %v2230 = vadd.f32 %v1920, %v2186
      %v2231 = vadd.f32 %v1921, %v2191
      %v2232 = vadd.f32 %v1922, %v2194
      %s2233 = scalar_lea.vmem %s2, 12
      %v2234 = vld [vmem:[%s2233] sm:$0x3]
      %v2235 = vrot.slane %v427, 2
      %v2236 = vsel %vm1925, %v1961, %v2235
      %v2238 = vsel %vm580, %v2236, 0
      %v2241 = vand.u32 %v2234, %v638
      %2243 = vmatprep.subr.bf16.mxu0 0
      %2244 = vmatpush1.bf16.msra.mxu0 0
      %2245 = vmatprep.subr.bf16.mxu0 0
      %2246 = vmatpush1.bf16.msra.mxu0 0
      %2247 = vmatprep.subr.bf16.mxu0 0
      %2248 = vmatpush1.bf16.msra.mxu0 0
      %2249 = vmatprep.subr.bf16.mxu0 0
      %2250 = vmatpush1.bf16.msra.mxu0 0
      %2251 = vmatprep.subr.bf16.mxu0 0
      %2252 = vmatpush1.bf16.msra.mxu0 0
      %2253 = vmatprep.subr.bf16.mxu0 0
      %2254 = vmatpush1.bf16.msra.mxu0 0
      %2255 = vmatprep.subr.bf16.mxu0 0
      %2256 = vmatpush1.bf16.msra.mxu0 0
      %2257 = vmatprep.subr.bf16.mxu0 0
      %2258 = vmatpush1.bf16.msra.mxu0 %v2241
      %2259 = vmatprep.subr.bf16.mxu0 0
      %2260 = vmatpush2.bf16.msra.mxu0 0
      %2261 = vmatprep.subr.bf16.mxu0 0
      %2262 = vmatpush2.bf16.msra.mxu0 0
      %2263 = vmatprep.subr.bf16.mxu0 0
      %2264 = vmatpush2.bf16.msra.mxu0 0
      %2265 = vmatprep.subr.bf16.mxu0 0
      %2266 = vmatpush2.bf16.msra.mxu0 0
      %2267 = vmatprep.subr.bf16.mxu0 0
      %2268 = vmatpush2.bf16.msra.mxu0 0
      %2269 = vmatprep.subr.bf16.mxu0 0
      %2270 = vmatpush2.bf16.msra.mxu0 0
      %2271 = vmatprep.subr.bf16.mxu0 0
      %2272 = vmatpush2.bf16.msra.mxu0 0
      %2273 = vmatprep.subr.bf16.mxu0 0
      %2274 = vmatpush2.bf16.msra.mxu0 0
      %2275 = vmatprep.mubr.bf16.mxu0 0
      %2276 = vmatmul.mubr.bf16.gmra.mxu0 %v1967
      %v2277 = vpop.f32.mrf.mxu0
      %v2278 = vadd.f32 0.0, %v2277
      %v2279 = vpop.f32.mrf.mxu0
      %v2280 = vpop.f32.mrf.mxu0
      %v2281 = vadd.f32 0.0, %v2280
      %v2282 = vpop.f32.mrf.mxu0
      %2283 = vmatprep.mubr.bf16.mxu0 0
      %2284 = vmatmul.mubr.bf16.gmra.mxu0 %v1970
      %v2285 = vpop.f32.mrf.mxu0
      %v2286 = vadd.f32 0.0, %v2285
      %v2287 = vpop.f32.mrf.mxu0
      %v2288 = vpop.f32.mrf.mxu0
      %v2289 = vadd.f32 0.0, %v2288
      %v2290 = vpop.f32.mrf.mxu0
      %2291 = vmatprep.mubr.bf16.mxu0 0
      %2292 = vmatmul.mubr.bf16.gmra.mxu0 %v1973
      %v2293 = vpop.f32.mrf.mxu0
      %v2294 = vadd.f32 0.0, %v2293
      %v2295 = vpop.f32.mrf.mxu0
      %v2296 = vpop.f32.mrf.mxu0
      %v2297 = vadd.f32 0.0, %v2296
      %v2298 = vpop.f32.mrf.mxu0
      %2299 = vmatprep.mubr.bf16.mxu0 0
      %2300 = vmatmul.mubr.bf16.gmra.mxu0 %v1976
      %v2301 = vpop.f32.mrf.mxu0
      %v2302 = vadd.f32 0.0, %v2301
      %v2303 = vpop.f32.mrf.mxu0
      %v2304 = vpop.f32.mrf.mxu0
      %v2305 = vadd.f32 0.0, %v2304
      %v2306 = vpop.f32.mrf.mxu0
      %2307 = vmatprep.mubr.bf16.mxu0 0
      %2308 = vmatmul.mubr.bf16.gmra.mxu0 %v1979
      %v2309 = vpop.f32.mrf.mxu0
      %v2310 = vadd.f32 0.0, %v2309
      %v2311 = vpop.f32.mrf.mxu0
      %v2312 = vpop.f32.mrf.mxu0
      %v2313 = vadd.f32 0.0, %v2312
      %v2314 = vpop.f32.mrf.mxu0
      %2315 = vmatprep.mubr.bf16.mxu0 0
      %2316 = vmatmul.mubr.bf16.gmra.mxu0 %v1982
      %v2317 = vpop.f32.mrf.mxu0
      %v2318 = vadd.f32 0.0, %v2317
      %v2319 = vpop.f32.mrf.mxu0
      %v2320 = vpop.f32.mrf.mxu0
      %v2321 = vadd.f32 0.0, %v2320
      %v2322 = vpop.f32.mrf.mxu0
      %2323 = vmatprep.mubr.bf16.mxu0 0
      %2324 = vmatmul.mubr.bf16.gmra.mxu0 %v1985
      %v2325 = vpop.f32.mrf.mxu0
      %v2326 = vadd.f32 0.0, %v2325
      %v2327 = vpop.f32.mrf.mxu0
      %v2328 = vpop.f32.mrf.mxu0
      %v2329 = vadd.f32 0.0, %v2328
      %v2330 = vpop.f32.mrf.mxu0
      %2331 = vmatprep.mubr.bf16.mxu0 0
      %2332 = vmatmul.mubr.bf16.gmra.mxu0 %v1988
      %v2333 = vpop.f32.mrf.mxu0
      %v2334 = vadd.f32 0.0, %v2333
      %v2335 = vpop.f32.mrf.mxu0
      %v2336 = vpop.f32.mrf.mxu0
      %v2337 = vadd.f32 0.0, %v2336
      %v2338 = vpop.f32.mrf.mxu0
      %2339 = vmatprep.mubr.bf16.mxu0 0
      %2340 = vmatmul.mubr.bf16.gmra.mxu0 %v1991
      %v2341 = vpop.f32.mrf.mxu0
      %v2342 = vadd.f32 0.0, %v2341
      %v2343 = vpop.f32.mrf.mxu0
      %v2344 = vpop.f32.mrf.mxu0
      %v2345 = vadd.f32 0.0, %v2344
      %v2346 = vpop.f32.mrf.mxu0
      %2347 = vmatprep.mubr.bf16.mxu0 0
      %2348 = vmatmul.mubr.bf16.gmra.mxu0 %v1994
      %v2349 = vpop.f32.mrf.mxu0
      %v2350 = vadd.f32 0.0, %v2349
      %v2351 = vpop.f32.mrf.mxu0
      %v2352 = vpop.f32.mrf.mxu0
      %v2353 = vadd.f32 0.0, %v2352
      %v2354 = vpop.f32.mrf.mxu0
      %2355 = vmatprep.mubr.bf16.mxu0 0
      %2356 = vmatmul.mubr.bf16.gmra.mxu0 %v1997
      %v2357 = vpop.f32.mrf.mxu0
      %v2358 = vadd.f32 0.0, %v2357
      %v2359 = vpop.f32.mrf.mxu0
      %v2360 = vpop.f32.mrf.mxu0
      %v2361 = vadd.f32 0.0, %v2360
      %v2362 = vpop.f32.mrf.mxu0
      %2363 = vmatprep.mubr.bf16.mxu0 0
      %2364 = vmatmul.mubr.bf16.gmra.mxu0 %v2000
      %v2365 = vpop.f32.mrf.mxu0
      %v2366 = vadd.f32 0.0, %v2365
      %v2367 = vpop.f32.mrf.mxu0
      %v2368 = vpop.f32.mrf.mxu0
      %v2369 = vadd.f32 0.0, %v2368
      %v2370 = vpop.f32.mrf.mxu0
      %2371 = vmatprep.mubr.bf16.mxu0 0
      %2372 = vmatmul.mubr.bf16.gmra.mxu0 %v2003
      %v2373 = vpop.f32.mrf.mxu0
      %v2374 = vadd.f32 0.0, %v2373
      %v2375 = vpop.f32.mrf.mxu0
      %v2376 = vpop.f32.mrf.mxu0
      %v2377 = vadd.f32 0.0, %v2376
      %v2378 = vpop.f32.mrf.mxu0
      %2379 = vmatprep.mubr.bf16.mxu0 0
      %2380 = vmatmul.mubr.bf16.gmra.mxu0 %v2006
      %v2381 = vpop.f32.mrf.mxu0
      %v2382 = vadd.f32 0.0, %v2381
      %v2383 = vpop.f32.mrf.mxu0
      %v2384 = vpop.f32.mrf.mxu0
      %v2385 = vadd.f32 0.0, %v2384
      %v2386 = vpop.f32.mrf.mxu0
      %2387 = vmatprep.mubr.bf16.mxu0 0
      %2388 = vmatmul.mubr.bf16.gmra.mxu0 %v2009
      %v2389 = vpop.f32.mrf.mxu0
      %v2390 = vadd.f32 0.0, %v2389
      %v2391 = vpop.f32.mrf.mxu0
      %v2392 = vpop.f32.mrf.mxu0
      %v2393 = vadd.f32 0.0, %v2392
      %v2394 = vpop.f32.mrf.mxu0
      %2395 = vmatprep.mubr.bf16.mxu0 0
      %2396 = vmatmul.mubr.bf16.gmra.mxu0 %v2012
      %v2397 = vpop.f32.mrf.mxu0
      %v2398 = vadd.f32 0.0, %v2397
      %v2399 = vpop.f32.mrf.mxu0
      %v2400 = vpop.f32.mrf.mxu0
      %v2401 = vadd.f32 0.0, %v2400
      %v2402 = vpop.f32.mrf.mxu0
      %2403 = vmatprep.mubr.bf16.mxu0 0
      %2404 = vmatmul.mubr.bf16.gmra.mxu0 %v2015
      %v2405 = vpop.f32.mrf.mxu0
      %v2406 = vadd.f32 0.0, %v2405
      %v2407 = vpop.f32.mrf.mxu0
      %v2408 = vpop.f32.mrf.mxu0
      %v2409 = vadd.f32 0.0, %v2408
      %v2410 = vpop.f32.mrf.mxu0
      %2411 = vmatprep.mubr.bf16.mxu0 0
      %2412 = vmatmul.mubr.bf16.gmra.mxu0 %v2238
      %v2413 = vpop.f32.mrf.mxu0
      %v2414 = vadd.f32 0.0, %v2413
      %v2415 = vpop.f32.mrf.mxu0
      %v2416 = vpop.f32.mrf.mxu0
      %v2417 = vadd.f32 0.0, %v2416
      %v2418 = vpop.f32.mrf.mxu0
      %2419 = vdwg.mxu0
      %v2420 = vadd.f32 %v2197, %v2278
      %v2421 = vadd.f32 %v2198, %v2281
      %v2422 = vadd.f32 %v2199, %v2286
      %v2423 = vadd.f32 %v2200, %v2289
      %v2424 = vadd.f32 %v2201, %v2294
      %v2425 = vadd.f32 %v2202, %v2297
      %v2426 = vadd.f32 %v2203, %v2302
      %v2427 = vadd.f32 %v2204, %v2305
      %v2428 = vadd.f32 %v2205, %v2310
      %v2429 = vadd.f32 %v2206, %v2313
      %v2430 = vadd.f32 %v2207, %v2318
      %v2431 = vadd.f32 %v2208, %v2321
      %v2432 = vadd.f32 %v2209, %v2326
      %v2433 = vadd.f32 %v2210, %v2329
      %v2434 = vadd.f32 %v2211, %v2334
      %v2435 = vadd.f32 %v2212, %v2337
      %v2436 = vadd.f32 %v2213, %v2342
      %v2437 = vadd.f32 %v2214, %v2345
      %v2438 = vadd.f32 %v2215, %v2350
      %v2439 = vadd.f32 %v2216, %v2353
      %v2440 = vadd.f32 %v2217, %v2358
      %v2441 = vadd.f32 %v2218, %v2361
      %v2442 = vadd.f32 %v2219, %v2366
      %v2443 = vadd.f32 %v2220, %v2369
      %v2444 = vadd.f32 %v2221, %v2374
      %v2445 = vadd.f32 %v2222, %v2377
      %v2446 = vadd.f32 %v2223, %v2382
      %v2447 = vadd.f32 %v2224, %v2385
      %v2448 = vadd.f32 %v2225, %v2390
      %v2449 = vadd.f32 %v2226, %v2393
      %v2450 = vadd.f32 %v2227, %v2398
      %v2451 = vadd.f32 %v2228, %v2401
      %v2452 = vadd.f32 %v2229, %v2406
      %v2453 = vadd.f32 %v2230, %v2409
      %v2454 = vadd.f32 %v2231, %v2414
      %v2455 = vadd.f32 %v2232, %v2417
      %s2456 = scalar_lea.vmem %s2, 14
      %v2457 = vld [vmem:[%s2456] sm:$0x3]
      %vm2458 = vsmask.f32 5376
      %v2459 = vrot.slane %v452, 2
      %v2460 = vrot.slane %v448, 3
      %v2461 = vor.u32 %v2459, %v2460
      %v2462 = vrot.slane %v460, 2
      %v2463 = vrot.slane %v456, 3
      %v2464 = vor.u32 %v2462, %v2463
      %v2465 = vsel %vm2458, %v2461, %v2464
      %v2466 = vrot.slane %v468, 2
      %v2467 = vrot.slane %v464, 3
      %v2468 = vor.u32 %v2466, %v2467
      %v2469 = vsel %vm2458, %v2464, %v2468
      %v2470 = vrot.slane %v476, 2
      %v2471 = vrot.slane %v472, 3
      %v2472 = vor.u32 %v2470, %v2471
      %v2473 = vsel %vm2458, %v2468, %v2472
      %v2474 = vrot.slane %v484, 2
      %v2475 = vrot.slane %v480, 3
      %v2476 = vor.u32 %v2474, %v2475
      %v2477 = vsel %vm2458, %v2472, %v2476
      %v2478 = vrot.slane %v492, 2
      %v2479 = vrot.slane %v488, 3
      %v2480 = vor.u32 %v2478, %v2479
      %v2481 = vsel %vm2458, %v2476, %v2480
      %v2482 = vrot.slane %v500, 2
      %v2483 = vrot.slane %v496, 3
      %v2484 = vor.u32 %v2482, %v2483
      %v2485 = vsel %vm2458, %v2480, %v2484
      %v2486 = vrot.slane %v508, 2
      %v2487 = vrot.slane %v504, 3
      %v2488 = vor.u32 %v2486, %v2487
      %v2489 = vsel %vm2458, %v2484, %v2488
      %v2490 = vrot.slane %v516, 2
      %v2491 = vrot.slane %v512, 3
      %v2492 = vor.u32 %v2490, %v2491
      %v2493 = vsel %vm2458, %v2488, %v2492
      %v2494 = vrot.slane %v524, 2
      %v2495 = vrot.slane %v520, 3
      %v2496 = vor.u32 %v2494, %v2495
      %v2497 = vsel %vm2458, %v2492, %v2496
      %v2498 = vrot.slane %v532, 2
      %v2499 = vrot.slane %v528, 3
      %v2500 = vor.u32 %v2498, %v2499
      %v2501 = vsel %vm2458, %v2496, %v2500
      %v2502 = vrot.slane %v540, 2
      %v2503 = vrot.slane %v536, 3
      %v2504 = vor.u32 %v2502, %v2503
      %v2505 = vsel %vm2458, %v2500, %v2504
      %v2506 = vrot.slane %v548, 2
      %v2507 = vrot.slane %v544, 3
      %v2508 = vor.u32 %v2506, %v2507
      %v2509 = vsel %vm2458, %v2504, %v2508
      %v2510 = vrot.slane %v556, 2
      %v2511 = vrot.slane %v552, 3
      %v2512 = vor.u32 %v2510, %v2511
      %v2513 = vsel %vm2458, %v2508, %v2512
      %v2514 = vrot.slane %v564, 2
      %v2515 = vrot.slane %v560, 3
      %v2516 = vor.u32 %v2514, %v2515
      %v2517 = vsel %vm2458, %v2512, %v2516
      %v2518 = vrot.slane %v572, 2
      %v2519 = vrot.slane %v568, 3
      %v2520 = vor.u32 %v2518, %v2519
      %v2521 = vsel %vm2458, %v2516, %v2520
      %v2522 = vrot.slane %v1638, 2
      %v2523 = vrot.slane %v576, 3
      %v2524 = vor.u32 %v2522, %v2523
      %v2525 = vsel %vm2458, %v2520, %v2524
      %v2526 = vrot.slane %v1645, 2
      %v2527 = vrot.slane %v1648, 3
      %v2528 = vor.u32 %v2526, %v2527
      %v2529 = vsel %vm2458, %v2524, %v2528
      %v2531 = vshrl.u32 %v427, 16
      %v2533 = vrot.slane %v2531, 2
      %v2534 = vshll.u32 %v427, 16
      %v2536 = vrot.slane %v2534, 3
      %v2537 = vor.u32 %v2533, %v2536
      %v2538 = vsel %vm2458, %v2528, %v2537
      %v2540 = vsel %vm580, %v2465, 0
      %v2543 = vsel %vm580, %v2469, 0
      %v2546 = vsel %vm580, %v2473, 0
      %v2549 = vsel %vm580, %v2477, 0
      %v2552 = vsel %vm580, %v2481, 0
      %v2555 = vsel %vm580, %v2485, 0
      %v2558 = vsel %vm580, %v2489, 0
      %v2561 = vsel %vm580, %v2493, 0
      %v2564 = vsel %vm580, %v2497, 0
      %v2567 = vsel %vm580, %v2501, 0
      %v2570 = vsel %vm580, %v2505, 0
      %v2573 = vsel %vm580, %v2509, 0
      %v2576 = vsel %vm580, %v2513, 0
      %v2579 = vsel %vm580, %v2517, 0
      %v2582 = vsel %vm580, %v2521, 0
      %v2585 = vsel %vm580, %v2525, 0
      %v2588 = vsel %vm580, %v2529, 0
      %v2591 = vsel %vm580, %v2538, 0
      %v2594 = vand.u32 %v2457, %v638
      %2596 = vmatprep.subr.bf16.mxu0 0
      %2597 = vmatpush1.bf16.msra.mxu0 0
      %2598 = vmatprep.subr.bf16.mxu0 0
      %2599 = vmatpush1.bf16.msra.mxu0 0
      %2600 = vmatprep.subr.bf16.mxu0 0
      %2601 = vmatpush1.bf16.msra.mxu0 0
      %2602 = vmatprep.subr.bf16.mxu0 0
      %2603 = vmatpush1.bf16.msra.mxu0 0
      %2604 = vmatprep.subr.bf16.mxu0 0
      %2605 = vmatpush1.bf16.msra.mxu0 0
      %2606 = vmatprep.subr.bf16.mxu0 0
      %2607 = vmatpush1.bf16.msra.mxu0 0
      %2608 = vmatprep.subr.bf16.mxu0 0
      %2609 = vmatpush1.bf16.msra.mxu0 0
      %2610 = vmatprep.subr.bf16.mxu0 0
      %2611 = vmatpush1.bf16.msra.mxu0 %v2594
      %2612 = vmatprep.subr.bf16.mxu0 0
      %2613 = vmatpush2.bf16.msra.mxu0 0
      %2614 = vmatprep.subr.bf16.mxu0 0
      %2615 = vmatpush2.bf16.msra.mxu0 0
      %2616 = vmatprep.subr.bf16.mxu0 0
      %2617 = vmatpush2.bf16.msra.mxu0 0
      %2618 = vmatprep.subr.bf16.mxu0 0
      %2619 = vmatpush2.bf16.msra.mxu0 0
      %2620 = vmatprep.subr.bf16.mxu0 0
      %2621 = vmatpush2.bf16.msra.mxu0 0
      %2622 = vmatprep.subr.bf16.mxu0 0
      %2623 = vmatpush2.bf16.msra.mxu0 0
      %2624 = vmatprep.subr.bf16.mxu0 0
      %2625 = vmatpush2.bf16.msra.mxu0 0
      %2626 = vmatprep.subr.bf16.mxu0 0
      %2627 = vmatpush2.bf16.msra.mxu0 0
      %2628 = vmatprep.mubr.bf16.mxu0 0
      %2629 = vmatmul.mubr.bf16.gmra.mxu0 %v2540
      %v2630 = vpop.f32.mrf.mxu0
      %v2631 = vadd.f32 0.0, %v2630
      %v2632 = vpop.f32.mrf.mxu0
      %v2633 = vpop.f32.mrf.mxu0
      %v2634 = vadd.f32 0.0, %v2633
      %v2635 = vpop.f32.mrf.mxu0
      %2636 = vmatprep.mubr.bf16.mxu0 0
      %2637 = vmatmul.mubr.bf16.gmra.mxu0 %v2543
      %v2638 = vpop.f32.mrf.mxu0
      %v2639 = vadd.f32 0.0, %v2638
      %v2640 = vpop.f32.mrf.mxu0
      %v2641 = vpop.f32.mrf.mxu0
      %v2642 = vadd.f32 0.0, %v2641
      %v2643 = vpop.f32.mrf.mxu0
      %2644 = vmatprep.mubr.bf16.mxu0 0
      %2645 = vmatmul.mubr.bf16.gmra.mxu0 %v2546
      %v2646 = vpop.f32.mrf.mxu0
      %v2647 = vadd.f32 0.0, %v2646
      %v2648 = vpop.f32.mrf.mxu0
      %v2649 = vpop.f32.mrf.mxu0
      %v2650 = vadd.f32 0.0, %v2649
      %v2651 = vpop.f32.mrf.mxu0
      %2652 = vmatprep.mubr.bf16.mxu0 0
      %2653 = vmatmul.mubr.bf16.gmra.mxu0 %v2549
      %v2654 = vpop.f32.mrf.mxu0
      %v2655 = vadd.f32 0.0, %v2654
      %v2656 = vpop.f32.mrf.mxu0
      %v2657 = vpop.f32.mrf.mxu0
      %v2658 = vadd.f32 0.0, %v2657
      %v2659 = vpop.f32.mrf.mxu0
      %2660 = vmatprep.mubr.bf16.mxu0 0
      %2661 = vmatmul.mubr.bf16.gmra.mxu0 %v2552
      %v2662 = vpop.f32.mrf.mxu0
      %v2663 = vadd.f32 0.0, %v2662
      %v2664 = vpop.f32.mrf.mxu0
      %v2665 = vpop.f32.mrf.mxu0
      %v2666 = vadd.f32 0.0, %v2665
      %v2667 = vpop.f32.mrf.mxu0
      %2668 = vmatprep.mubr.bf16.mxu0 0
      %2669 = vmatmul.mubr.bf16.gmra.mxu0 %v2555
      %v2670 = vpop.f32.mrf.mxu0
      %v2671 = vadd.f32 0.0, %v2670
      %v2672 = vpop.f32.mrf.mxu0
      %v2673 = vpop.f32.mrf.mxu0
      %v2674 = vadd.f32 0.0, %v2673
      %v2675 = vpop.f32.mrf.mxu0
      %2676 = vmatprep.mubr.bf16.mxu0 0
      %2677 = vmatmul.mubr.bf16.gmra.mxu0 %v2558
      %v2678 = vpop.f32.mrf.mxu0
      %v2679 = vadd.f32 0.0, %v2678
      %v2680 = vpop.f32.mrf.mxu0
      %v2681 = vpop.f32.mrf.mxu0
      %v2682 = vadd.f32 0.0, %v2681
      %v2683 = vpop.f32.mrf.mxu0
      %2684 = vmatprep.mubr.bf16.mxu0 0
      %2685 = vmatmul.mubr.bf16.gmra.mxu0 %v2561
      %v2686 = vpop.f32.mrf.mxu0
      %v2687 = vadd.f32 0.0, %v2686
      %v2688 = vpop.f32.mrf.mxu0
      %v2689 = vpop.f32.mrf.mxu0
      %v2690 = vadd.f32 0.0, %v2689
      %v2691 = vpop.f32.mrf.mxu0
      %2692 = vmatprep.mubr.bf16.mxu0 0
      %2693 = vmatmul.mubr.bf16.gmra.mxu0 %v2564
      %v2694 = vpop.f32.mrf.mxu0
      %v2695 = vadd.f32 0.0, %v2694
      %v2696 = vpop.f32.mrf.mxu0
      %v2697 = vpop.f32.mrf.mxu0
      %v2698 = vadd.f32 0.0, %v2697
      %v2699 = vpop.f32.mrf.mxu0
      %2700 = vmatprep.mubr.bf16.mxu0 0
      %2701 = vmatmul.mubr.bf16.gmra.mxu0 %v2567
      %v2702 = vpop.f32.mrf.mxu0
      %v2703 = vadd.f32 0.0, %v2702
      %v2704 = vpop.f32.mrf.mxu0
      %v2705 = vpop.f32.mrf.mxu0
      %v2706 = vadd.f32 0.0, %v2705
      %v2707 = vpop.f32.mrf.mxu0
      %2708 = vmatprep.mubr.bf16.mxu0 0
      %2709 = vmatmul.mubr.bf16.gmra.mxu0 %v2570
      %v2710 = vpop.f32.mrf.mxu0
      %v2711 = vadd.f32 0.0, %v2710
      %v2712 = vpop.f32.mrf.mxu0
      %v2713 = vpop.f32.mrf.mxu0
      %v2714 = vadd.f32 0.0, %v2713
      %v2715 = vpop.f32.mrf.mxu0
      %2716 = vmatprep.mubr.bf16.mxu0 0
      %2717 = vmatmul.mubr.bf16.gmra.mxu0 %v2573
      %v2718 = vpop.f32.mrf.mxu0
      %v2719 = vadd.f32 0.0, %v2718
      %v2720 = vpop.f32.mrf.mxu0
      %v2721 = vpop.f32.mrf.mxu0
      %v2722 = vadd.f32 0.0, %v2721
      %v2723 = vpop.f32.mrf.mxu0
      %2724 = vmatprep.mubr.bf16.mxu0 0
      %2725 = vmatmul.mubr.bf16.gmra.mxu0 %v2576
      %v2726 = vpop.f32.mrf.mxu0
      %v2727 = vadd.f32 0.0, %v2726
      %v2728 = vpop.f32.mrf.mxu0
      %v2729 = vpop.f32.mrf.mxu0
      %v2730 = vadd.f32 0.0, %v2729
      %v2731 = vpop.f32.mrf.mxu0
      %2732 = vmatprep.mubr.bf16.mxu0 0
      %2733 = vmatmul.mubr.bf16.gmra.mxu0 %v2579
      %v2734 = vpop.f32.mrf.mxu0
      %v2735 = vadd.f32 0.0, %v2734
      %v2736 = vpop.f32.mrf.mxu0
      %v2737 = vpop.f32.mrf.mxu0
      %v2738 = vadd.f32 0.0, %v2737
      %v2739 = vpop.f32.mrf.mxu0
      %2740 = vmatprep.mubr.bf16.mxu0 0
      %2741 = vmatmul.mubr.bf16.gmra.mxu0 %v2582
      %v2742 = vpop.f32.mrf.mxu0
      %v2743 = vadd.f32 0.0, %v2742
      %v2744 = vpop.f32.mrf.mxu0
      %v2745 = vpop.f32.mrf.mxu0
      %v2746 = vadd.f32 0.0, %v2745
      %v2747 = vpop.f32.mrf.mxu0
      %2748 = vmatprep.mubr.bf16.mxu0 0
      %2749 = vmatmul.mubr.bf16.gmra.mxu0 %v2585
      %v2750 = vpop.f32.mrf.mxu0
      %v2751 = vadd.f32 0.0, %v2750
      %v2752 = vpop.f32.mrf.mxu0
      %v2753 = vpop.f32.mrf.mxu0
      %v2754 = vadd.f32 0.0, %v2753
      %v2755 = vpop.f32.mrf.mxu0
      %2756 = vmatprep.mubr.bf16.mxu0 0
      %2757 = vmatmul.mubr.bf16.gmra.mxu0 %v2588
      %v2758 = vpop.f32.mrf.mxu0
      %v2759 = vadd.f32 0.0, %v2758
      %v2760 = vpop.f32.mrf.mxu0
      %v2761 = vpop.f32.mrf.mxu0
      %v2762 = vadd.f32 0.0, %v2761
      %v2763 = vpop.f32.mrf.mxu0
      %2764 = vmatprep.mubr.bf16.mxu0 0
      %2765 = vmatmul.mubr.bf16.gmra.mxu0 %v2591
      %v2766 = vpop.f32.mrf.mxu0
      %v2767 = vadd.f32 0.0, %v2766
      %v2768 = vpop.f32.mrf.mxu0
      %v2769 = vpop.f32.mrf.mxu0
      %v2770 = vadd.f32 0.0, %v2769
      %v2771 = vpop.f32.mrf.mxu0
      %2772 = vdwg.mxu0
      %v2773 = vadd.f32 %v2420, %v2631
      %v2774 = vadd.f32 %v2421, %v2634
      %v2775 = vadd.f32 %v2422, %v2639
      %v2776 = vadd.f32 %v2423, %v2642
      %v2777 = vadd.f32 %v2424, %v2647
      %v2778 = vadd.f32 %v2425, %v2650
      %v2779 = vadd.f32 %v2426, %v2655
      %v2780 = vadd.f32 %v2427, %v2658
      %v2781 = vadd.f32 %v2428, %v2663
      %v2782 = vadd.f32 %v2429, %v2666
      %v2783 = vadd.f32 %v2430, %v2671
      %v2784 = vadd.f32 %v2431, %v2674
      %v2785 = vadd.f32 %v2432, %v2679
      %v2786 = vadd.f32 %v2433, %v2682
      %v2787 = vadd.f32 %v2434, %v2687
      %v2788 = vadd.f32 %v2435, %v2690
      %v2789 = vadd.f32 %v2436, %v2695
      %v2790 = vadd.f32 %v2437, %v2698
      %v2791 = vadd.f32 %v2438, %v2703
      %v2792 = vadd.f32 %v2439, %v2706
      %v2793 = vadd.f32 %v2440, %v2711
      %v2794 = vadd.f32 %v2441, %v2714
      %v2795 = vadd.f32 %v2442, %v2719
      %v2796 = vadd.f32 %v2443, %v2722
      %v2797 = vadd.f32 %v2444, %v2727
      %v2798 = vadd.f32 %v2445, %v2730
      %v2799 = vadd.f32 %v2446, %v2735
      %v2800 = vadd.f32 %v2447, %v2738
      %v2801 = vadd.f32 %v2448, %v2743
      %v2802 = vadd.f32 %v2449, %v2746
      %v2803 = vadd.f32 %v2450, %v2751
      %v2804 = vadd.f32 %v2451, %v2754
      %v2805 = vadd.f32 %v2452, %v2759
      %v2806 = vadd.f32 %v2453, %v2762
      %v2807 = vadd.f32 %v2454, %v2767
      %v2808 = vadd.f32 %v2455, %v2770
      %s2809 = scalar_lea.vmem %s2, 16
      %v2810 = vld [vmem:[%s2809] sm:$0x3]
      %vm2811 = vcmask 1044480
      %v2812 = vrot.slane %v397, 3
      %v2813 = vrot.slane %v398, 3
      %v2814 = vsel %vm2811, %v2812, %v2813
      %v2815 = vrot.slane %v399, 3
      %v2816 = vsel %vm2811, %v2813, %v2815
      %v2817 = vrot.slane %v400, 3
      %v2818 = vsel %vm2811, %v2815, %v2817
      %v2819 = vrot.slane %v401, 3
      %v2820 = vsel %vm2811, %v2817, %v2819
      %v2821 = vrot.slane %v402, 3
      %v2822 = vsel %vm2811, %v2819, %v2821
      %v2823 = vrot.slane %v403, 3
      %v2824 = vsel %vm2811, %v2821, %v2823
      %v2825 = vrot.slane %v404, 3
      %v2826 = vsel %vm2811, %v2823, %v2825
      %v2827 = vrot.slane %v405, 3
      %v2828 = vsel %vm2811, %v2825, %v2827
      %v2829 = vrot.slane %v406, 3
      %v2830 = vsel %vm2811, %v2827, %v2829
      %v2831 = vrot.slane %v407, 3
      %v2832 = vsel %vm2811, %v2829, %v2831
      %v2833 = vrot.slane %v408, 3
      %v2834 = vsel %vm2811, %v2831, %v2833
      %v2835 = vrot.slane %v409, 3
      %v2836 = vsel %vm2811, %v2833, %v2835
      %v2837 = vrot.slane %v410, 3
      %v2838 = vsel %vm2811, %v2835, %v2837
      %v2839 = vrot.slane %v411, 3
      %v2840 = vsel %vm2811, %v2837, %v2839
      %v2841 = vrot.slane %v412, 3
      %v2842 = vsel %vm2811, %v2839, %v2841
      %v2843 = vrot.slane %v425, 3
      %v2844 = vsel %vm2811, %v2841, %v2843
      %v2845 = vrot.slane %v426, 3
      %v2846 = vsel %vm2811, %v2843, %v2845
      %v2847 = vrot.slane %v427, 3
      %v2848 = vsel %vm2811, %v2845, %v2847
      %v2850 = vsel %vm580, %v2814, 0
      %v2853 = vsel %vm580, %v2816, 0
      %v2856 = vsel %vm580, %v2818, 0
      %v2859 = vsel %vm580, %v2820, 0
      %v2862 = vsel %vm580, %v2822, 0
      %v2865 = vsel %vm580, %v2824, 0
      %v2868 = vsel %vm580, %v2826, 0
      %v2871 = vsel %vm580, %v2828, 0
      %v2874 = vsel %vm580, %v2830, 0
      %v2877 = vsel %vm580, %v2832, 0
      %v2880 = vsel %vm580, %v2834, 0
      %v2883 = vsel %vm580, %v2836, 0
      %v2886 = vsel %vm580, %v2838, 0
      %v2889 = vsel %vm580, %v2840, 0
      %v2892 = vsel %vm580, %v2842, 0
      %v2895 = vsel %vm580, %v2844, 0
      %v2898 = vsel %vm580, %v2846, 0
      %v2901 = vsel %vm580, %v2848, 0
      %v2904 = vand.u32 %v2810, %v638
      %2906 = vmatprep.subr.bf16.mxu0 0
      %2907 = vmatpush1.bf16.msra.mxu0 0
      %2908 = vmatprep.subr.bf16.mxu0 0
      %2909 = vmatpush1.bf16.msra.mxu0 0
      %2910 = vmatprep.subr.bf16.mxu0 0
      %2911 = vmatpush1.bf16.msra.mxu0 0
      %2912 = vmatprep.subr.bf16.mxu0 0
      %2913 = vmatpush1.bf16.msra.mxu0 0
      %2914 = vmatprep.subr.bf16.mxu0 0
      %2915 = vmatpush1.bf16.msra.mxu0 0
      %2916 = vmatprep.subr.bf16.mxu0 0
      %2917 = vmatpush1.bf16.msra.mxu0 0
      %2918 = vmatprep.subr.bf16.mxu0 0
      %2919 = vmatpush1.bf16.msra.mxu0 0
      %2920 = vmatprep.subr.bf16.mxu0 0
      %2921 = vmatpush1.bf16.msra.mxu0 %v2904
      %2922 = vmatprep.subr.bf16.mxu0 0
      %2923 = vmatpush2.bf16.msra.mxu0 0
      %2924 = vmatprep.subr.bf16.mxu0 0
      %2925 = vmatpush2.bf16.msra.mxu0 0
      %2926 = vmatprep.subr.bf16.mxu0 0
      %2927 = vmatpush2.bf16.msra.mxu0 0
      %2928 = vmatprep.subr.bf16.mxu0 0
      %2929 = vmatpush2.bf16.msra.mxu0 0
      %2930 = vmatprep.subr.bf16.mxu0 0
      %2931 = vmatpush2.bf16.msra.mxu0 0
      %2932 = vmatprep.subr.bf16.mxu0 0
      %2933 = vmatpush2.bf16.msra.mxu0 0
      %2934 = vmatprep.subr.bf16.mxu0 0
      %2935 = vmatpush2.bf16.msra.mxu0 0
      %2936 = vmatprep.subr.bf16.mxu0 0
      %2937 = vmatpush2.bf16.msra.mxu0 0
      %2938 = vmatprep.mubr.bf16.mxu0 0
      %2939 = vmatmul.mubr.bf16.gmra.mxu0 %v2850
      %v2940 = vpop.f32.mrf.mxu0
      %v2941 = vadd.f32 0.0, %v2940
      %v2942 = vpop.f32.mrf.mxu0
      %v2943 = vpop.f32.mrf.mxu0
      %v2944 = vadd.f32 0.0, %v2943
      %v2945 = vpop.f32.mrf.mxu0
      %2946 = vmatprep.mubr.bf16.mxu0 0
      %2947 = vmatmul.mubr.bf16.gmra.mxu0 %v2853
      %v2948 = vpop.f32.mrf.mxu0
      %v2949 = vadd.f32 0.0, %v2948
      %v2950 = vpop.f32.mrf.mxu0
      %v2951 = vpop.f32.mrf.mxu0
      %v2952 = vadd.f32 0.0, %v2951
      %v2953 = vpop.f32.mrf.mxu0
      %2954 = vmatprep.mubr.bf16.mxu0 0
      %2955 = vmatmul.mubr.bf16.gmra.mxu0 %v2856
      %v2956 = vpop.f32.mrf.mxu0
      %v2957 = vadd.f32 0.0, %v2956
      %v2958 = vpop.f32.mrf.mxu0
      %v2959 = vpop.f32.mrf.mxu0
      %v2960 = vadd.f32 0.0, %v2959
      %v2961 = vpop.f32.mrf.mxu0
      %2962 = vmatprep.mubr.bf16.mxu0 0
      %2963 = vmatmul.mubr.bf16.gmra.mxu0 %v2859
      %v2964 = vpop.f32.mrf.mxu0
      %v2965 = vadd.f32 0.0, %v2964
      %v2966 = vpop.f32.mrf.mxu0
      %v2967 = vpop.f32.mrf.mxu0
      %v2968 = vadd.f32 0.0, %v2967
      %v2969 = vpop.f32.mrf.mxu0
      %2970 = vmatprep.mubr.bf16.mxu0 0
      %2971 = vmatmul.mubr.bf16.gmra.mxu0 %v2862
      %v2972 = vpop.f32.mrf.mxu0
      %v2973 = vadd.f32 0.0, %v2972
      %v2974 = vpop.f32.mrf.mxu0
      %v2975 = vpop.f32.mrf.mxu0
      %v2976 = vadd.f32 0.0, %v2975
      %v2977 = vpop.f32.mrf.mxu0
      %2978 = vmatprep.mubr.bf16.mxu0 0
      %2979 = vmatmul.mubr.bf16.gmra.mxu0 %v2865
      %v2980 = vpop.f32.mrf.mxu0
      %v2981 = vadd.f32 0.0, %v2980
      %v2982 = vpop.f32.mrf.mxu0
      %v2983 = vpop.f32.mrf.mxu0
      %v2984 = vadd.f32 0.0, %v2983
      %v2985 = vpop.f32.mrf.mxu0
      %2986 = vmatprep.mubr.bf16.mxu0 0
      %2987 = vmatmul.mubr.bf16.gmra.mxu0 %v2868
      %v2988 = vpop.f32.mrf.mxu0
      %v2989 = vadd.f32 0.0, %v2988
      %v2990 = vpop.f32.mrf.mxu0
      %v2991 = vpop.f32.mrf.mxu0
      %v2992 = vadd.f32 0.0, %v2991
      %v2993 = vpop.f32.mrf.mxu0
      %2994 = vmatprep.mubr.bf16.mxu0 0
      %2995 = vmatmul.mubr.bf16.gmra.mxu0 %v2871
      %v2996 = vpop.f32.mrf.mxu0
      %v2997 = vadd.f32 0.0, %v2996
      %v2998 = vpop.f32.mrf.mxu0
      %v2999 = vpop.f32.mrf.mxu0
      %v3000 = vadd.f32 0.0, %v2999
      %v3001 = vpop.f32.mrf.mxu0
      %3002 = vmatprep.mubr.bf16.mxu0 0
      %3003 = vmatmul.mubr.bf16.gmra.mxu0 %v2874
      %v3004 = vpop.f32.mrf.mxu0
      %v3005 = vadd.f32 0.0, %v3004
      %v3006 = vpop.f32.mrf.mxu0
      %v3007 = vpop.f32.mrf.mxu0
      %v3008 = vadd.f32 0.0, %v3007
      %v3009 = vpop.f32.mrf.mxu0
      %3010 = vmatprep.mubr.bf16.mxu0 0
      %3011 = vmatmul.mubr.bf16.gmra.mxu0 %v2877
      %v3012 = vpop.f32.mrf.mxu0
      %v3013 = vadd.f32 0.0, %v3012
      %v3014 = vpop.f32.mrf.mxu0
      %v3015 = vpop.f32.mrf.mxu0
      %v3016 = vadd.f32 0.0, %v3015
      %v3017 = vpop.f32.mrf.mxu0
      %3018 = vmatprep.mubr.bf16.mxu0 0
      %3019 = vmatmul.mubr.bf16.gmra.mxu0 %v2880
      %v3020 = vpop.f32.mrf.mxu0
      %v3021 = vadd.f32 0.0, %v3020
      %v3022 = vpop.f32.mrf.mxu0
      %v3023 = vpop.f32.mrf.mxu0
      %v3024 = vadd.f32 0.0, %v3023
      %v3025 = vpop.f32.mrf.mxu0
      %3026 = vmatprep.mubr.bf16.mxu0 0
      %3027 = vmatmul.mubr.bf16.gmra.mxu0 %v2883
      %v3028 = vpop.f32.mrf.mxu0
      %v3029 = vadd.f32 0.0, %v3028
      %v3030 = vpop.f32.mrf.mxu0
      %v3031 = vpop.f32.mrf.mxu0
      %v3032 = vadd.f32 0.0, %v3031
      %v3033 = vpop.f32.mrf.mxu0
      %3034 = vmatprep.mubr.bf16.mxu0 0
      %3035 = vmatmul.mubr.bf16.gmra.mxu0 %v2886
      %v3036 = vpop.f32.mrf.mxu0
      %v3037 = vadd.f32 0.0, %v3036
      %v3038 = vpop.f32.mrf.mxu0
      %v3039 = vpop.f32.mrf.mxu0
      %v3040 = vadd.f32 0.0, %v3039
      %v3041 = vpop.f32.mrf.mxu0
      %3042 = vmatprep.mubr.bf16.mxu0 0
      %3043 = vmatmul.mubr.bf16.gmra.mxu0 %v2889
      %v3044 = vpop.f32.mrf.mxu0
      %v3045 = vadd.f32 0.0, %v3044
      %v3046 = vpop.f32.mrf.mxu0
      %v3047 = vpop.f32.mrf.mxu0
      %v3048 = vadd.f32 0.0, %v3047
      %v3049 = vpop.f32.mrf.mxu0
      %3050 = vmatprep.mubr.bf16.mxu0 0
      %3051 = vmatmul.mubr.bf16.gmra.mxu0 %v2892
      %v3052 = vpop.f32.mrf.mxu0
      %v3053 = vadd.f32 0.0, %v3052
      %v3054 = vpop.f32.mrf.mxu0
      %v3055 = vpop.f32.mrf.mxu0
      %v3056 = vadd.f32 0.0, %v3055
      %v3057 = vpop.f32.mrf.mxu0
      %3058 = vmatprep.mubr.bf16.mxu0 0
      %3059 = vmatmul.mubr.bf16.gmra.mxu0 %v2895
      %v3060 = vpop.f32.mrf.mxu0
      %v3061 = vadd.f32 0.0, %v3060
      %v3062 = vpop.f32.mrf.mxu0
      %v3063 = vpop.f32.mrf.mxu0
      %v3064 = vadd.f32 0.0, %v3063
      %v3065 = vpop.f32.mrf.mxu0
      %3066 = vmatprep.mubr.bf16.mxu0 0
      %3067 = vmatmul.mubr.bf16.gmra.mxu0 %v2898
      %v3068 = vpop.f32.mrf.mxu0
      %v3069 = vadd.f32 0.0, %v3068
      %v3070 = vpop.f32.mrf.mxu0
      %v3071 = vpop.f32.mrf.mxu0
      %v3072 = vadd.f32 0.0, %v3071
      %v3073 = vpop.f32.mrf.mxu0
      %3074 = vmatprep.mubr.bf16.mxu0 0
      %3075 = vmatmul.mubr.bf16.gmra.mxu0 %v2901
      %v3076 = vpop.f32.mrf.mxu0
      %v3077 = vadd.f32 0.0, %v3076
      %v3078 = vpop.f32.mrf.mxu0
      %v3079 = vpop.f32.mrf.mxu0
      %v3080 = vadd.f32 0.0, %v3079
      %v3081 = vpop.f32.mrf.mxu0
      %3082 = vdwg.mxu0
      %v3083 = vadd.f32 %v2773, %v2941
      %v3084 = vadd.f32 %v2774, %v2944
      %v3085 = vadd.f32 %v2775, %v2949
      %v3086 = vadd.f32 %v2776, %v2952
      %v3087 = vadd.f32 %v2777, %v2957
      %v3088 = vadd.f32 %v2778, %v2960
      %v3089 = vadd.f32 %v2779, %v2965
      %v3090 = vadd.f32 %v2780, %v2968
      %v3091 = vadd.f32 %v2781, %v2973
      %v3092 = vadd.f32 %v2782, %v2976
      %v3093 = vadd.f32 %v2783, %v2981
      %v3094 = vadd.f32 %v2784, %v2984
      %v3095 = vadd.f32 %v2785, %v2989
      %v3096 = vadd.f32 %v2786, %v2992
      %v3097 = vadd.f32 %v2787, %v2997
      %v3098 = vadd.f32 %v2788, %v3000
      %v3099 = vadd.f32 %v2789, %v3005
      %v3100 = vadd.f32 %v2790, %v3008
      %v3101 = vadd.f32 %v2791, %v3013
      %v3102 = vadd.f32 %v2792, %v3016
      %v3103 = vadd.f32 %v2793, %v3021
      %v3104 = vadd.f32 %v2794, %v3024
      %v3105 = vadd.f32 %v2795, %v3029
      %v3106 = vadd.f32 %v2796, %v3032
      %v3107 = vadd.f32 %v2797, %v3037
      %v3108 = vadd.f32 %v2798, %v3040
      %v3109 = vadd.f32 %v2799, %v3045
      %v3110 = vadd.f32 %v2800, %v3048
      %v3111 = vadd.f32 %v2801, %v3053
      %v3112 = vadd.f32 %v2802, %v3056
      %v3113 = vadd.f32 %v2803, %v3061
      %v3114 = vadd.f32 %v2804, %v3064
      %v3115 = vadd.f32 %v2805, %v3069
      %v3116 = vadd.f32 %v2806, %v3072
      %v3117 = vadd.f32 %v2807, %v3077
      %v3118 = vadd.f32 %v2808, %v3080
      %v3119 = vld [vmem:[%s3] sm:$0x1]
      %v3121 = vlaneseq
      %v3122 = vshrl.u32 %v3121, 7
      %v3123 = vsub.s32 0, %v3122
      %v3124 = vrot.slane %v3119, %v3123
      %v3126 = vadd.f32 %v3083, %v3124
      %v3127 = vadd.f32 %v3084, %v3124
      %v3128 = vadd.f32 %v3085, %v3124
      %v3129 = vadd.f32 %v3086, %v3124
      %v3130 = vadd.f32 %v3087, %v3124
      %v3131 = vadd.f32 %v3088, %v3124
      %v3132 = vadd.f32 %v3089, %v3124
      %v3133 = vadd.f32 %v3090, %v3124
      %v3134 = vadd.f32 %v3091, %v3124
      %v3135 = vadd.f32 %v3092, %v3124
      %v3136 = vadd.f32 %v3093, %v3124
      %v3137 = vadd.f32 %v3094, %v3124
      %v3138 = vadd.f32 %v3095, %v3124
      %v3139 = vadd.f32 %v3096, %v3124
      %v3140 = vadd.f32 %v3097, %v3124
      %v3141 = vadd.f32 %v3098, %v3124
      %v3142 = vadd.f32 %v3099, %v3124
      %v3143 = vadd.f32 %v3100, %v3124
      %v3144 = vadd.f32 %v3101, %v3124
      %v3145 = vadd.f32 %v3102, %v3124
      %v3146 = vadd.f32 %v3103, %v3124
      %v3147 = vadd.f32 %v3104, %v3124
      %v3148 = vadd.f32 %v3105, %v3124
      %v3149 = vadd.f32 %v3106, %v3124
      %v3150 = vadd.f32 %v3107, %v3124
      %v3151 = vadd.f32 %v3108, %v3124
      %v3152 = vadd.f32 %v3109, %v3124
      %v3153 = vadd.f32 %v3110, %v3124
      %v3154 = vadd.f32 %v3111, %v3124
      %v3155 = vadd.f32 %v3112, %v3124
      %v3156 = vadd.f32 %v3113, %v3124
      %v3157 = vadd.f32 %v3114, %v3124
      %v3158 = vadd.f32 %v3115, %v3124
      %v3159 = vadd.f32 %v3116, %v3124
      %v3160 = vadd.f32 %v3117, %v3124
      %v3161 = vadd.f32 %v3118, %v3124
      %v3162 = vmax.f32 %v3126, 0.0
      %v3163 = vmax.f32 %v3127, 0.0
      %v3164 = vmax.f32 %v3128, 0.0
      %v3165 = vmax.f32 %v3129, 0.0
      %v3166 = vmax.f32 %v3130, 0.0
      %v3167 = vmax.f32 %v3131, 0.0
      %v3168 = vmax.f32 %v3132, 0.0
      %v3169 = vmax.f32 %v3133, 0.0
      %v3170 = vmax.f32 %v3134, 0.0
      %v3171 = vmax.f32 %v3135, 0.0
      %v3172 = vmax.f32 %v3136, 0.0
      %v3173 = vmax.f32 %v3137, 0.0
      %v3174 = vmax.f32 %v3138, 0.0
      %v3175 = vmax.f32 %v3139, 0.0
      %v3176 = vmax.f32 %v3140, 0.0
      %v3177 = vmax.f32 %v3141, 0.0
      %v3178 = vmax.f32 %v3142, 0.0
      %v3179 = vmax.f32 %v3143, 0.0
      %v3180 = vmax.f32 %v3144, 0.0
      %v3181 = vmax.f32 %v3145, 0.0
      %v3182 = vmax.f32 %v3146, 0.0
      %v3183 = vmax.f32 %v3147, 0.0
      %v3184 = vmax.f32 %v3148, 0.0
      %v3185 = vmax.f32 %v3149, 0.0
      %v3186 = vmax.f32 %v3150, 0.0
      %v3187 = vmax.f32 %v3151, 0.0
      %v3188 = vmax.f32 %v3152, 0.0
      %v3189 = vmax.f32 %v3153, 0.0
      %v3190 = vmax.f32 %v3154, 0.0
      %v3191 = vmax.f32 %v3155, 0.0
      %v3192 = vmax.f32 %v3156, 0.0
      %v3193 = vmax.f32 %v3157, 0.0
      %v3194 = vmax.f32 %v3158, 0.0
      %v3195 = vmax.f32 %v3159, 0.0
      %v3196 = vmax.f32 %v3160, 0.0
      %v3197 = vmax.f32 %v3161, 0.0
      %v3198 = vpack.c.bf16 %v3163, %v3162
      %v3199 = vpack.c.bf16 %v3165, %v3164
      %v3200 = vpack.c.bf16 %v3167, %v3166
      %v3201 = vpack.c.bf16 %v3169, %v3168
      %v3202 = vpack.c.bf16 %v3171, %v3170
      %v3203 = vpack.c.bf16 %v3173, %v3172
      %v3204 = vpack.c.bf16 %v3175, %v3174
      %v3205 = vpack.c.bf16 %v3177, %v3176
      %v3206 = vpack.c.bf16 %v3179, %v3178
      %v3207 = vpack.c.bf16 %v3181, %v3180
      %v3208 = vpack.c.bf16 %v3183, %v3182
      %v3209 = vpack.c.bf16 %v3185, %v3184
      %v3210 = vpack.c.bf16 %v3187, %v3186
      %v3211 = vpack.c.bf16 %v3189, %v3188
      %v3212 = vpack.c.bf16 %v3191, %v3190
      %v3213 = vpack.c.bf16 %v3193, %v3192
      %v3214 = vpack.c.bf16 %v3195, %v3194
      %v3215 = vpack.c.bf16 %v3197, %v3196
      %v3234 = vunpack.c.l.b16 %v3198
      %v3235 = vunpack.c.h.b16 %v3198
      %v3236 = vunpack.c.l.b16 %v3199
      %v3237 = vunpack.c.h.b16 %v3199
      %v3238 = vunpack.c.l.b16 %v3200
      %v3239 = vunpack.c.h.b16 %v3200
      %v3240 = vunpack.c.l.b16 %v3201
      %v3241 = vunpack.c.h.b16 %v3201
      %v3242 = vunpack.c.l.b16 %v3202
      %v3243 = vunpack.c.h.b16 %v3202
      %v3244 = vunpack.c.l.b16 %v3203
      %v3245 = vunpack.c.h.b16 %v3203
      %v3246 = vunpack.c.l.b16 %v3204
      %v3247 = vunpack.c.h.b16 %v3204
      %v3248 = vunpack.c.l.b16 %v3205
      %v3249 = vunpack.c.h.b16 %v3205
      %v3250 = vunpack.c.l.b16 %v3206
      %v3251 = vunpack.c.h.b16 %v3206
      %v3252 = vunpack.c.l.b16 %v3207
      %v3253 = vunpack.c.h.b16 %v3207
      %v3254 = vunpack.c.l.b16 %v3208
      %v3255 = vunpack.c.h.b16 %v3208
      %v3256 = vunpack.c.l.b16 %v3209
      %v3257 = vunpack.c.h.b16 %v3209
      %v3258 = vunpack.c.l.b16 %v3210
      %v3259 = vunpack.c.h.b16 %v3210
      %v3260 = vunpack.c.l.b16 %v3211
      %v3261 = vunpack.c.h.b16 %v3211
      %v3262 = vunpack.c.l.b16 %v3212
      %v3263 = vunpack.c.h.b16 %v3212
      %v3264 = vunpack.c.l.b16 %v3213
      %v3265 = vunpack.c.h.b16 %v3213
      %v3266 = vunpack.c.l.b16 %v3214
      %v3267 = vunpack.c.h.b16 %v3214
      %v3268 = vunpack.c.l.b16 %v3215
      %v3269 = vunpack.c.h.b16 %v3215
      %v3270 = vpack.c.b16 %v3234, %v3234
      %v3271 = vpack.c.b16 %v3235, %v3235
      %v3272 = vpack.c.b16 %v3236, %v3236
      %v3273 = vpack.c.b16 %v3237, %v3237
      %v3274 = vpack.c.b16 %v3238, %v3238
      %v3275 = vpack.c.b16 %v3239, %v3239
      %v3276 = vpack.c.b16 %v3240, %v3240
      %v3277 = vpack.c.b16 %v3241, %v3241
      %v3278 = vpack.c.b16 %v3242, %v3242
      %v3279 = vpack.c.b16 %v3243, %v3243
      %v3280 = vpack.c.b16 %v3244, %v3244
      %v3281 = vpack.c.b16 %v3245, %v3245
      %v3282 = vpack.c.b16 %v3246, %v3246
      %v3283 = vpack.c.b16 %v3247, %v3247
      %v3284 = vpack.c.b16 %v3248, %v3248
      %v3285 = vpack.c.b16 %v3249, %v3249
      %v3286 = vpack.c.b16 %v3250, %v3250
      %v3287 = vpack.c.b16 %v3251, %v3251
      %v3288 = vpack.c.b16 %v3252, %v3252
      %v3289 = vpack.c.b16 %v3253, %v3253
      %v3290 = vpack.c.b16 %v3254, %v3254
      %v3291 = vpack.c.b16 %v3255, %v3255
      %v3292 = vpack.c.b16 %v3256, %v3256
      %v3293 = vpack.c.b16 %v3257, %v3257
      %v3294 = vpack.c.b16 %v3258, %v3258
      %v3295 = vpack.c.b16 %v3259, %v3259
      %v3296 = vpack.c.b16 %v3260, %v3260
      %v3297 = vpack.c.b16 %v3261, %v3261
      %v3298 = vpack.c.b16 %v3262, %v3262
      %v3299 = vpack.c.b16 %v3263, %v3263
      %v3300 = vpack.c.b16 %v3264, %v3264
      %v3301 = vpack.c.b16 %v3265, %v3265
      %v3302 = vpack.c.b16 %v3266, %v3266
      %v3303 = vpack.c.b16 %v3267, %v3267
      %v3304 = vpack.c.b16 %v3268, %v3268
      %v3305 = vpack.c.b16 %v3269, %v3269
      %vm3342 = vcmask 125952
      %3343 = vst.msk [vmem:[%s278] sm:$0xf] %vm3342, %v3270
      %3344 = vst.msk [vmem:[%s278 + $0x4] sm:$0xf] %vm3342, %v3271
      %3345 = vst.msk [vmem:[%s278 + $0x8] sm:$0xf] %vm3342, %v3272
      %3346 = vst.msk [vmem:[%s278 + $0xc] sm:$0xf] %vm3342, %v3273
      %3347 = vst.msk [vmem:[%s278 + $0x10] sm:$0xf] %vm3342, %v3274
      %3348 = vst.msk [vmem:[%s278 + $0x14] sm:$0xf] %vm3342, %v3275
      %3349 = vst.msk [vmem:[%s278 + $0x18] sm:$0xf] %vm3342, %v3276
      %3350 = vst.msk [vmem:[%s278 + $0x1c] sm:$0xf] %vm3342, %v3277
      %3351 = vst.msk [vmem:[%s278 + $0x20] sm:$0xf] %vm3342, %v3278
      %3352 = vst.msk [vmem:[%s278 + $0x24] sm:$0xf] %vm3342, %v3279
      %3353 = vst.msk [vmem:[%s278 + $0x28] sm:$0xf] %vm3342, %v3280
      %3354 = vst.msk [vmem:[%s278 + $0x2c] sm:$0xf] %vm3342, %v3281
      %3355 = vst.msk [vmem:[%s278 + $0x30] sm:$0xf] %vm3342, %v3282
      %3356 = vst.msk [vmem:[%s278 + $0x34] sm:$0xf] %vm3342, %v3283
      %3357 = vst.msk [vmem:[%s278 + $0x38] sm:$0xf] %vm3342, %v3284
      %3358 = vst.msk [vmem:[%s278 + $0x3c] sm:$0xf] %vm3342, %v3285
      %3359 = vst.msk [vmem:[%s278 + $0x40] sm:$0xf] %vm3342, %v3286
      %3360 = vst.msk [vmem:[%s278 + $0x44] sm:$0xf] %vm3342, %v3287
      %3361 = vst.msk [vmem:[%s278 + $0x48] sm:$0xf] %vm3342, %v3288
      %3362 = vst.msk [vmem:[%s278 + $0x4c] sm:$0xf] %vm3342, %v3289
      %3363 = vst.msk [vmem:[%s278 + $0x50] sm:$0xf] %vm3342, %v3290
      %3364 = vst.msk [vmem:[%s278 + $0x54] sm:$0xf] %vm3342, %v3291
      %3365 = vst.msk [vmem:[%s278 + $0x58] sm:$0xf] %vm3342, %v3292
      %3366 = vst.msk [vmem:[%s278 + $0x5c] sm:$0xf] %vm3342, %v3293
      %3367 = vst.msk [vmem:[%s278 + $0x60] sm:$0xf] %vm3342, %v3294
      %3368 = vst.msk [vmem:[%s278 + $0x64] sm:$0xf] %vm3342, %v3295
      %3369 = vst.msk [vmem:[%s278 + $0x68] sm:$0xf] %vm3342, %v3296
      %3370 = vst.msk [vmem:[%s278 + $0x6c] sm:$0xf] %vm3342, %v3297
      %3371 = vst.msk [vmem:[%s278 + $0x70] sm:$0xf] %vm3342, %v3298
      %3372 = vst.msk [vmem:[%s278 + $0x74] sm:$0xf] %vm3342, %v3299
      %3373 = vst.msk [vmem:[%s278 + $0x78] sm:$0xf] %vm3342, %v3300
      %3374 = vst.msk [vmem:[%s278 + $0x7c] sm:$0xf] %vm3342, %v3301
      %3375 = vst.msk [vmem:[%s278 + $0x80] sm:$0xf] %vm3342, %v3302
      %3376 = vst.msk [vmem:[%s278 + $0x84] sm:$0xf] %vm3342, %v3303
      %3377 = vst.msk [vmem:[%s278 + $0x88] sm:$0xf] %vm3342, %v3304
      %3378 = vst.msk [vmem:[%s278 + $0x8c] sm:$0xf] %vm3342, %v3305
      %s3379 = smul.u32 36, %s20
      %p3380 = scmp.lt.s32.totalorder %s19, 1
      %s3381 = scalar_select %p3380, %s19, 1
      %p3382 = scmp.lt.s32.totalorder %s3379, 35
      %s3383 = scalar_select %p3382, %s3379, 35
      %s3384 = smul.addr %s3381, 36
      %s3385 = sadd.s32 %s3383, %s3384
      %s3386 = smul.addr %s3385, 4
      %s3387 = scalar_lea.vmem %s4, %s3386
      // Predicated region
      $region37: #{tpu_custom_call.1} parent=35 // pred_check
        %p3388 = pneg %p147
      $region38: #{tpu_custom_call.1} parent=35 // pred_check_branch
        %3390 = sbr.rel (%p3388) target = $region40
      $region39: #{tpu_custom_call.1} parent=35 // pred_region
        %s3391 = smul.u32 36, %s20
      $region40: #{tpu_custom_call.1} parent=35 // pred_fallthru
        _
    $region36: #{tpu_custom_call.1} parent=5 // pred_fallthru
      _
    %p3392 = scmp.le.s32.totalorder 2, %s10
    // Predicated region
    $region41: #{tpu_custom_call.1} parent=5 // pred_check
      %p3393 = pneg %p3392
    $region42: #{tpu_custom_call.1} parent=5 // pred_check_branch
      %3395 = sbr.rel (%p3393) target = $region44
    $region43: #{tpu_custom_call.1} parent=5 // pred_region
      %s3396 = ssub.s32 %s10, 2
      // Predicated region
      $region45: #{tpu_custom_call.1} parent=43 // pred_check
        %p3397 = pneg %p153
      $region46: #{tpu_custom_call.1} parent=43 // pred_check_branch
        %3399 = sbr.rel (%p3397) target = $region48
      $region47: #{tpu_custom_call.1} parent=43 // pred_region
        %s3400 = smul.u32 36, %s22
        %p3401 = scmp.lt.s32.totalorder %s21, 1
        %s3402 = scalar_select %p3401, %s21, 1
        %p3403 = scmp.lt.s32.totalorder %s3400, 35
        %s3404 = scalar_select %p3403, %s3400, 35
        %s3405 = smul.addr %s3402, 36
        %s3406 = sadd.s32 %s3404, %s3405
        %s3407 = smul.addr %s3406, 4
        %s3408 = scalar_lea.vmem %s4, %s3407
      $region48: #{tpu_custom_call.1} parent=43 // pred_fallthru
        _
    $region44: #{tpu_custom_call.1} parent=5 // pred_fallthru
      _
  $region6: #{tpu_custom_call.1} parent=0 // loop_footer
    %s14 = sadd.s32 1, %s10
  $region7: #{tpu_custom_call.1} parent=0 // loop_footer_branch
    %9 = sbr.rel target = $region3
  $region8: #{tpu_custom_call.1} parent=0 // loop_exit
    _

</llo_original>
